<compile_context>
chip_gen: v7x
topology: tpu7x:2x2x1
jax: 0.10.0
libtpu: 0.0.40
codegen_flags: <defaults>
</compile_context>

<pallas_src>
import numpy as np
import jax
import jax.numpy as jnp
from jax import lax
from jax.experimental import pallas as pl
from jax.experimental.pallas import tpu as pltpu

_BN_EPS = 1e-5
_LANE = 128
_GUARD = 8          # zero guard rows before/after the haloed flat tile


def _round_up(x, m):
    return ((x + m - 1) // m) * m


# ----------------------------------------------------------------------------
# VMEM budgeting (generation-aware)
# ----------------------------------------------------------------------------
def _vmem_capacity_bytes():
    try:
        info = pltpu.get_tpu_info()
        cap = getattr(info, "vmem_capacity_bytes", None)
        if cap:
            return int(cap)
    except Exception:
        pass
    return 64 * 1024 * 1024            # conservative (v7x per-core VMEM)


def _budgets():
    cap = _vmem_capacity_bytes()
    vmem_limit = min(int(cap * 3 // 4), 100 * 1024 * 1024)
    tile_budget = int(cap * 0.55)
    return tile_budget, vmem_limit


# ----------------------------------------------------------------------------
# In-kernel helpers
# ----------------------------------------------------------------------------
def _column_mask(Wq, W):
    """(Wq, 1) f32 mask: 1 on real columns wp in [1, W], 0 on pad/junk columns."""
    col = lax.broadcasted_iota(jnp.int32, (Wq, 1), 0)
    return ((col >= 1) & (col <= W)).astype(jnp.float32)


def _conv9(load, w_ref, Wq, Q):
    """3x3 conv = 9 MXU matmuls over row-shifted flat views; f32 accumulate."""
    acc = None
    for dh in range(3):
        for dw in range(3):
            off = _GUARD + dh * Wq + dw - 1
            lhs = load(off, Q)                                    # (Q, cpi) bf16
            p = jnp.dot(lhs, w_ref[dh, dw], preferred_element_type=jnp.float32)
            acc = p if acc is None else acc + p
    return acc


def _stats_and_store(acc, maskc, tile_h, W, Wq, y_ref, st_ref, ed_ref, out_dtype):
    """Mask pad/junk columns, emit per-tile BN partials, store the tile (+edges)."""
    Q = tile_h * Wq
    cpo = acc.shape[-1]
    acc3 = acc.reshape(tile_h, Wq, cpo)                           # f32, layout-free
    valid = acc3 * maskc
    cnt = float(tile_h * W)
    s = jnp.sum(valid, axis=(0, 1), keepdims=True)                # (1,1,cpo)
    mu = s * (1.0 / cnt)
    d = (acc3 - mu) * maskc
    m2 = jnp.sum(d * d, axis=(0, 1), keepdims=True)               # centered partial
    st_ref[0, 0, 0:1, :] = s.reshape(1, cpo)
    st_ref[0, 0, 1:2, :] = m2.reshape(1, cpo)
    y_ref[0, 0] = valid.reshape(Q, cpo).astype(out_dtype)
    if ed_ref is not None:
        ed_ref[0, 0, 0] = valid[0].astype(out_dtype)
        ed_ref[0, 0, 1] = valid[tile_h - 1].astype(out_dtype)


def _make_conv1_kernel(tile_h, W, Wq, out_dtype):
    Q = tile_h * Wq

    def kernel(x_ref, w_ref, y_ref, ed_ref, st_ref):
        maskc = _column_mask(Wq, W)
        acc = _conv9(lambda off, q: x_ref[0, 0, off:off + q, :], w_ref, Wq, Q)
        _stats_and_store(acc, maskc, tile_h, W, Wq, y_ref, st_ref, ed_ref, out_dtype)

    return kernel


def _make_conv2_kernel(tile_h, W, Wq, out_dtype):
    R = tile_h + 2
    Q = tile_h * Wq
    XR = R * Wq + 2 * _GUARD

    def kernel(y1_ref, edp_ref, edn_ref, w_ref, sc_ref, sh_ref, al_ref,
               y_ref, st_ref, xh):
        t = pl.program_id(1)
        last_t = pl.num_programs(1) - 1
        cpm = y1_ref.shape[-1]
        maskc = _column_mask(Wq, W)
        alpha = al_ref[0, 0]
        sc = sc_ref[...]                                          # (1, cpm)
        sh = sh_ref[...]

        def bn_prelu(v):                                          # v: f32 (..., Wq, cpm)
            z = v * sc + sh
            z = jnp.where(z >= 0.0, z, alpha * z)
            return z * maskc                                      # keep pad columns zero

        # --- assemble the prologue'd, haloed input tile in VMEM scratch ---
        xh[0:_GUARD, :] = jnp.zeros((_GUARD, cpm), jnp.bfloat16)
        xh[_GUARD + R * Wq:XR, :] = jnp.zeros((_GUARD, cpm), jnp.bfloat16)

        center = y1_ref[0, 0].astype(jnp.float32).reshape(tile_h, Wq, cpm)
        xh[_GUARD + Wq:_GUARD + Wq + Q, :] = (
            bn_prelu(center).reshape(Q, cpm).astype(jnp.bfloat16))

        zero_row = jnp.zeros((Wq, cpm), jnp.bfloat16)

        @pl.when(t == 0)                      # global top zero-padding row
        def _():
            xh[_GUARD:_GUARD + Wq, :] = zero_row

        @pl.when(t > 0)                       # last row of previous tile
        def _():
            prev = edp_ref[0, 0, 1].astype(jnp.float32)
            xh[_GUARD:_GUARD + Wq, :] = bn_prelu(prev).astype(jnp.bfloat16)

        @pl.when(t == last_t)                 # global bottom zero-padding row
        def _():
            xh[_GUARD + (tile_h + 1) * Wq:_GUARD + R * Wq, :] = zero_row

        @pl.when(t < last_t)                  # first row of next tile
        def _():
            nxt = edn_ref[0, 0, 0].astype(jnp.float32)
            xh[_GUARD + (tile_h + 1) * Wq:_GUARD + R * Wq, :] = (
                bn_prelu(nxt).astype(jnp.bfloat16))

        # --- conv + BN partial stats ---
        acc = _conv9(lambda off, q: xh[off:off + q, :], w_ref, Wq, Q)
        _stats_and_store(acc, maskc, tile_h, W, Wq, y_ref, st_ref, None, out_dtype)

    return kernel


def _affine_prelu_kernel(y_ref, sc_ref, sh_ref, al_ref, o_ref):
    z = y_ref[0, 0].astype(jnp.float32) * sc_ref[...] + sh_ref[...]
    a = al_ref[0, 0]
    o_ref[0, 0] = jnp.where(z >= 0.0, z, a * z).astype(o_ref.dtype)


# ----------------------------------------------------------------------------
# pallas_call wrappers
# ----------------------------------------------------------------------------
def _compiler_params(vmem_limit):
    return pltpu.CompilerParams(
        dimension_semantics=("parallel", "parallel"),
        vmem_limit_bytes=vmem_limit)


def _conv1_call(x_tiles, w_taps, tile_h, W, Wq, vmem_limit):
    N, T, XR, cpi = x_tiles.shape
    cpo = w_taps.shape[-1]
    Q = tile_h * Wq
    kernel = _make_conv1_kernel(tile_h, W, Wq, jnp.bfloat16)
    return pl.pallas_call(
        kernel,
        grid=(N, T),
        in_specs=[
            pl.BlockSpec((1, 1, XR, cpi), lambda n, t: (n, t, 0, 0)),
            pl.BlockSpec((3, 3, cpi, cpo), lambda n, t: (0, 0, 0, 0)),
        ],
        out_specs=(
            pl.BlockSpec((1, 1, Q, cpo), lambda n, t: (n, t, 0, 0)),
            pl.BlockSpec((1, 1, 2, Wq, cpo), lambda n, t: (n, t, 0, 0, 0)),
            pl.BlockSpec((1, 1, 2, cpo), lambda n, t: (n, t, 0, 0)),
        ),
        out_shape=(
            jax.ShapeDtypeStruct((N, T, Q, cpo), jnp.bfloat16),
            jax.ShapeDtypeStruct((N, T, 2, Wq, cpo), jnp.bfloat16),
            jax.ShapeDtypeStruct((N, T, 2, cpo), jnp.float32),
        ),
        compiler_params=_compiler_params(vmem_limit),
    )(x_tiles, w_taps)


def _conv2_call(y1, edges1, w_taps, sc, sh, alpha, tile_h, W, Wq, vmem_limit):
    N, T, Q, cpm = y1.shape
    cpo = w_taps.shape[-1]
    XR = (tile_h + 2) * Wq + 2 * _GUARD
    T_last = T - 1
    kernel = _make_conv2_kernel(tile_h, W, Wq, jnp.bfloat16)
    return pl.pallas_call(
        kernel,
        grid=(N, T),
        in_specs=[
            pl.BlockSpec((1, 1, Q, cpm), lambda n, t: (n, t, 0, 0)),
            pl.BlockSpec((1, 1, 2, Wq, cpm),
                         lambda n, t: (n, jnp.maximum(t - 1, 0), 0, 0, 0)),
            pl.BlockSpec((1, 1, 2, Wq, cpm),
                         lambda n, t: (n, jnp.minimum(t + 1, T_last), 0, 0, 0)),
            pl.BlockSpec((3, 3, cpm, cpo), lambda n, t: (0, 0, 0, 0)),
            pl.BlockSpec((1, cpm), lambda n, t: (0, 0)),
            pl.BlockSpec((1, cpm), lambda n, t: (0, 0)),
            pl.BlockSpec(memory_space=pltpu.MemorySpace.SMEM),
        ],
        out_specs=(
            pl.BlockSpec((1, 1, Q, cpo), lambda n, t: (n, t, 0, 0)),
            pl.BlockSpec((1, 1, 2, cpo), lambda n, t: (n, t, 0, 0)),
        ),
        out_shape=(
            jax.ShapeDtypeStruct((N, T, Q, cpo), jnp.bfloat16),
            jax.ShapeDtypeStruct((N, T, 2, cpo), jnp.float32),
        ),
        scratch_shapes=[pltpu.VMEM((XR, cpm), jnp.bfloat16)],
        compiler_params=_compiler_params(vmem_limit),
    )(y1, edges1, edges1, w_taps, sc, sh, alpha)


def _affine_prelu_call(y2, sc, sh, alpha, vmem_limit):
    N, T, Q, cpo = y2.shape
    return pl.pallas_call(
        _affine_prelu_kernel,
        grid=(N, T),
        in_specs=[
            pl.BlockSpec((1, 1, Q, cpo), lambda n, t: (n, t, 0, 0)),
            pl.BlockSpec((1, cpo), lambda n, t: (0, 0)),
            pl.BlockSpec((1, cpo), lambda n, t: (0, 0)),
            pl.BlockSpec(memory_space=pltpu.MemorySpace.SMEM),
        ],
        out_specs=pl.BlockSpec((1, 1, Q, cpo), lambda n, t: (n, t, 0, 0)),
        out_shape=jax.ShapeDtypeStruct((N, T, Q, cpo), jnp.float32),
        compiler_params=_compiler_params(vmem_limit),
    )(y2, sc, sh, alpha)


# ----------------------------------------------------------------------------
# Host-side helpers (layout / weight plumbing)
# ----------------------------------------------------------------------------
def _bilinear_matrix(n_in, n_out):
    """align_corners=True bilinear interpolation matrix (n_out, n_in)."""
    U = np.zeros((n_out, n_in), np.float32)
    if n_in == 1:
        U[:, 0] = 1.0
        return U
    coords = np.arange(n_out, dtype=np.float64) * (n_in - 1) / (n_out - 1)
    lo = np.clip(np.floor(coords).astype(np.int64), 0, n_in - 2)
    frac = (coords - lo).astype(np.float32)
    U[np.arange(n_out), lo] = 1.0 - frac
    U[np.arange(n_out), lo + 1] += frac
    return U


def _upsample_halo_matrix(h_in, h_out, tile_h):
    """(T, tile_h+2, h_in): bilinear rows + global H zero-pad + halo tiling."""
    U = _bilinear_matrix(h_in, h_out)
    T = h_out // tile_h
    R = tile_h + 2
    Ut = np.zeros((T, R, h_in), np.float32)
    for t in range(T):
        for r in range(R):
            h = t * tile_h + r - 1
            if 0 <= h < h_out:
                Ut[t, r] = U[h]
    return Ut


def _tap_weights(w_oihw, cpi, cpo):
    """OIHW (Cout,Cin,3,3) -> (3,3,Cin_pad,Cout_pad) bf16 dense per-tap weights."""
    co, ci, _, _ = w_oihw.shape
    w = jnp.transpose(w_oihw, (2, 3, 1, 0))
    w = jnp.pad(w, ((0, 0), (0, 0), (0, cpi - ci), (0, cpo - co)))
    return w.astype(jnp.bfloat16)


def _chan_vec(v, cp):
    """(C,) -> (1, Cpad) f32 with zeros on padded channels."""
    return jnp.pad(v.astype(jnp.float32), (0, cp - v.shape[0]))[None, :]


def _bn_scale_shift(stats, gamma, beta, tile_cnt, total_cnt, c_real):
    """Chan-combine per-tile (sum, centered-M2) partials -> per-channel scale/shift.
    Conv bias is omitted on purpose (cancelled exactly by batch-mean subtraction)."""
    s_t = stats[:, :, 0, :]                                  # (N, T, cp)
    m2_t = stats[:, :, 1, :]
    total = jnp.sum(s_t, axis=(0, 1))
    mean = total / total_cnt
    mu_t = s_t / tile_cnt
    m2 = jnp.sum(m2_t, axis=(0, 1)) + jnp.sum(tile_cnt * (mu_t - mean) ** 2,
                                              axis=(0, 1))
    var = jnp.maximum(m2 / total_cnt, 0.0)
    scale = gamma * lax.rsqrt(var[:c_real] + _BN_EPS)
    shift = beta - mean[:c_real] * scale
    cp = stats.shape[-1]
    return _chan_vec(scale, cp), _chan_vec(shift, cp)


def _pick_tile_h(h_out, Wq, cpi, cpm, cpo, budget, n_batch):
    bf, f4 = 2, 4

    def need(th):
        R, Q = th + 2, th * Wq
        X = R * Wq + 2 * _GUARD
        p1 = (2 * X * cpi * bf + 2 * 9 * cpi * cpm * bf + Q * cpm * f4
              + 2 * Q * cpm * bf + 2 * 2 * Wq * cpm * bf + 2 * 2 * cpm * f4)
        p2 = (2 * Q * cpm * bf + 4 * 2 * Wq * cpm * bf + 2 * 9 * cpm * cpo * bf
              + X * cpm * bf + Q * cpm * f4 + Q * cpo * f4
              + 2 * Q * cpo * bf + 2 * 2 * cpo * f4)
        return max(p1, p2)

    cands = [d for d in range(8, h_out + 1, 8) if h_out % d == 0]
    if not cands:
        # TODO(synk): support non-divisor tile_h (cdiv grid + per-row masking)
        # so awkward h_out does not force tiny / odd tiles.
        cands = [d for d in range(1, h_out + 1) if h_out % d == 0]
    fits = [d for d in cands if need(d) <= budget] or [min(cands)]
    best = max(fits)
    if n_batch == 1 and best == h_out:       # keep >=2 grid points for 2-TC chips
        smaller = [d for d in fits if d < h_out]
        if smaller:
            best = max(smaller)
    return best


# ----------------------------------------------------------------------------
# Up.forward
# ----------------------------------------------------------------------------
def up_forward(x_nchw, params, tile_h=None):
    """Forward of Up(in_ch, out_ch, bilinear=True); NCHW in / NCHW out."""
    N, cin, h_in, w_in = x_nchw.shape
    h_out, W = 2 * h_in, 2 * w_in
    w1, w2 = params["w1"], params["w2"]
    cmid, cout = w1.shape[0], w2.shape[0]

    Wq = _round_up(W + 2, 8)                 # width incl. zero-pad cols, 8-aligned
    cpi = _round_up(cin, _LANE)
    cpm = _round_up(cmid, _LANE)
    cpo = _round_up(cout, _LANE)

    budget, vmem_limit = _budgets()
    if tile_h is None:
        tile_h = _pick_tile_h(h_out, Wq, cpi, cpm, cpo, budget, N)
    assert h_out % tile_h == 0
    T = h_out // tile_h
    R = tile_h + 2
    Q = tile_h * Wq
    tile_cnt = float(tile_h * W)
    total_cnt = float(N * h_out * W)

    # Fused: bilinear 2x upsample (align_corners=True) + halo row tiling + W/H
    # zero padding + channel padding, as one default-precision einsum.
    Ut = jnp.asarray(_upsample_halo_matrix(h_in, h_out, tile_h))   # (T, R, h_in)
    Uw = np.zeros((Wq, w_in), np.float32)
    Uw[1:W + 1, :] = _bilinear_matrix(w_in, W)
    Uw = jnp.asarray(Uw)
    xu = jnp.einsum("trh,nchw,qw->ntrqc", Ut, x_nchw.astype(jnp.float32), Uw)
    xu = jnp.pad(xu.astype(jnp.bfloat16),
                 ((0, 0), (0, 0), (0, 0), (0, 0), (0, cpi - cin)))
    x1 = xu.reshape(N, T, R * Wq, cpi)
    x1 = jnp.pad(x1, ((0, 0), (0, 0), (_GUARD, _GUARD), (0, 0)))   # guard rows

    # Block 1: conv3x3 (bias folded away) + per-tile BN partials + edge rows.
    wt1 = _tap_weights(w1, cpi, cpm)
    y1, edges1, st1 = _conv1_call(x1, wt1, tile_h, W, Wq, vmem_limit)
    sc1, sh1 = _bn_scale_shift(st1, params["g1"], params["bt1"],
                               tile_cnt, total_cnt, cmid)
    a1 = jnp.full((1, 1), params["a1"], jnp.float32)

    # Block 2: fused [BN1 + PReLU1] prologue -> conv3x3 + BN partials.
    # Halo rows come from the tiny `edges1` side output (no XLA halo re-stack).
    wt2 = _tap_weights(w2, cpm, cpo)
    y2, st2 = _conv2_call(y1, edges1, wt2, sc1, sh1, a1, tile_h, W, Wq, vmem_limit)
    sc2, sh2 = _bn_scale_shift(st2, params["g2"], params["bt2"],
                               tile_cnt, total_cnt, cout)
    a2 = jnp.full((1, 1), params["a2"], jnp.float32)

    # Epilogue: BN2 scale/shift + PReLU2 (lane-dense elementwise kernel).
    out = _affine_prelu_call(y2, sc2, sh2, a2, vmem_limit)

    out = out.reshape(N, T, tile_h, Wq, cpo)[:, :, :, 1:W + 1, :cout]
    out = out.reshape(N, h_out, W, cout)
    return jnp.transpose(out, (0, 3, 1, 2))                        # NHWC -> NCHW


# ----------------------------------------------------------------------------
# Pure-JAX reference (lax.conv) for a sanity check.
# ----------------------------------------------------------------------------
def _ref_conv_bn_prelu(x_nchw, w_oihw, b, g, bt, alpha):
    y = lax.conv_general_dilated(
        x_nchw, w_oihw, (1, 1), "SAME",
        dimension_numbers=("NCHW", "OIHW", "NCHW"),
        precision=lax.Precision.HIGHEST)
    y = y + b[None, :, None, None]
    mean = y.mean(axis=(0, 2, 3), keepdims=True)
    var = ((y - mean) ** 2).mean(axis=(0, 2, 3), keepdims=True)
    y = (y - mean) / jnp.sqrt(var + _BN_EPS)
    y = y * g[None, :, None, None] + bt[None, :, None, None]
    return jnp.where(y >= 0.0, y, alpha * y)


def ref_up_forward(x_nchw, params):
    N, cin, h_in, w_in = x_nchw.shape
    Uh = jnp.asarray(_bilinear_matrix(h_in, 2 * h_in))
    Uw = jnp.asarray(_bilinear_matrix(w_in, 2 * w_in))
    up = jnp.einsum("ph,nchw,qw->ncpq", Uh, x_nchw.astype(jnp.float32), Uw,
                    precision=lax.Precision.HIGHEST)
    y = _ref_conv_bn_prelu(up, params["w1"], params["b1"], params["g1"],
                           params["bt1"], params["a1"])
    y = _ref_conv_bn_prelu(y, params["w2"], params["b2"], params["g2"],
                           params["bt2"], params["a2"])
    return y


if __name__ == "__main__":
    # batch=2, in_channels=4, out_channels=4 (mid=out), 8x8 input -> 16x16 out.
    # tile_h=8 forces 2 row-tiles so the halo (edges) path and the cross-tile
    # BatchNorm-stats combine are exercised even at toy size.
    N, Cin, H, W_in = 2, 4, 8, 8
    Cout = 4
    Cmid = Cout                              # mid_channels defaults to out_channels

    key = jax.random.PRNGKey(0)
    kx, kw1, kb1, kw2, kb2 = jax.random.split(key, 5)
    x = jax.random.normal(kx, (N, Cin, H, W_in), jnp.float32)

    params = {
        "w1": 0.1 * jax.random.normal(kw1, (Cmid, Cin, 3, 3), jnp.float32),
        "b1": 0.1 * jax.random.normal(kb1, (Cmid,), jnp.float32),
        "g1": jnp.ones((Cmid,), jnp.float32),     # BatchNorm gamma init
        "bt1": jnp.zeros((Cmid,), jnp.float32),   # BatchNorm beta init
        "a1": 0.25,                               # PReLU default alpha
        "w2": 0.1 * jax.random.normal(kw2, (Cout, Cmid, 3, 3), jnp.float32),
        "b2": 0.1 * jax.random.normal(kb2, (Cout,), jnp.float32),
        "g2": jnp.ones((Cout,), jnp.float32),
        "bt2": jnp.zeros((Cout,), jnp.float32),
        "a2": 0.25,
    }

    out = jax.block_until_ready(up_forward(x, params, tile_h=8))
    assert out.shape == (N, Cout, 2 * H, 2 * W_in)

    ref = jax.block_until_ready(ref_up_forward(x, params))
    err = float(np.max(np.abs(np.asarray(out) - np.asarray(ref))))
    assert np.allclose(np.asarray(out), np.asarray(ref), atol=5e-2, rtol=5e-2), err

    print("KERNEL_OK")
</pallas_src>

<mosaic_0001>
module attributes {stable_mosaic.version = 11 : i64} {
  func.func @kernel(%arg0: i32, %arg1: i32, %arg2: memref<1x1x256x128xbf16, #tpu.memory_space<vmem>>, %arg3: memref<3x3x128x128xbf16, #tpu.memory_space<vmem>>, %arg4: memref<1x1x192x128xbf16, #tpu.memory_space<vmem>>, %arg5: memref<1x1x2x24x128xbf16, #tpu.memory_space<vmem>>, %arg6: memref<1x1x2x128xf32, #tpu.memory_space<vmem>>) attributes {dimension_semantics = [#tpu.dimension_semantics<parallel>, #tpu.dimension_semantics<parallel>], iteration_bounds = array<i64: 2, 2>, scalar_prefetch = 0 : i64, scratch_operands = 0 : i64, tpu.core_type = #tpu.core_type<tc>, window_params = [{transform_indices = @transform_0, window_bounds = array<i64: 1, 1, 256, 128>}, {pipeline_mode = #tpu.pipeline_mode<synchronous>, transform_indices = @transform_1, window_bounds = array<i64: 3, 3, 128, 128>}, {transform_indices = @transform_2, window_bounds = array<i64: 1, 1, 192, 128>}, {transform_indices = @transform_3, window_bounds = array<i64: 1, 1, 2, 24, 128>}, {transform_indices = @transform_4, window_bounds = array<i64: 1, 1, 2, 128>}]} {
    %0 = tpu.iota {dimensions = array<i32: 0>} : vector<24x1xi32>
    %c1_i32 = arith.constant 1 : i32
    %1 = vector.broadcast %c1_i32 : i32 to vector<24x1xi32>
    %2 = arith.cmpi sge, %0, %1 : vector<24x1xi32>
    %c16_i32 = arith.constant 16 : i32
    %3 = vector.broadcast %c16_i32 : i32 to vector<24x1xi32>
    %4 = arith.cmpi sle, %0, %3 : vector<24x1xi32>
    %5 = arith.andi %2, %4 : vector<24x1xi1>
    %6 = arith.extui %5 : vector<24x1xi1> to vector<24x1xi32>
    %7 = arith.sitofp %6 : vector<24x1xi32> to vector<24x1xf32>
    %c0 = arith.constant 0 : index
    %c0_0 = arith.constant 0 : index
    %c7 = arith.constant 7 : index
    %c0_1 = arith.constant 0 : index
    %8 = vector.load %arg2[%c0, %c0_0, %c7, %c0_1] : memref<1x1x256x128xbf16, #tpu.memory_space<vmem>>, vector<1x1x192x128xbf16>
    %9 = vector.shape_cast %8 : vector<1x1x192x128xbf16> to vector<192x128xbf16>
    %c0_2 = arith.constant 0 : index
    %c0_3 = arith.constant 0 : index
    %c0_4 = arith.constant 0 : index
    %c0_5 = arith.constant 0 : index
    %10 = vector.load %arg3[%c0_2, %c0_3, %c0_4, %c0_5] : memref<3x3x128x128xbf16, #tpu.memory_space<vmem>>, vector<1x1x128x128xbf16>
    %11 = vector.shape_cast %10 : vector<1x1x128x128xbf16> to vector<128x128xbf16>
    %cst = arith.constant dense<0.000000e+00> : vector<192x128xf32>
    %12 = tpu.matmul %9, %11, %cst {dimension_numbers = #tpu.dot_dimension_numbers<[1], [0], [0], [1], [0, 0, 1, 1], [], []>} : vector<192x128xbf16>, vector<128x128xbf16>, vector<192x128xf32> -> vector<192x128xf32>
    %c0_6 = arith.constant 0 : index
    %c0_7 = arith.constant 0 : index
    %c8 = arith.constant 8 : index
    %c0_8 = arith.constant 0 : index
    %13 = vector.load %arg2[%c0_6, %c0_7, %c8, %c0_8] : memref<1x1x256x128xbf16, #tpu.memory_space<vmem>>, vector<1x1x192x128xbf16>
    %14 = vector.shape_cast %13 : vector<1x1x192x128xbf16> to vector<192x128xbf16>
    %c0_9 = arith.constant 0 : index
    %c1 = arith.constant 1 : index
    %c0_10 = arith.constant 0 : index
    %c0_11 = arith.constant 0 : index
    %15 = vector.load %arg3[%c0_9, %c1, %c0_10, %c0_11] : memref<3x3x128x128xbf16, #tpu.memory_space<vmem>>, vector<1x1x128x128xbf16>
    %16 = vector.shape_cast %15 : vector<1x1x128x128xbf16> to vector<128x128xbf16>
    %cst_12 = arith.constant dense<0.000000e+00> : vector<192x128xf32>
    %17 = tpu.matmul %14, %16, %cst_12 {dimension_numbers = #tpu.dot_dimension_numbers<[1], [0], [0], [1], [0, 0, 1, 1], [], []>} : vector<192x128xbf16>, vector<128x128xbf16>, vector<192x128xf32> -> vector<192x128xf32>
    %18 = arith.addf %12, %17 : vector<192x128xf32>
    %c0_13 = arith.constant 0 : index
    %c0_14 = arith.constant 0 : index
    %c9 = arith.constant 9 : index
    %c0_15 = arith.constant 0 : index
    %19 = vector.load %arg2[%c0_13, %c0_14, %c9, %c0_15] : memref<1x1x256x128xbf16, #tpu.memory_space<vmem>>, vector<1x1x192x128xbf16>
    %20 = vector.shape_cast %19 : vector<1x1x192x128xbf16> to vector<192x128xbf16>
    %c0_16 = arith.constant 0 : index
    %c2 = arith.constant 2 : index
    %c0_17 = arith.constant 0 : index
    %c0_18 = arith.constant 0 : index
    %21 = vector.load %arg3[%c0_16, %c2, %c0_17, %c0_18] : memref<3x3x128x128xbf16, #tpu.memory_space<vmem>>, vector<1x1x128x128xbf16>
    %22 = vector.shape_cast %21 : vector<1x1x128x128xbf16> to vector<128x128xbf16>
    %cst_19 = arith.constant dense<0.000000e+00> : vector<192x128xf32>
    %23 = tpu.matmul %20, %22, %cst_19 {dimension_numbers = #tpu.dot_dimension_numbers<[1], [0], [0], [1], [0, 0, 1, 1], [], []>} : vector<192x128xbf16>, vector<128x128xbf16>, vector<192x128xf32> -> vector<192x128xf32>
    %24 = arith.addf %18, %23 : vector<192x128xf32>
    %c0_20 = arith.constant 0 : index
    %c0_21 = arith.constant 0 : index
    %c31 = arith.constant 31 : index
    %c0_22 = arith.constant 0 : index
    %25 = vector.load %arg2[%c0_20, %c0_21, %c31, %c0_22] : memref<1x1x256x128xbf16, #tpu.memory_space<vmem>>, vector<1x1x192x128xbf16>
    %26 = vector.shape_cast %25 : vector<1x1x192x128xbf16> to vector<192x128xbf16>
    %c1_23 = arith.constant 1 : index
    %c0_24 = arith.constant 0 : index
    %c0_25 = arith.constant 0 : index
    %c0_26 = arith.constant 0 : index
    %27 = vector.load %arg3[%c1_23, %c0_24, %c0_25, %c0_26] : memref<3x3x128x128xbf16, #tpu.memory_space<vmem>>, vector<1x1x128x128xbf16>
    %28 = vector.shape_cast %27 : vector<1x1x128x128xbf16> to vector<128x128xbf16>
    %cst_27 = arith.constant dense<0.000000e+00> : vector<192x128xf32>
    %29 = tpu.matmul %26, %28, %cst_27 {dimension_numbers = #tpu.dot_dimension_numbers<[1], [0], [0], [1], [0, 0, 1, 1], [], []>} : vector<192x128xbf16>, vector<128x128xbf16>, vector<192x128xf32> -> vector<192x128xf32>
    %30 = arith.addf %24, %29 : vector<192x128xf32>
    %c0_28 = arith.constant 0 : index
    %c0_29 = arith.constant 0 : index
    %c32 = arith.constant 32 : index
    %c0_30 = arith.constant 0 : index
    %31 = vector.load %arg2[%c0_28, %c0_29, %c32, %c0_30] : memref<1x1x256x128xbf16, #tpu.memory_space<vmem>>, vector<1x1x192x128xbf16>
    %32 = vector.shape_cast %31 : vector<1x1x192x128xbf16> to vector<192x128xbf16>
    %c1_31 = arith.constant 1 : index
    %c1_32 = arith.constant 1 : index
    %c0_33 = arith.constant 0 : index
    %c0_34 = arith.constant 0 : index
    %33 = vector.load %arg3[%c1_31, %c1_32, %c0_33, %c0_34] : memref<3x3x128x128xbf16, #tpu.memory_space<vmem>>, vector<1x1x128x128xbf16>
    %34 = vector.shape_cast %33 : vector<1x1x128x128xbf16> to vector<128x128xbf16>
    %cst_35 = arith.constant dense<0.000000e+00> : vector<192x128xf32>
    %35 = tpu.matmul %32, %34, %cst_35 {dimension_numbers = #tpu.dot_dimension_numbers<[1], [0], [0], [1], [0, 0, 1, 1], [], []>} : vector<192x128xbf16>, vector<128x128xbf16>, vector<192x128xf32> -> vector<192x128xf32>
    %36 = arith.addf %30, %35 : vector<192x128xf32>
    %c0_36 = arith.constant 0 : index
    %c0_37 = arith.constant 0 : index
    %c33 = arith.constant 33 : index
    %c0_38 = arith.constant 0 : index
    %37 = vector.load %arg2[%c0_36, %c0_37, %c33, %c0_38] : memref<1x1x256x128xbf16, #tpu.memory_space<vmem>>, vector<1x1x192x128xbf16>
    %38 = vector.shape_cast %37 : vector<1x1x192x128xbf16> to vector<192x128xbf16>
    %c1_39 = arith.constant 1 : index
    %c2_40 = arith.constant 2 : index
    %c0_41 = arith.constant 0 : index
    %c0_42 = arith.constant 0 : index
    %39 = vector.load %arg3[%c1_39, %c2_40, %c0_41, %c0_42] : memref<3x3x128x128xbf16, #tpu.memory_space<vmem>>, vector<1x1x128x128xbf16>
    %40 = vector.shape_cast %39 : vector<1x1x128x128xbf16> to vector<128x128xbf16>
    %cst_43 = arith.constant dense<0.000000e+00> : vector<192x128xf32>
    %41 = tpu.matmul %38, %40, %cst_43 {dimension_numbers = #tpu.dot_dimension_numbers<[1], [0], [0], [1], [0, 0, 1, 1], [], []>} : vector<192x128xbf16>, vector<128x128xbf16>, vector<192x128xf32> -> vector<192x128xf32>
    %42 = arith.addf %36, %41 : vector<192x128xf32>
    %c0_44 = arith.constant 0 : index
    %c0_45 = arith.constant 0 : index
    %c55 = arith.constant 55 : index
    %c0_46 = arith.constant 0 : index
    %43 = vector.load %arg2[%c0_44, %c0_45, %c55, %c0_46] : memref<1x1x256x128xbf16, #tpu.memory_space<vmem>>, vector<1x1x192x128xbf16>
    %44 = vector.shape_cast %43 : vector<1x1x192x128xbf16> to vector<192x128xbf16>
    %c2_47 = arith.constant 2 : index
    %c0_48 = arith.constant 0 : index
    %c0_49 = arith.constant 0 : index
    %c0_50 = arith.constant 0 : index
    %45 = vector.load %arg3[%c2_47, %c0_48, %c0_49, %c0_50] : memref<3x3x128x128xbf16, #tpu.memory_space<vmem>>, vector<1x1x128x128xbf16>
    %46 = vector.shape_cast %45 : vector<1x1x128x128xbf16> to vector<128x128xbf16>
    %cst_51 = arith.constant dense<0.000000e+00> : vector<192x128xf32>
    %47 = tpu.matmul %44, %46, %cst_51 {dimension_numbers = #tpu.dot_dimension_numbers<[1], [0], [0], [1], [0, 0, 1, 1], [], []>} : vector<192x128xbf16>, vector<128x128xbf16>, vector<192x128xf32> -> vector<192x128xf32>
    %48 = arith.addf %42, %47 : vector<192x128xf32>
    %c0_52 = arith.constant 0 : index
    %c0_53 = arith.constant 0 : index
    %c56 = arith.constant 56 : index
    %c0_54 = arith.constant 0 : index
    %49 = vector.load %arg2[%c0_52, %c0_53, %c56, %c0_54] : memref<1x1x256x128xbf16, #tpu.memory_space<vmem>>, vector<1x1x192x128xbf16>
    %50 = vector.shape_cast %49 : vector<1x1x192x128xbf16> to vector<192x128xbf16>
    %c2_55 = arith.constant 2 : index
    %c1_56 = arith.constant 1 : index
    %c0_57 = arith.constant 0 : index
    %c0_58 = arith.constant 0 : index
    %51 = vector.load %arg3[%c2_55, %c1_56, %c0_57, %c0_58] : memref<3x3x128x128xbf16, #tpu.memory_space<vmem>>, vector<1x1x128x128xbf16>
    %52 = vector.shape_cast %51 : vector<1x1x128x128xbf16> to vector<128x128xbf16>
    %cst_59 = arith.constant dense<0.000000e+00> : vector<192x128xf32>
    %53 = tpu.matmul %50, %52, %cst_59 {dimension_numbers = #tpu.dot_dimension_numbers<[1], [0], [0], [1], [0, 0, 1, 1], [], []>} : vector<192x128xbf16>, vector<128x128xbf16>, vector<192x128xf32> -> vector<192x128xf32>
    %54 = arith.addf %48, %53 : vector<192x128xf32>
    %c0_60 = arith.constant 0 : index
    %c0_61 = arith.constant 0 : index
    %c57 = arith.constant 57 : index
    %c0_62 = arith.constant 0 : index
    %55 = vector.load %arg2[%c0_60, %c0_61, %c57, %c0_62] : memref<1x1x256x128xbf16, #tpu.memory_space<vmem>>, vector<1x1x192x128xbf16>
    %56 = vector.shape_cast %55 : vector<1x1x192x128xbf16> to vector<192x128xbf16>
    %c2_63 = arith.constant 2 : index
    %c2_64 = arith.constant 2 : index
    %c0_65 = arith.constant 0 : index
    %c0_66 = arith.constant 0 : index
    %57 = vector.load %arg3[%c2_63, %c2_64, %c0_65, %c0_66] : memref<3x3x128x128xbf16, #tpu.memory_space<vmem>>, vector<1x1x128x128xbf16>
    %58 = vector.shape_cast %57 : vector<1x1x128x128xbf16> to vector<128x128xbf16>
    %cst_67 = arith.constant dense<0.000000e+00> : vector<192x128xf32>
    %59 = tpu.matmul %56, %58, %cst_67 {dimension_numbers = #tpu.dot_dimension_numbers<[1], [0], [0], [1], [0, 0, 1, 1], [], []>} : vector<192x128xbf16>, vector<128x128xbf16>, vector<192x128xf32> -> vector<192x128xf32>
    %60 = arith.addf %54, %59 : vector<192x128xf32>
    %61 = vector.shape_cast %60 : vector<192x128xf32> to vector<8x24x128xf32>
    %62 = vector.shape_cast %7 : vector<24x1xf32> to vector<1x24x1xf32>
    %63 = vector.broadcast %62 : vector<1x24x1xf32> to vector<8x24x128xf32>
    %64 = arith.mulf %61, %63 : vector<8x24x128xf32>
    %cst_68 = arith.constant dense<0.000000e+00> : vector<128xf32>
    %65 = vector.multi_reduction <add>, %64, %cst_68 [0, 1] : vector<8x24x128xf32> to vector<128xf32>
    %66 = vector.shape_cast %65 : vector<128xf32> to vector<1x1x128xf32>
    %cst_69 = arith.constant 7.812500e-03 : f32
    %67 = vector.broadcast %cst_69 : f32 to vector<1x1x128xf32>
    %68 = arith.mulf %66, %67 : vector<1x1x128xf32>
    %69 = vector.broadcast %68 : vector<1x1x128xf32> to vector<8x24x128xf32>
    %70 = arith.subf %61, %69 : vector<8x24x128xf32>
    %71 = vector.shape_cast %7 : vector<24x1xf32> to vector<1x24x1xf32>
    %72 = vector.broadcast %71 : vector<1x24x1xf32> to vector<8x24x128xf32>
    %73 = arith.mulf %70, %72 : vector<8x24x128xf32>
    %74 = arith.mulf %73, %73 : vector<8x24x128xf32>
    %cst_70 = arith.constant dense<0.000000e+00> : vector<128xf32>
    %75 = vector.multi_reduction <add>, %74, %cst_70 [0, 1] : vector<8x24x128xf32> to vector<128xf32>
    %76 = vector.shape_cast %75 : vector<128xf32> to vector<1x1x128xf32>
    %77 = vector.shape_cast %66 : vector<1x1x128xf32> to vector<1x128xf32>
    %c0_71 = arith.constant 0 : index
    %c0_72 = arith.constant 0 : index
    %c0_73 = arith.constant 0 : index
    %c0_74 = arith.constant 0 : index
    %78 = vector.load %arg6[%c0_71, %c0_72, %c0_73, %c0_74] : memref<1x1x2x128xf32, #tpu.memory_space<vmem>>, vector<1x1x1x128xf32>
    %79 = vector.shape_cast %78 : vector<1x1x1x128xf32> to vector<1x128xf32>
    %80 = vector.shape_cast %77 : vector<1x128xf32> to vector<1x1x1x128xf32>
    tpu.vector_store %arg6[%c0_71, %c0_72, %c0_73, %c0_74], %80 {strides = array<i32>} : memref<1x1x2x128xf32, #tpu.memory_space<vmem>>, vector<1x1x1x128xf32>,
    %81 = vector.shape_cast %76 : vector<1x1x128xf32> to vector<1x128xf32>
    %c0_75 = arith.constant 0 : index
    %c0_76 = arith.constant 0 : index
    %c1_77 = arith.constant 1 : index
    %c0_78 = arith.constant 0 : index
    %82 = vector.load %arg6[%c0_75, %c0_76, %c1_77, %c0_78] : memref<1x1x2x128xf32, #tpu.memory_space<vmem>>, vector<1x1x1x128xf32>
    %83 = vector.shape_cast %82 : vector<1x1x1x128xf32> to vector<1x128xf32>
    %84 = vector.shape_cast %81 : vector<1x128xf32> to vector<1x1x1x128xf32>
    tpu.vector_store %arg6[%c0_75, %c0_76, %c1_77, %c0_78], %84 {strides = array<i32>} : memref<1x1x2x128xf32, #tpu.memory_space<vmem>>, vector<1x1x1x128xf32>,
    %85 = vector.shape_cast %64 : vector<8x24x128xf32> to vector<192x128xf32>
    %86 = arith.truncf %85 : vector<192x128xf32> to vector<192x128xbf16>
    %c0_79 = arith.constant 0 : index
    %c0_80 = arith.constant 0 : index
    %c0_81 = arith.constant 0 : index
    %c0_82 = arith.constant 0 : index
    %87 = vector.load %arg4[%c0_79, %c0_80, %c0_81, %c0_82] : memref<1x1x192x128xbf16, #tpu.memory_space<vmem>>, vector<1x1x192x128xbf16>
    %88 = vector.shape_cast %87 : vector<1x1x192x128xbf16> to vector<192x128xbf16>
    %89 = vector.shape_cast %86 : vector<192x128xbf16> to vector<1x1x192x128xbf16>
    tpu.vector_store %arg4[%c0_79, %c0_80, %c0_81, %c0_82], %89 {strides = array<i32>} : memref<1x1x192x128xbf16, #tpu.memory_space<vmem>>, vector<1x1x192x128xbf16>,
    %90 = vector.extract_strided_slice %64 {offsets = [0, 0, 0], sizes = [1, 24, 128], strides = [1, 1, 1]} : vector<8x24x128xf32> to vector<1x24x128xf32>
    %91 = vector.shape_cast %90 : vector<1x24x128xf32> to vector<24x128xf32>
    %92 = arith.truncf %91 : vector<24x128xf32> to vector<24x128xbf16>
    %c0_83 = arith.constant 0 : index
    %c0_84 = arith.constant 0 : index
    %c0_85 = arith.constant 0 : index
    %c0_86 = arith.constant 0 : index
    %c0_87 = arith.constant 0 : index
    %93 = vector.load %arg5[%c0_83, %c0_84, %c0_85, %c0_86, %c0_87] : memref<1x1x2x24x128xbf16, #tpu.memory_space<vmem>>, vector<1x1x1x24x128xbf16>
    %94 = vector.shape_cast %93 : vector<1x1x1x24x128xbf16> to vector<24x128xbf16>
    %95 = vector.shape_cast %92 : vector<24x128xbf16> to vector<1x1x1x24x128xbf16>
    tpu.vector_store %arg5[%c0_83, %c0_84, %c0_85, %c0_86, %c0_87], %95 {strides = array<i32>} : memref<1x1x2x24x128xbf16, #tpu.memory_space<vmem>>, vector<1x1x1x24x128xbf16>,
    %96 = vector.extract_strided_slice %64 {offsets = [7, 0, 0], sizes = [1, 24, 128], strides = [1, 1, 1]} : vector<8x24x128xf32> to vector<1x24x128xf32>
    %97 = vector.shape_cast %96 : vector<1x24x128xf32> to vector<24x128xf32>
    %98 = arith.truncf %97 : vector<24x128xf32> to vector<24x128xbf16>
    %c0_88 = arith.constant 0 : index
    %c0_89 = arith.constant 0 : index
    %c1_90 = arith.constant 1 : index
    %c0_91 = arith.constant 0 : index
    %c0_92 = arith.constant 0 : index
    %99 = vector.load %arg5[%c0_88, %c0_89, %c1_90, %c0_91, %c0_92] : memref<1x1x2x24x128xbf16, #tpu.memory_space<vmem>>, vector<1x1x1x24x128xbf16>
    %100 = vector.shape_cast %99 : vector<1x1x1x24x128xbf16> to vector<24x128xbf16>
    %101 = vector.shape_cast %98 : vector<24x128xbf16> to vector<1x1x1x24x128xbf16>
    tpu.vector_store %arg5[%c0_88, %c0_89, %c1_90, %c0_91, %c0_92], %101 {strides = array<i32>} : memref<1x1x2x24x128xbf16, #tpu.memory_space<vmem>>, vector<1x1x1x24x128xbf16>,
    return
  }
  func.func @transform_0(%arg0: i32, %arg1: i32) -> (i32, i32, i32, i32) {
    %c0_i32 = arith.constant 0 : i32
    %c0_i32_0 = arith.constant 0 : i32
    %c0_i32_1 = arith.constant 0 : i32
    return %arg0, %arg1, %c0_i32, %c0_i32_0 : i32, i32, i32, i32
  }
  func.func @transform_1(%arg0: i32, %arg1: i32) -> (i32, i32, i32, i32) {
    %c0_i32 = arith.constant 0 : i32
    %c0_i32_0 = arith.constant 0 : i32
    %c0_i32_1 = arith.constant 0 : i32
    %c0_i32_2 = arith.constant 0 : i32
    %c0_i32_3 = arith.constant 0 : i32
    return %c0_i32, %c0_i32_0, %c0_i32_1, %c0_i32_2 : i32, i32, i32, i32
  }
  func.func @transform_2(%arg0: i32, %arg1: i32) -> (i32, i32, i32, i32) {
    %c0_i32 = arith.constant 0 : i32
    %c0_i32_0 = arith.constant 0 : i32
    %c0_i32_1 = arith.constant 0 : i32
    return %arg0, %arg1, %c0_i32, %c0_i32_0 : i32, i32, i32, i32
  }
  func.func @transform_3(%arg0: i32, %arg1: i32) -> (i32, i32, i32, i32, i32) {
    %c0_i32 = arith.constant 0 : i32
    %c0_i32_0 = arith.constant 0 : i32
    %c0_i32_1 = arith.constant 0 : i32
    %c0_i32_2 = arith.constant 0 : i32
    return %arg0, %arg1, %c0_i32, %c0_i32_0, %c0_i32_1 : i32, i32, i32, i32, i32
  }
  func.func @transform_4(%arg0: i32, %arg1: i32) -> (i32, i32, i32, i32) {
    %c0_i32 = arith.constant 0 : i32
    %c0_i32_0 = arith.constant 0 : i32
    %c0_i32_1 = arith.constant 0 : i32
    return %arg0, %arg1, %c0_i32, %c0_i32_0 : i32, i32, i32, i32
  }
}

</mosaic_0001>

<llo_original>
// kernel: tpu_custom_call.1
$region0: #{tpu_custom_call.1}
  #allocation0 [shape = 'u32[]', space=smem, size = 0x4, offset = 0x4, fixed_abs, tag = 'smem constant byte address 0x4 - core index']
  #allocation1 [shape = 'u32[144,128]{1,0:T(1,128)}', space=vmem, size = 0x12000, scoped, tag = 'internal scratch']
  %s0 = inlined_call_operand.hbm [shape: bf16[2,2,256,128], index: 0, kind: input, shape index: {}]
  %s1 = inlined_call_operand.hbm [shape: bf16[3,3,128,128], index: 1, kind: input, shape index: {}]
  %s2 = inlined_call_operand.hbm [shape: bf16[2,2,192,128], index: 2, kind: output, shape index: {0}]
  %s3 = inlined_call_operand.hbm [shape: bf16[2,2,2,24,128], index: 3, kind: output, shape index: {1}]
  %s4 = inlined_call_operand.hbm [shape: f32[2,2,2,128], index: 4, kind: output, shape index: {2}]
  %5 = xla_tuple %s2, %s3, %s4
  %s6 = sld [smem:[#allocation0]]
  $region65: #{tpu_custom_call.1} parent=0
    _
  %s8 = ssub.s32 1, %s6
  %s9 = scalar_select 0, %s8, %s6
  $region1: #{tpu_custom_call.1} parent=0
    #allocation2 [shape = 'u8[131072]{0}', space=vmem, size = 0x20000, scoped, tag = 'input window, operand 0']
    #allocation3 [shape = 's32[2]{0}', space=sflag, size = 0x8, scoped, tag = 'scoped memory for tpu_custom_call.1']
    #allocation4 [shape = 's32[2]{0}', space=sflag, size = 0x8, scoped, tag = 'scoped memory for tpu_custom_call.1']
    #allocation5 [shape = 'u8[294912]{0}', space=vmem, size = 0x48000, scoped, tag = 'input window, operand 1, single buffered']
    #allocation6 [shape = 's32[1]{0}', space=sflag, size = 0x4, scoped, tag = 'scoped memory for tpu_custom_call.1']
    #allocation7 [shape = 'u8[98304]{0}', space=vmem, size = 0x18000, scoped, tag = 'output window, operand 0']
    #allocation8 [shape = 'u8[24576]{0}', space=vmem, size = 0x6000, scoped, tag = 'output window, operand 1']
    #allocation9 [shape = 's32[2]{0}', space=sflag, size = 0x8, scoped, tag = 'scoped memory for tpu_custom_call.1']
    #allocation10 [shape = 'u8[2048]{0}', space=vmem, size = 0x800, scoped, tag = 'output window, operand 2']
    %10 = vsyncpa [#allocation3], 0
    %s11 = scalar_lea.sflag [#allocation3], 1
    %12 = vsyncpa %s11, 0
    %13 = vsyncpa [#allocation6], 0
    %14 = vsyncpa [#allocation4], 0
    %s15 = scalar_lea.sflag [#allocation4], 1
    %16 = vsyncpa %s15, 0
    %17 = vsyncpa [#allocation9], 0
    %s18 = scalar_lea.sflag [#allocation9], 1
    %19 = vsyncpa %s18, 0
    loop: start=0, step=1, limit=6
    $region2: #{tpu_custom_call.1} parent=1 // loop_pre_header
      _
    $region3: #{tpu_custom_call.1} parent=1 // loop_header
      %s21 = sphi 0, %s25
      %p22 = scmp.ge.s32.totalorder %s21, 6
      %s28 = sphi 0, %s40
      %s29 = sphi 0, %s36
      %s30 = sphi 0, %s28
      %s31 = sphi 0, %s29
      %s32 = sphi 0, %s30
      %s33 = sphi 0, %s31
      %s45 = sphi 0, %s47
      %s48 = sphi 0, %s45
      %s49 = sphi 0, %s48
      %s65 = sphi 0, %s49
      %s69 = sphi 0, %s69
      %s71 = sphi 0, %s69
      %s72 = sphi 0, %s71
      %s86 = sphi 0, %s72
      %s94 = sphi 0, %s96
      %s97 = sphi 0, %s94
      %s98 = sphi 0, %s97
      %s114 = sphi 0, %s98
      %s122 = sphi 0, %s124
      %s125 = sphi 0, %s122
      %s126 = sphi 0, %s125
      %s142 = sphi 0, %s126
      %s150 = sphi 0, %s152
      %s153 = sphi 0, %s150
      %s154 = sphi 0, %s153
      %s170 = sphi 0, %s154
    $region4: #{tpu_custom_call.1} parent=1 // loop_header_branch
      %24 = sbr.rel (%p22) target = $region8
    $region5: #{tpu_custom_call.1} parent=1 // loop_body
      %s26 = ssub.s32 %s21, 1
      %s27 = ssub.s32 %s21, 2
      %s34 = sadd.s32 1, %s29
      %p35 = scmp.ge.s32.totalorder %s34, 2
      %s36 = scalar_select %p35, 0, %s34
      %s37 = sadd.s32 1, %s28
      %s38 = scalar_select %p35, %s37, %s28
      %p39 = scmp.ge.s32.totalorder %s38, 2
      %s40 = scalar_select %p39, 0, %s38
      %s41 = ssub.s32 %s28, %s40
      %s42 = ssub.s32 %s29, %s36
      %s43 = sor.u32 %s41, %s42
      %p44 = scmp.eq.s32.totalorder %s43, 0
      %s46 = sadd.s32 %s45, 1
      %s47 = scalar_select %p44, %s45, %s46
      %p50 = pneg %p44
      %p51 = scmp.eq.s32.totalorder %s21, 3
      %p52 = por %p50, %p51
      %p53 = scmp.ne.s32.totalorder %s45, %s48
      %p54 = scmp.eq.s32.totalorder %s21, 0
      %p55 = por %p53, %p54
      %p56 = scmp.ne.s32.totalorder %s45, %s48
      %p57 = scmp.eq.s32.totalorder %s26, 3
      %p58 = por %p56, %p57
      %p59 = scmp.ne.s32.totalorder %s48, %s49
      %p60 = scmp.eq.s32.totalorder %s26, 0
      %p61 = por %p59, %p60
      %p62 = scmp.ne.s32.totalorder %s48, %s49
      %p63 = scmp.eq.s32.totalorder %s27, 3
      %p64 = por %p62, %p63
      %p66 = scmp.ne.s32.totalorder %s49, %s65
      %p67 = scmp.eq.s32.totalorder %s27, 0
      %p68 = por %p66, %p67
      %s70 = sadd.s32 %s69, 1
      %p73 = scmp.eq.s32.totalorder %s21, 3
      %p74 = scmp.ne.s32.totalorder %s69, %s71
      %p75 = scmp.eq.s32.totalorder %s21, 0
      %p76 = por %p74, %p75
      %p77 = scmp.ne.s32.totalorder %s69, %s71
      %p78 = scmp.eq.s32.totalorder %s26, 3
      %p79 = por %p77, %p78
      %p80 = scmp.ne.s32.totalorder %s71, %s72
      %p81 = scmp.eq.s32.totalorder %s26, 0
      %p82 = por %p80, %p81
      %p83 = scmp.ne.s32.totalorder %s71, %s72
      %p84 = scmp.eq.s32.totalorder %s27, 3
      %p85 = por %p83, %p84
      %p87 = scmp.ne.s32.totalorder %s72, %s86
      %p88 = scmp.eq.s32.totalorder %s27, 0
      %p89 = por %p87, %p88
      %s90 = ssub.s32 %s28, %s40
      %s91 = ssub.s32 %s29, %s36
      %s92 = sor.u32 %s90, %s91
      %p93 = scmp.eq.s32.totalorder %s92, 0
      %s95 = sadd.s32 %s94, 1
      %s96 = scalar_select %p93, %s94, %s95
      %p99 = pneg %p93
      %p100 = scmp.eq.s32.totalorder %s21, 3
      %p101 = por %p99, %p100
      %p102 = scmp.ne.s32.totalorder %s94, %s97
      %p103 = scmp.eq.s32.totalorder %s21, 0
      %p104 = por %p102, %p103
      %p105 = scmp.ne.s32.totalorder %s94, %s97
      %p106 = scmp.eq.s32.totalorder %s26, 3
      %p107 = por %p105, %p106
      %p108 = scmp.ne.s32.totalorder %s97, %s98
      %p109 = scmp.eq.s32.totalorder %s26, 0
      %p110 = por %p108, %p109
      %p111 = scmp.ne.s32.totalorder %s97, %s98
      %p112 = scmp.eq.s32.totalorder %s27, 3
      %p113 = por %p111, %p112
      %p115 = scmp.ne.s32.totalorder %s98, %s114
      %p116 = scmp.eq.s32.totalorder %s27, 0
      %p117 = por %p115, %p116
      %s118 = ssub.s32 %s28, %s40
      %s119 = ssub.s32 %s29, %s36
      %s120 = sor.u32 %s118, %s119
      %p121 = scmp.eq.s32.totalorder %s120, 0
      %s123 = sadd.s32 %s122, 1
      %s124 = scalar_select %p121, %s122, %s123
      %p127 = pneg %p121
      %p128 = scmp.eq.s32.totalorder %s21, 3
      %p129 = por %p127, %p128
      %p130 = scmp.ne.s32.totalorder %s122, %s125
      %p131 = scmp.eq.s32.totalorder %s21, 0
      %p132 = por %p130, %p131
      %p133 = scmp.ne.s32.totalorder %s122, %s125
      %p134 = scmp.eq.s32.totalorder %s26, 3
      %p135 = por %p133, %p134
      %p136 = scmp.ne.s32.totalorder %s125, %s126
      %p137 = scmp.eq.s32.totalorder %s26, 0
      %p138 = por %p136, %p137
      %p139 = scmp.ne.s32.totalorder %s125, %s126
      %p140 = scmp.eq.s32.totalorder %s27, 3
      %p141 = por %p139, %p140
      %p143 = scmp.ne.s32.totalorder %s126, %s142
      %p144 = scmp.eq.s32.totalorder %s27, 0
      %p145 = por %p143, %p144
      %s146 = ssub.s32 %s28, %s40
      %s147 = ssub.s32 %s29, %s36
      %s148 = sor.u32 %s146, %s147
      %p149 = scmp.eq.s32.totalorder %s148, 0
      %s151 = sadd.s32 %s150, 1
      %s152 = scalar_select %p149, %s150, %s151
      %p155 = pneg %p149
      %p156 = scmp.eq.s32.totalorder %s21, 3
      %p157 = por %p155, %p156
      %p158 = scmp.ne.s32.totalorder %s150, %s153
      %p159 = scmp.eq.s32.totalorder %s21, 0
      %p160 = por %p158, %p159
      %p161 = scmp.ne.s32.totalorder %s150, %s153
      %p162 = scmp.eq.s32.totalorder %s26, 3
      %p163 = por %p161, %p162
      %p164 = scmp.ne.s32.totalorder %s153, %s154
      %p165 = scmp.eq.s32.totalorder %s26, 0
      %p166 = por %p164, %p165
      %p167 = scmp.ne.s32.totalorder %s153, %s154
      %p168 = scmp.eq.s32.totalorder %s27, 3
      %p169 = por %p167, %p168
      %p171 = scmp.ne.s32.totalorder %s154, %s170
      %p172 = scmp.eq.s32.totalorder %s27, 0
      %p173 = por %p171, %p172
      %p174 = scmp.le.s32.totalorder 1, %s21
      %p175 = scmp.lt.s32.totalorder %s21, 5
      %p176 = pnand %p174, %p175
      %p177 = pneg %p176
      // Predicated region
      $region9: #{tpu_custom_call.1} parent=5 // pred_check
        _
      $region10: #{tpu_custom_call.1} parent=5 // pred_check_branch
        %179 = sbr.rel (%p176) target = $region12
      $region11: #{tpu_custom_call.1} parent=5 // pred_region
        %s180 = ssub.s32 %s21, 1
        // Predicated region
        $region13: #{tpu_custom_call.1} parent=11 // pred_check
          %p181 = pneg %p82
        $region14: #{tpu_custom_call.1} parent=11 // pred_check_branch
          %183 = sbr.rel (%p181) target = $region16
        $region15: #{tpu_custom_call.1} parent=11 // pred_region
          %s185 = ssub.s32 9216, 9216
          %186 = vsyncadd [#allocation6], %s185
          %s187 = sshll.u32 [#allocation5], 4
          %s188 = int_to_ptr.vmem [resolvable:$true] %s187
          %193 = dma.hbm_to_vmem [thread:$0]  %s1, 9216, %s188, [#allocation6], 64, 64, 4
        $region16: #{tpu_custom_call.1} parent=11 // pred_fallthru
          _
      $region12: #{tpu_custom_call.1} parent=5 // pred_fallthru
        _
      %p194 = scmp.lt.s32.totalorder %s21, 4
      // Predicated region
      $region17: #{tpu_custom_call.1} parent=5 // pred_check
        %p195 = pneg %p194
      $region18: #{tpu_custom_call.1} parent=5 // pred_check_branch
        %197 = sbr.rel (%p195) target = $region20
      $region19: #{tpu_custom_call.1} parent=5 // pred_region
        // Predicated region
        $region21: #{tpu_custom_call.1} parent=19 // pred_check
          %p198 = pneg %p55
        $region22: #{tpu_custom_call.1} parent=19 // pred_check_branch
          %200 = sbr.rel (%p198) target = $region24
        $region23: #{tpu_custom_call.1} parent=19 // pred_region
          %s201 = sand.u32 %s45, 1
          %s202 = scalar_lea.sflag [#allocation3], %s201
          %s203 = sand.u32 %s45, 1
          %s204 = smul.addr %s203, 128
          %s205 = scalar_lea.vmem [#allocation2], %s204
          %s207 = ssub.s32 2048, 2048
          %208 = vsyncadd %s202, %s207
          %s209 = smul.addr %s29, 32
          %s210 = smul.addr %s28, 64
          %s211 = sadd.s32 %s209, %s210
          %s212 = smul.addr %s211, 64
          %s213 = scalar_lea.hbm %s0, %s212
          %s214 = sshll.u32 %s205, 4
          %s215 = int_to_ptr.vmem [resolvable:$true] %s214
          %220 = dma.hbm_to_vmem [thread:$0]  %s213, 2048, %s215, %s202, 64, 64, 4
        $region24: #{tpu_custom_call.1} parent=19 // pred_fallthru
          _
      $region20: #{tpu_custom_call.1} parent=5 // pred_fallthru
        _
      %p221 = scmp.le.s32.totalorder 1, %s21
      %p222 = scmp.lt.s32.totalorder %s21, 5
      %p223 = pnand %p221, %p222
      %p224 = pneg %p223
      // Predicated region
      $region25: #{tpu_custom_call.1} parent=5 // pred_check
        _
      $region26: #{tpu_custom_call.1} parent=5 // pred_check_branch
        %226 = sbr.rel (%p223) target = $region28
      $region27: #{tpu_custom_call.1} parent=5 // pred_region
        %s227 = ssub.s32 %s21, 1
        %s228 = sand.u32 %s48, 1
        %s229 = scalar_lea.sflag [#allocation3], %s228
        %s230 = sand.u32 %s48, 1
        %s231 = smul.addr %s230, 128
        %s232 = scalar_lea.vmem [#allocation2], %s231
        // Predicated region
        $region29: #{tpu_custom_call.1} parent=27 // pred_check
          %p233 = pneg %p61
        $region30: #{tpu_custom_call.1} parent=27 // pred_check_branch
          %235 = sbr.rel (%p233) target = $region32
        $region31: #{tpu_custom_call.1} parent=27 // pred_region
          %236 = dma.done %s229, 2048
        $region32: #{tpu_custom_call.1} parent=27 // pred_fallthru
          _
        // Predicated region
        $region33: #{tpu_custom_call.1} parent=27 // pred_check
          %p237 = pneg %p82
        $region34: #{tpu_custom_call.1} parent=27 // pred_check_branch
          %239 = sbr.rel (%p237) target = $region36
        $region35: #{tpu_custom_call.1} parent=27 // pred_region
          %240 = dma.done [#allocation6], 9216
        $region36: #{tpu_custom_call.1} parent=27 // pred_fallthru
          _
        %s241 = sand.u32 %s48, 1
        %s242 = scalar_lea.sflag [#allocation3], %s241
        %s243 = sand.u32 %s48, 1
        %s244 = smul.addr %s243, 128
        %s245 = scalar_lea.vmem [#allocation2], %s244
        %p246 = pneg %p61
        %p247 = pneg %p58
        %p248 = pneg %p82
        %p249 = pneg %p79
        %p250 = pneg %p110
        %p251 = pneg %p107
        %s252 = sand.u32 %s97, 1
        %s253 = scalar_lea.sflag [#allocation4], %s252
        %s254 = sand.u32 %s97, 1
        %s255 = smul.addr %s254, 96
        %s256 = scalar_lea.vmem [#allocation7], %s255
        %p257 = pneg %p138
        %p258 = pneg %p135
        %s259 = sand.u32 %s26, 1
        %s260 = scalar_lea.sflag [#allocation9], %s259
        %s261 = sand.u32 %s125, 1
        %s262 = smul.addr %s261, 24
        %s263 = scalar_lea.vmem [#allocation8], %s262
        %p264 = pneg %p166
        %p265 = pneg %p163
        %s266 = sand.u32 %s26, 1
        %s267 = scalar_lea.sflag [#allocation9], %s266
        %s268 = sand.u32 %s153, 1
        %s269 = smul.addr %s268, 2
        %s270 = scalar_lea.vmem [#allocation10], %s269
        %v272 = vlaneseq
        %v273 = vshrl.u32 %v272, 7
        %v274 = vadd.s32 %v273, 8
        %v275 = vadd.s32 %v273, 16
        %vm276 = vcmp.ge.s32.totalorder %v273, 1
        %vm277 = vcmp.ge.s32.totalorder %v274, 1
        %vm278 = vcmp.ge.s32.totalorder %v275, 1
        %vm279 = vcmp.le.s32.totalorder %v273, 16
        %vm280 = vcmp.le.s32.totalorder %v274, 16
        %vm281 = vcmp.le.s32.totalorder %v275, 16
        %vm282 = vmand %vm276, %vm279
        %vm283 = vmand %vm277, %vm280
        %vm284 = vmand %vm278, %vm281
        %v285 = vsel %vm282, 1, 0
        %v286 = vsel %vm283, 1, 0
        %v287 = vsel %vm284, 1, 0
        %v288 = vcvt.s32.f32 %v285
        %v289 = vcvt.s32.f32 %v286
        %v290 = vcvt.s32.f32 %v287
        %v291 = vld [vmem:[%s232] sm:$0x8]
        %v292 = vld [vmem:[%s232 + $0x4] sm:$0xf]
        %v293 = vld [vmem:[%s232 + $0x8] sm:$0xf]
        %v294 = vld [vmem:[%s232 + $0xc] sm:$0xf]
        %v295 = vld [vmem:[%s232 + $0x10] sm:$0xf]
        %v296 = vld [vmem:[%s232 + $0x14] sm:$0xf]
        %v297 = vld [vmem:[%s232 + $0x18] sm:$0xf]
        %v298 = vld [vmem:[%s232 + $0x1c] sm:$0xf]
        %v299 = vld [vmem:[%s232 + $0x20] sm:$0xf]
        %v300 = vld [vmem:[%s232 + $0x24] sm:$0xf]
        %v301 = vld [vmem:[%s232 + $0x28] sm:$0xf]
        %v302 = vld [vmem:[%s232 + $0x2c] sm:$0xf]
        %v303 = vld [vmem:[%s232 + $0x30] sm:$0xf]
        %v304 = vld [vmem:[%s232 + $0x34] sm:$0xf]
        %v305 = vld [vmem:[%s232 + $0x38] sm:$0xf]
        %v306 = vld [vmem:[%s232 + $0x3c] sm:$0xf]
        %v307 = vld [vmem:[%s232 + $0x40] sm:$0xf]
        %v308 = vld [vmem:[%s232 + $0x44] sm:$0xf]
        %v309 = vld [vmem:[%s232 + $0x48] sm:$0xf]
        %v310 = vld [vmem:[%s232 + $0x4c] sm:$0xf]
        %v311 = vld [vmem:[%s232 + $0x50] sm:$0xf]
        %v312 = vld [vmem:[%s232 + $0x54] sm:$0xf]
        %v313 = vld [vmem:[%s232 + $0x58] sm:$0xf]
        %v314 = vld [vmem:[%s232 + $0x5c] sm:$0xf]
        %v315 = vld [vmem:[%s232 + $0x60] sm:$0xf]
        %v316 = vld [vmem:[#allocation5] sm:$0xf]
        %v317 = vld [vmem:[#allocation5 + $0x4] sm:$0xf]
        %v318 = vld [vmem:[#allocation5 + $0x8] sm:$0xf]
        %v319 = vld [vmem:[#allocation5 + $0xc] sm:$0xf]
        %v320 = vld [vmem:[#allocation5 + $0x10] sm:$0xf]
        %v321 = vld [vmem:[#allocation5 + $0x14] sm:$0xf]
        %v322 = vld [vmem:[#allocation5 + $0x18] sm:$0xf]
        %v323 = vld [vmem:[#allocation5 + $0x1c] sm:$0xf]
        %v324 = vld [vmem:[#allocation5 + $0x20] sm:$0xf]
        %v325 = vld [vmem:[#allocation5 + $0x24] sm:$0xf]
        %v326 = vld [vmem:[#allocation5 + $0x28] sm:$0xf]
        %v327 = vld [vmem:[#allocation5 + $0x2c] sm:$0xf]
        %v328 = vld [vmem:[#allocation5 + $0x30] sm:$0xf]
        %v329 = vld [vmem:[#allocation5 + $0x34] sm:$0xf]
        %v330 = vld [vmem:[#allocation5 + $0x38] sm:$0xf]
        %v331 = vld [vmem:[#allocation5 + $0x3c] sm:$0xf]
        %s332 = scalar_lea.vmem [#allocation5], 64
        %v333 = vld [vmem:[%s332] sm:$0xf]
        %v334 = vld [vmem:[%s332 + $0x4] sm:$0xf]
        %v335 = vld [vmem:[%s332 + $0x8] sm:$0xf]
        %v336 = vld [vmem:[%s332 + $0xc] sm:$0xf]
        %v337 = vld [vmem:[%s332 + $0x10] sm:$0xf]
        %v338 = vld [vmem:[%s332 + $0x14] sm:$0xf]
        %v339 = vld [vmem:[%s332 + $0x18] sm:$0xf]
        %v340 = vld [vmem:[%s332 + $0x1c] sm:$0xf]
        %v341 = vld [vmem:[%s332 + $0x20] sm:$0xf]
        %v342 = vld [vmem:[%s332 + $0x24] sm:$0xf]
        %v343 = vld [vmem:[%s332 + $0x28] sm:$0xf]
        %v344 = vld [vmem:[%s332 + $0x2c] sm:$0xf]
        %v345 = vld [vmem:[%s332 + $0x30] sm:$0xf]
        %v346 = vld [vmem:[%s332 + $0x34] sm:$0xf]
        %v347 = vld [vmem:[%s332 + $0x38] sm:$0xf]
        %v348 = vld [vmem:[%s332 + $0x3c] sm:$0xf]
        %v373 = vunpack.c.l.b16 %v292
        %v374 = vunpack.c.l.b16 %v293
        %v375 = vunpack.c.l.b16 %v294
        %v376 = vunpack.c.l.b16 %v295
        %v377 = vunpack.c.l.b16 %v296
        %v378 = vunpack.c.l.b16 %v297
        %v379 = vunpack.c.l.b16 %v298
        %v380 = vunpack.c.l.b16 %v299
        %v381 = vunpack.c.l.b16 %v300
        %v382 = vunpack.c.l.b16 %v301
        %v383 = vunpack.c.l.b16 %v302
        %v384 = vunpack.c.l.b16 %v303
        %v385 = vunpack.c.l.b16 %v304
        %v386 = vunpack.c.l.b16 %v305
        %v387 = vunpack.c.l.b16 %v306
        %v388 = vunpack.c.l.b16 %v307
        %v389 = vunpack.c.l.b16 %v308
        %v390 = vunpack.c.l.b16 %v309
        %v391 = vunpack.c.l.b16 %v310
        %v392 = vunpack.c.l.b16 %v311
        %v393 = vunpack.c.l.b16 %v312
        %v394 = vunpack.c.l.b16 %v313
        %v395 = vunpack.c.l.b16 %v314
        %v396 = vunpack.c.l.b16 %v315
        %v397 = vpack.c.b16 %v374, %v373
        %v398 = vpack.c.b16 %v376, %v375
        %v399 = vpack.c.b16 %v378, %v377
        %v400 = vpack.c.b16 %v380, %v379
        %v401 = vpack.c.b16 %v382, %v381
        %v402 = vpack.c.b16 %v384, %v383
        %v403 = vpack.c.b16 %v386, %v385
        %v404 = vpack.c.b16 %v388, %v387
        %v405 = vpack.c.b16 %v390, %v389
        %v406 = vpack.c.b16 %v392, %v391
        %v407 = vpack.c.b16 %v394, %v393
        %v408 = vpack.c.b16 %v396, %v395
        %v437 = vunpack.c.l.b16 %v333
        %v438 = vunpack.c.l.b16 %v334
        %v439 = vunpack.c.l.b16 %v335
        %v440 = vunpack.c.l.b16 %v336
        %v441 = vunpack.c.l.b16 %v337
        %v442 = vunpack.c.l.b16 %v338
        %v443 = vunpack.c.l.b16 %v339
        %v444 = vunpack.c.l.b16 %v340
        %v445 = vunpack.c.l.b16 %v341
        %v446 = vunpack.c.l.b16 %v342
        %v447 = vunpack.c.l.b16 %v343
        %v448 = vunpack.c.l.b16 %v344
        %v449 = vunpack.c.l.b16 %v345
        %v450 = vunpack.c.l.b16 %v346
        %v451 = vunpack.c.l.b16 %v347
        %v452 = vunpack.c.l.b16 %v348
        %v453 = vpack.c.b16 %v438, %v437
        %v454 = vpack.c.b16 %v440, %v439
        %v455 = vpack.c.b16 %v442, %v441
        %v456 = vpack.c.b16 %v444, %v443
        %v457 = vpack.c.b16 %v446, %v445
        %v458 = vpack.c.b16 %v448, %v447
        %v459 = vpack.c.b16 %v450, %v449
        %v460 = vpack.c.b16 %v452, %v451
        %469 = vmatprep.subr.bf16.mxu0 0
        %470 = vmatpush1.bf16.msra.mxu0 %v453
        %471 = vmatprep.subr.bf16.mxu0 0
        %472 = vmatpush1.bf16.msra.mxu0 %v454
        %473 = vmatprep.subr.bf16.mxu0 0
        %474 = vmatpush1.bf16.msra.mxu0 %v455
        %475 = vmatprep.subr.bf16.mxu0 0
        %476 = vmatpush1.bf16.msra.mxu0 %v456
        %477 = vmatprep.subr.bf16.mxu0 0
        %478 = vmatpush1.bf16.msra.mxu0 %v457
        %479 = vmatprep.subr.bf16.mxu0 0
        %480 = vmatpush1.bf16.msra.mxu0 %v458
        %481 = vmatprep.subr.bf16.mxu0 0
        %482 = vmatpush1.bf16.msra.mxu0 %v459
        %483 = vmatprep.subr.bf16.mxu0 0
        %484 = vmatpush1.bf16.msra.mxu0 %v460
        %485 = vmatprep.subr.bf16.mxu0 0
        %486 = vmatpush1.bf16.msra.mxu0 0
        %487 = vmatprep.subr.bf16.mxu0 0
        %488 = vmatpush1.bf16.msra.mxu0 0
        %489 = vmatprep.subr.bf16.mxu0 0
        %490 = vmatpush1.bf16.msra.mxu0 0
        %491 = vmatprep.subr.bf16.mxu0 0
        %492 = vmatpush1.bf16.msra.mxu0 0
        %493 = vmatprep.subr.bf16.mxu0 0
        %494 = vmatpush1.bf16.msra.mxu0 0
        %495 = vmatprep.subr.bf16.mxu0 0
        %496 = vmatpush1.bf16.msra.mxu0 0
        %497 = vmatprep.subr.bf16.mxu0 0
        %498 = vmatpush1.bf16.msra.mxu0 0
        %499 = vmatprep.subr.bf16.mxu0 0
        %500 = vmatpush1.bf16.msra.mxu0 0
        %501 = vmatprep.mubr.bf16.mxu0 0
        %502 = vmatmul.mubr.bf16.gmra.mrb[0].mxu0 %v397
        %v503 = vpop.f32.mrb[0].mxu0
        %v504 = vadd.f32 0.0, %v503
        %v505 = vpop.f32.mrb[0].mxu0
        %v506 = vpop.f32.mrb[0].mxu0
        %v507 = vadd.f32 0.0, %v506
        %v508 = vpop.f32.mrb[0].mxu0
        %509 = vmatprep.mubr.bf16.mxu0 0
        %510 = vmatmul.mubr.bf16.gmra.mrb[0].mxu0 %v398
        %v511 = vpop.f32.mrb[0].mxu0
        %v512 = vadd.f32 0.0, %v511
        %v513 = vpop.f32.mrb[0].mxu0
        %v514 = vpop.f32.mrb[0].mxu0
        %v515 = vadd.f32 0.0, %v514
        %v516 = vpop.f32.mrb[0].mxu0
        %517 = vmatprep.mubr.bf16.mxu0 0
        %518 = vmatmul.mubr.bf16.gmra.mrb[0].mxu0 %v399
        %v519 = vpop.f32.mrb[0].mxu0
        %v520 = vadd.f32 0.0, %v519
        %v521 = vpop.f32.mrb[0].mxu0
        %v522 = vpop.f32.mrb[0].mxu0
        %v523 = vadd.f32 0.0, %v522
        %v524 = vpop.f32.mrb[0].mxu0
        %525 = vmatprep.mubr.bf16.mxu0 0
        %526 = vmatmul.mubr.bf16.gmra.mrb[0].mxu0 %v400
        %v527 = vpop.f32.mrb[0].mxu0
        %v528 = vadd.f32 0.0, %v527
        %v529 = vpop.f32.mrb[0].mxu0
        %v530 = vpop.f32.mrb[0].mxu0
        %v531 = vadd.f32 0.0, %v530
        %v532 = vpop.f32.mrb[0].mxu0
        %533 = vmatprep.mubr.bf16.mxu0 0
        %534 = vmatmul.mubr.bf16.gmra.mrb[0].mxu0 %v401
        %v535 = vpop.f32.mrb[0].mxu0
        %v536 = vadd.f32 0.0, %v535
        %v537 = vpop.f32.mrb[0].mxu0
        %v538 = vpop.f32.mrb[0].mxu0
        %v539 = vadd.f32 0.0, %v538
        %v540 = vpop.f32.mrb[0].mxu0
        %541 = vmatprep.mubr.bf16.mxu0 0
        %542 = vmatmul.mubr.bf16.gmra.mrb[0].mxu0 %v402
        %v543 = vpop.f32.mrb[0].mxu0
        %v544 = vadd.f32 0.0, %v543
        %v545 = vpop.f32.mrb[0].mxu0
        %v546 = vpop.f32.mrb[0].mxu0
        %v547 = vadd.f32 0.0, %v546
        %v548 = vpop.f32.mrb[0].mxu0
        %549 = vmatprep.mubr.bf16.mxu0 0
        %550 = vmatmul.mubr.bf16.gmra.mrb[0].mxu0 %v403
        %v551 = vpop.f32.mrb[0].mxu0
        %v552 = vadd.f32 0.0, %v551
        %v553 = vpop.f32.mrb[0].mxu0
        %v554 = vpop.f32.mrb[0].mxu0
        %v555 = vadd.f32 0.0, %v554
        %v556 = vpop.f32.mrb[0].mxu0
        %557 = vmatprep.mubr.bf16.mxu0 0
        %558 = vmatmul.mubr.bf16.gmra.mrb[0].mxu0 %v404
        %v559 = vpop.f32.mrb[0].mxu0
        %v560 = vadd.f32 0.0, %v559
        %v561 = vpop.f32.mrb[0].mxu0
        %v562 = vpop.f32.mrb[0].mxu0
        %v563 = vadd.f32 0.0, %v562
        %v564 = vpop.f32.mrb[0].mxu0
        %565 = vmatprep.mubr.bf16.mxu0 0
        %566 = vmatmul.mubr.bf16.gmra.mrb[0].mxu0 %v405
        %v567 = vpop.f32.mrb[0].mxu0
        %v568 = vadd.f32 0.0, %v567
        %v569 = vpop.f32.mrb[0].mxu0
        %v570 = vpop.f32.mrb[0].mxu0
        %v571 = vadd.f32 0.0, %v570
        %v572 = vpop.f32.mrb[0].mxu0
        %573 = vmatprep.mubr.bf16.mxu0 0
        %574 = vmatmul.mubr.bf16.gmra.mrb[0].mxu0 %v406
        %v575 = vpop.f32.mrb[0].mxu0
        %v576 = vadd.f32 0.0, %v575
        %v577 = vpop.f32.mrb[0].mxu0
        %v578 = vpop.f32.mrb[0].mxu0
        %v579 = vadd.f32 0.0, %v578
        %v580 = vpop.f32.mrb[0].mxu0
        %581 = vmatprep.mubr.bf16.mxu0 0
        %582 = vmatmul.mubr.bf16.gmra.mrb[0].mxu0 %v407
        %v583 = vpop.f32.mrb[0].mxu0
        %v584 = vadd.f32 0.0, %v583
        %v585 = vpop.f32.mrb[0].mxu0
        %v586 = vpop.f32.mrb[0].mxu0
        %v587 = vadd.f32 0.0, %v586
        %v588 = vpop.f32.mrb[0].mxu0
        %589 = vmatprep.mubr.bf16.mxu0 0
        %590 = vmatmul.mubr.bf16.gmra.mrb[0].mxu0 %v408
        %v591 = vpop.f32.mrb[0].mxu0
        %v592 = vadd.f32 0.0, %v591
        %v593 = vpop.f32.mrb[0].mxu0
        %v594 = vpop.f32.mrb[0].mxu0
        %v595 = vadd.f32 0.0, %v594
        %v596 = vpop.f32.mrb[0].mxu0
        %597 = vdwg.mxu0
        %v599 = vunpack.c.l.b16 %v291
        %v600 = vpack.c.b16 %v373, %v599
        %v601 = vpack.c.b16 %v375, %v374
        %v602 = vpack.c.b16 %v377, %v376
        %v603 = vpack.c.b16 %v379, %v378
        %v604 = vpack.c.b16 %v381, %v380
        %v605 = vpack.c.b16 %v383, %v382
        %v606 = vpack.c.b16 %v385, %v384
        %v607 = vpack.c.b16 %v387, %v386
        %v608 = vpack.c.b16 %v389, %v388
        %v609 = vpack.c.b16 %v391, %v390
        %v610 = vpack.c.b16 %v393, %v392
        %v611 = vpack.c.b16 %v395, %v394
        %v612 = vpack.c.b16 %v396, %v396
        %vm613 = vsmask.f32 4352
        %v615 = vshrl.u32 %v600, 16
        %v617 = vrot.slane %v615, 3
        %v618 = vshll.u32 %v600, 16
        %v620 = vrot.slane %v618, 4
        %v621 = vor.u32 %v617, %v620
        %v623 = vshrl.u32 %v601, 16
        %v625 = vrot.slane %v623, 3
        %v626 = vshll.u32 %v601, 16
        %v628 = vrot.slane %v626, 4
        %v629 = vor.u32 %v625, %v628
        %v630 = vsel %vm613, %v621, %v629
        %v632 = vshrl.u32 %v602, 16
        %v634 = vrot.slane %v632, 3
        %v635 = vshll.u32 %v602, 16
        %v637 = vrot.slane %v635, 4
        %v638 = vor.u32 %v634, %v637
        %v639 = vsel %vm613, %v629, %v638
        %v641 = vshrl.u32 %v603, 16
        %v643 = vrot.slane %v641, 3
        %v644 = vshll.u32 %v603, 16
        %v646 = vrot.slane %v644, 4
        %v647 = vor.u32 %v643, %v646
        %v648 = vsel %vm613, %v638, %v647
        %v650 = vshrl.u32 %v604, 16
        %v652 = vrot.slane %v650, 3
        %v653 = vshll.u32 %v604, 16
        %v655 = vrot.slane %v653, 4
        %v656 = vor.u32 %v652, %v655
        %v657 = vsel %vm613, %v647, %v656
        %v659 = vshrl.u32 %v605, 16
        %v661 = vrot.slane %v659, 3
        %v662 = vshll.u32 %v605, 16
        %v664 = vrot.slane %v662, 4
        %v665 = vor.u32 %v661, %v664
        %v666 = vsel %vm613, %v656, %v665
        %v668 = vshrl.u32 %v606, 16
        %v670 = vrot.slane %v668, 3
        %v671 = vshll.u32 %v606, 16
        %v673 = vrot.slane %v671, 4
        %v674 = vor.u32 %v670, %v673
        %v675 = vsel %vm613, %v665, %v674
        %v677 = vshrl.u32 %v607, 16
        %v679 = vrot.slane %v677, 3
        %v680 = vshll.u32 %v607, 16
        %v682 = vrot.slane %v680, 4
        %v683 = vor.u32 %v679, %v682
        %v684 = vsel %vm613, %v674, %v683
        %v686 = vshrl.u32 %v608, 16
        %v688 = vrot.slane %v686, 3
        %v689 = vshll.u32 %v608, 16
        %v691 = vrot.slane %v689, 4
        %v692 = vor.u32 %v688, %v691
        %v693 = vsel %vm613, %v683, %v692
        %v695 = vshrl.u32 %v609, 16
        %v697 = vrot.slane %v695, 3
        %v698 = vshll.u32 %v609, 16
        %v700 = vrot.slane %v698, 4
        %v701 = vor.u32 %v697, %v700
        %v702 = vsel %vm613, %v692, %v701
        %v704 = vshrl.u32 %v610, 16
        %v706 = vrot.slane %v704, 3
        %v707 = vshll.u32 %v610, 16
        %v709 = vrot.slane %v707, 4
        %v710 = vor.u32 %v706, %v709
        %v711 = vsel %vm613, %v701, %v710
        %v713 = vshrl.u32 %v611, 16
        %v715 = vrot.slane %v713, 3
        %v716 = vshll.u32 %v611, 16
        %v718 = vrot.slane %v716, 4
        %v719 = vor.u32 %v715, %v718
        %v720 = vsel %vm613, %v710, %v719
        %v722 = vshrl.u32 %v612, 16
        %v724 = vrot.slane %v722, 3
        %v725 = vshll.u32 %v612, 16
        %v727 = vrot.slane %v725, 4
        %v728 = vor.u32 %v724, %v727
        %v729 = vsel %vm613, %v719, %v728
        %v758 = vunpack.c.l.b16 %v316
        %v759 = vunpack.c.l.b16 %v317
        %v760 = vunpack.c.l.b16 %v318
        %v761 = vunpack.c.l.b16 %v319
        %v762 = vunpack.c.l.b16 %v320
        %v763 = vunpack.c.l.b16 %v321
        %v764 = vunpack.c.l.b16 %v322
        %v765 = vunpack.c.l.b16 %v323
        %v766 = vunpack.c.l.b16 %v324
        %v767 = vunpack.c.l.b16 %v325
        %v768 = vunpack.c.l.b16 %v326
        %v769 = vunpack.c.l.b16 %v327
        %v770 = vunpack.c.l.b16 %v328
        %v771 = vunpack.c.l.b16 %v329
        %v772 = vunpack.c.l.b16 %v330
        %v773 = vunpack.c.l.b16 %v331
        %v774 = vpack.c.b16 %v759, %v758
        %v775 = vpack.c.b16 %v761, %v760
        %v776 = vpack.c.b16 %v763, %v762
        %v777 = vpack.c.b16 %v765, %v764
        %v778 = vpack.c.b16 %v767, %v766
        %v779 = vpack.c.b16 %v769, %v768
        %v780 = vpack.c.b16 %v771, %v770
        %v781 = vpack.c.b16 %v773, %v772
        %790 = vmatprep.subr.bf16.mxu0 0
        %791 = vmatpush1.bf16.msra.mxu0 %v774
        %792 = vmatprep.subr.bf16.mxu0 0
        %793 = vmatpush1.bf16.msra.mxu0 %v775
        %794 = vmatprep.subr.bf16.mxu0 0
        %795 = vmatpush1.bf16.msra.mxu0 %v776
        %796 = vmatprep.subr.bf16.mxu0 0
        %797 = vmatpush1.bf16.msra.mxu0 %v777
        %798 = vmatprep.subr.bf16.mxu0 0
        %799 = vmatpush1.bf16.msra.mxu0 %v778
        %800 = vmatprep.subr.bf16.mxu0 0
        %801 = vmatpush1.bf16.msra.mxu0 %v779
        %802 = vmatprep.subr.bf16.mxu0 0
        %803 = vmatpush1.bf16.msra.mxu0 %v780
        %804 = vmatprep.subr.bf16.mxu0 0
        %805 = vmatpush1.bf16.msra.mxu0 %v781
        %806 = vmatprep.subr.bf16.mxu0 0
        %807 = vmatpush1.bf16.msra.mxu0 0
        %808 = vmatprep.subr.bf16.mxu0 0
        %809 = vmatpush1.bf16.msra.mxu0 0
        %810 = vmatprep.subr.bf16.mxu0 0
        %811 = vmatpush1.bf16.msra.mxu0 0
        %812 = vmatprep.subr.bf16.mxu0 0
        %813 = vmatpush1.bf16.msra.mxu0 0
        %814 = vmatprep.subr.bf16.mxu0 0
        %815 = vmatpush1.bf16.msra.mxu0 0
        %816 = vmatprep.subr.bf16.mxu0 0
        %817 = vmatpush1.bf16.msra.mxu0 0
        %818 = vmatprep.subr.bf16.mxu0 0
        %819 = vmatpush1.bf16.msra.mxu0 0
        %820 = vmatprep.subr.bf16.mxu0 0
        %821 = vmatpush1.bf16.msra.mxu0 0
        %822 = vmatprep.mubr.bf16.mxu0 0
        %823 = vmatmul.mubr.bf16.gmra.mrb[0].mxu0 %v630
        %v824 = vpop.f32.mrb[0].mxu0
        %v825 = vadd.f32 %v504, %v824
        %v826 = vpop.f32.mrb[0].mxu0
        %v827 = vpop.f32.mrb[0].mxu0
        %v828 = vadd.f32 %v507, %v827
        %v829 = vpop.f32.mrb[0].mxu0
        %830 = vmatprep.mubr.bf16.mxu0 0
        %831 = vmatmul.mubr.bf16.gmra.mrb[0].mxu0 %v639
        %v832 = vpop.f32.mrb[0].mxu0
        %v833 = vadd.f32 %v512, %v832
        %v834 = vpop.f32.mrb[0].mxu0
        %v835 = vpop.f32.mrb[0].mxu0
        %v836 = vadd.f32 %v515, %v835
        %v837 = vpop.f32.mrb[0].mxu0
        %838 = vmatprep.mubr.bf16.mxu0 0
        %839 = vmatmul.mubr.bf16.gmra.mrb[0].mxu0 %v648
        %v840 = vpop.f32.mrb[0].mxu0
        %v841 = vadd.f32 %v520, %v840
        %v842 = vpop.f32.mrb[0].mxu0
        %v843 = vpop.f32.mrb[0].mxu0
        %v844 = vadd.f32 %v523, %v843
        %v845 = vpop.f32.mrb[0].mxu0
        %846 = vmatprep.mubr.bf16.mxu0 0
        %847 = vmatmul.mubr.bf16.gmra.mrb[0].mxu0 %v657
        %v848 = vpop.f32.mrb[0].mxu0
        %v849 = vadd.f32 %v528, %v848
        %v850 = vpop.f32.mrb[0].mxu0
        %v851 = vpop.f32.mrb[0].mxu0
        %v852 = vadd.f32 %v531, %v851
        %v853 = vpop.f32.mrb[0].mxu0
        %854 = vmatprep.mubr.bf16.mxu0 0
        %855 = vmatmul.mubr.bf16.gmra.mrb[0].mxu0 %v666
        %v856 = vpop.f32.mrb[0].mxu0
        %v857 = vadd.f32 %v536, %v856
        %v858 = vpop.f32.mrb[0].mxu0
        %v859 = vpop.f32.mrb[0].mxu0
        %v860 = vadd.f32 %v539, %v859
        %v861 = vpop.f32.mrb[0].mxu0
        %862 = vmatprep.mubr.bf16.mxu0 0
        %863 = vmatmul.mubr.bf16.gmra.mrb[0].mxu0 %v675
        %v864 = vpop.f32.mrb[0].mxu0
        %v865 = vadd.f32 %v544, %v864
        %v866 = vpop.f32.mrb[0].mxu0
        %v867 = vpop.f32.mrb[0].mxu0
        %v868 = vadd.f32 %v547, %v867
        %v869 = vpop.f32.mrb[0].mxu0
        %870 = vmatprep.mubr.bf16.mxu0 0
        %871 = vmatmul.mubr.bf16.gmra.mrb[0].mxu0 %v684
        %v872 = vpop.f32.mrb[0].mxu0
        %v873 = vadd.f32 %v552, %v872
        %v874 = vpop.f32.mrb[0].mxu0
        %v875 = vpop.f32.mrb[0].mxu0
        %v876 = vadd.f32 %v555, %v875
        %v877 = vpop.f32.mrb[0].mxu0
        %878 = vmatprep.mubr.bf16.mxu0 0
        %879 = vmatmul.mubr.bf16.gmra.mrb[0].mxu0 %v693
        %v880 = vpop.f32.mrb[0].mxu0
        %v881 = vadd.f32 %v560, %v880
        %v882 = vpop.f32.mrb[0].mxu0
        %v883 = vpop.f32.mrb[0].mxu0
        %v884 = vadd.f32 %v563, %v883
        %v885 = vpop.f32.mrb[0].mxu0
        %886 = vmatprep.mubr.bf16.mxu0 0
        %887 = vmatmul.mubr.bf16.gmra.mrb[0].mxu0 %v702
        %v888 = vpop.f32.mrb[0].mxu0
        %v889 = vadd.f32 %v568, %v888
        %v890 = vpop.f32.mrb[0].mxu0
        %v891 = vpop.f32.mrb[0].mxu0
        %v892 = vadd.f32 %v571, %v891
        %v893 = vpop.f32.mrb[0].mxu0
        %894 = vmatprep.mubr.bf16.mxu0 0
        %895 = vmatmul.mubr.bf16.gmra.mrb[0].mxu0 %v711
        %v896 = vpop.f32.mrb[0].mxu0
        %v897 = vadd.f32 %v576, %v896
        %v898 = vpop.f32.mrb[0].mxu0
        %v899 = vpop.f32.mrb[0].mxu0
        %v900 = vadd.f32 %v579, %v899
        %v901 = vpop.f32.mrb[0].mxu0
        %902 = vmatprep.mubr.bf16.mxu0 0
        %903 = vmatmul.mubr.bf16.gmra.mrb[0].mxu0 %v720
        %v904 = vpop.f32.mrb[0].mxu0
        %v905 = vadd.f32 %v584, %v904
        %v906 = vpop.f32.mrb[0].mxu0
        %v907 = vpop.f32.mrb[0].mxu0
        %v908 = vadd.f32 %v587, %v907
        %v909 = vpop.f32.mrb[0].mxu0
        %910 = vmatprep.mubr.bf16.mxu0 0
        %911 = vmatmul.mubr.bf16.gmra.mrb[0].mxu0 %v729
        %v912 = vpop.f32.mrb[0].mxu0
        %v913 = vadd.f32 %v592, %v912
        %v914 = vpop.f32.mrb[0].mxu0
        %v915 = vpop.f32.mrb[0].mxu0
        %v916 = vadd.f32 %v595, %v915
        %v917 = vpop.f32.mrb[0].mxu0
        %918 = vdwg.mxu0
        %v919 = vld [vmem:[%s232 + $0x4] sm:$0xf]
        %v920 = vld [vmem:[%s232 + $0x8] sm:$0xf]
        %v921 = vld [vmem:[%s232 + $0xc] sm:$0xf]
        %v922 = vld [vmem:[%s232 + $0x10] sm:$0xf]
        %v923 = vld [vmem:[%s232 + $0x14] sm:$0xf]
        %v924 = vld [vmem:[%s232 + $0x18] sm:$0xf]
        %v925 = vld [vmem:[%s232 + $0x1c] sm:$0xf]
        %v926 = vld [vmem:[%s232 + $0x20] sm:$0xf]
        %v927 = vld [vmem:[%s232 + $0x24] sm:$0xf]
        %v928 = vld [vmem:[%s232 + $0x28] sm:$0xf]
        %v929 = vld [vmem:[%s232 + $0x2c] sm:$0xf]
        %v930 = vld [vmem:[%s232 + $0x30] sm:$0xf]
        %v931 = vld [vmem:[%s232 + $0x34] sm:$0xf]
        %v932 = vld [vmem:[%s232 + $0x38] sm:$0xf]
        %v933 = vld [vmem:[%s232 + $0x3c] sm:$0xf]
        %v934 = vld [vmem:[%s232 + $0x40] sm:$0xf]
        %v935 = vld [vmem:[%s232 + $0x44] sm:$0xf]
        %v936 = vld [vmem:[%s232 + $0x48] sm:$0xf]
        %v937 = vld [vmem:[%s232 + $0x4c] sm:$0xf]
        %v938 = vld [vmem:[%s232 + $0x50] sm:$0xf]
        %v939 = vld [vmem:[%s232 + $0x54] sm:$0xf]
        %v940 = vld [vmem:[%s232 + $0x58] sm:$0xf]
        %v941 = vld [vmem:[%s232 + $0x5c] sm:$0xf]
        %v942 = vld [vmem:[%s232 + $0x60] sm:$0xf]
        %v943 = vld [vmem:[%s232 + $0x64] sm:$0x1]
        %s944 = scalar_lea.vmem [#allocation5], 128
        %v945 = vld [vmem:[%s944] sm:$0xf]
        %v946 = vld [vmem:[%s944 + $0x4] sm:$0xf]
        %v947 = vld [vmem:[%s944 + $0x8] sm:$0xf]
        %v948 = vld [vmem:[%s944 + $0xc] sm:$0xf]
        %v949 = vld [vmem:[%s944 + $0x10] sm:$0xf]
        %v950 = vld [vmem:[%s944 + $0x14] sm:$0xf]
        %v951 = vld [vmem:[%s944 + $0x18] sm:$0xf]
        %v952 = vld [vmem:[%s944 + $0x1c] sm:$0xf]
        %v953 = vld [vmem:[%s944 + $0x20] sm:$0xf]
        %v954 = vld [vmem:[%s944 + $0x24] sm:$0xf]
        %v955 = vld [vmem:[%s944 + $0x28] sm:$0xf]
        %v956 = vld [vmem:[%s944 + $0x2c] sm:$0xf]
        %v957 = vld [vmem:[%s944 + $0x30] sm:$0xf]
        %v958 = vld [vmem:[%s944 + $0x34] sm:$0xf]
        %v959 = vld [vmem:[%s944 + $0x38] sm:$0xf]
        %v960 = vld [vmem:[%s944 + $0x3c] sm:$0xf]
        %v986 = vunpack.c.l.b16 %v919
        %v987 = vunpack.c.l.b16 %v920
        %v988 = vunpack.c.l.b16 %v921
        %v989 = vunpack.c.l.b16 %v922
        %v990 = vunpack.c.l.b16 %v923
        %v991 = vunpack.c.l.b16 %v924
        %v992 = vunpack.c.l.b16 %v925
        %v993 = vunpack.c.l.b16 %v926
        %v994 = vunpack.c.l.b16 %v927
        %v995 = vunpack.c.l.b16 %v928
        %v996 = vunpack.c.l.b16 %v929
        %v997 = vunpack.c.l.b16 %v930
        %v998 = vunpack.c.l.b16 %v931
        %v999 = vunpack.c.l.b16 %v932
        %v1000 = vunpack.c.l.b16 %v933
        %v1001 = vunpack.c.l.b16 %v934
        %v1002 = vunpack.c.l.b16 %v935
        %v1003 = vunpack.c.l.b16 %v936
        %v1004 = vunpack.c.l.b16 %v937
        %v1005 = vunpack.c.l.b16 %v938
        %v1006 = vunpack.c.l.b16 %v939
        %v1007 = vunpack.c.l.b16 %v940
        %v1008 = vunpack.c.l.b16 %v941
        %v1009 = vunpack.c.l.b16 %v942
        %v1010 = vunpack.c.l.b16 %v943
        %v1011 = vpack.c.b16 %v987, %v986
        %v1012 = vpack.c.b16 %v989, %v988
        %v1013 = vpack.c.b16 %v991, %v990
        %v1014 = vpack.c.b16 %v993, %v992
        %v1015 = vpack.c.b16 %v995, %v994
        %v1016 = vpack.c.b16 %v997, %v996
        %v1017 = vpack.c.b16 %v999, %v998
        %v1018 = vpack.c.b16 %v1001, %v1000
        %v1019 = vpack.c.b16 %v1003, %v1002
        %v1020 = vpack.c.b16 %v1005, %v1004
        %v1021 = vpack.c.b16 %v1007, %v1006
        %v1022 = vpack.c.b16 %v1009, %v1008
        %v1023 = vpack.c.b16 %v1010, %v1010
        %vm1024 = vsmask.f32 7424
        %v1026 = vshrl.u32 %v1011, 16
        %v1028 = vshll.u32 %v1011, 16
        %v1030 = vrot.slane %v1028, 1
        %v1031 = vor.u32 %v1026, %v1030
        %v1033 = vshll.u32 %v1012, 16
        %v1035 = vrot.slane %v1033, 1
        %v1036 = vsel %vm1024, %v1031, %v1035
        %v1037 = vshrl.u32 %v1012, 16
        %v1039 = vor.u32 %v1037, %v1035
        %v1041 = vshll.u32 %v1013, 16
        %v1043 = vrot.slane %v1041, 1
        %v1044 = vsel %vm1024, %v1039, %v1043
        %v1045 = vshrl.u32 %v1013, 16
        %v1047 = vor.u32 %v1045, %v1043
        %v1049 = vshll.u32 %v1014, 16
        %v1051 = vrot.slane %v1049, 1
        %v1052 = vsel %vm1024, %v1047, %v1051
        %v1053 = vshrl.u32 %v1014, 16
        %v1055 = vor.u32 %v1053, %v1051
        %v1057 = vshll.u32 %v1015, 16
        %v1059 = vrot.slane %v1057, 1
        %v1060 = vsel %vm1024, %v1055, %v1059
        %v1061 = vshrl.u32 %v1015, 16
        %v1063 = vor.u32 %v1061, %v1059
        %v1065 = vshll.u32 %v1016, 16
        %v1067 = vrot.slane %v1065, 1
        %v1068 = vsel %vm1024, %v1063, %v1067
        %v1069 = vshrl.u32 %v1016, 16
        %v1071 = vor.u32 %v1069, %v1067
        %v1073 = vshll.u32 %v1017, 16
        %v1075 = vrot.slane %v1073, 1
        %v1076 = vsel %vm1024, %v1071, %v1075
        %v1077 = vshrl.u32 %v1017, 16
        %v1079 = vor.u32 %v1077, %v1075
        %v1081 = vshll.u32 %v1018, 16
        %v1083 = vrot.slane %v1081, 1
        %v1084 = vsel %vm1024, %v1079, %v1083
        %v1085 = vshrl.u32 %v1018, 16
        %v1087 = vor.u32 %v1085, %v1083
        %v1089 = vshll.u32 %v1019, 16
        %v1091 = vrot.slane %v1089, 1
        %v1092 = vsel %vm1024, %v1087, %v1091
        %v1093 = vshrl.u32 %v1019, 16
        %v1095 = vor.u32 %v1093, %v1091
        %v1097 = vshll.u32 %v1020, 16
        %v1099 = vrot.slane %v1097, 1
        %v1100 = vsel %vm1024, %v1095, %v1099
        %v1101 = vshrl.u32 %v1020, 16
        %v1103 = vor.u32 %v1101, %v1099
        %v1105 = vshll.u32 %v1021, 16
        %v1107 = vrot.slane %v1105, 1
        %v1108 = vsel %vm1024, %v1103, %v1107
        %v1109 = vshrl.u32 %v1021, 16
        %v1111 = vor.u32 %v1109, %v1107
        %v1113 = vshll.u32 %v1022, 16
        %v1115 = vrot.slane %v1113, 1
        %v1116 = vsel %vm1024, %v1111, %v1115
        %v1117 = vshrl.u32 %v1022, 16
        %v1119 = vor.u32 %v1117, %v1115
        %v1121 = vshll.u32 %v1023, 16
        %v1123 = vrot.slane %v1121, 1
        %v1124 = vsel %vm1024, %v1119, %v1123
        %v1153 = vunpack.c.l.b16 %v945
        %v1154 = vunpack.c.l.b16 %v946
        %v1155 = vunpack.c.l.b16 %v947
        %v1156 = vunpack.c.l.b16 %v948
        %v1157 = vunpack.c.l.b16 %v949
        %v1158 = vunpack.c.l.b16 %v950
        %v1159 = vunpack.c.l.b16 %v951
        %v1160 = vunpack.c.l.b16 %v952
        %v1161 = vunpack.c.l.b16 %v953
        %v1162 = vunpack.c.l.b16 %v954
        %v1163 = vunpack.c.l.b16 %v955
        %v1164 = vunpack.c.l.b16 %v956
        %v1165 = vunpack.c.l.b16 %v957
        %v1166 = vunpack.c.l.b16 %v958
        %v1167 = vunpack.c.l.b16 %v959
        %v1168 = vunpack.c.l.b16 %v960
        %v1169 = vpack.c.b16 %v1154, %v1153
        %v1170 = vpack.c.b16 %v1156, %v1155
        %v1171 = vpack.c.b16 %v1158, %v1157
        %v1172 = vpack.c.b16 %v1160, %v1159
        %v1173 = vpack.c.b16 %v1162, %v1161
        %v1174 = vpack.c.b16 %v1164, %v1163
        %v1175 = vpack.c.b16 %v1166, %v1165
        %v1176 = vpack.c.b16 %v1168, %v1167
        %1185 = vmatprep.subr.bf16.mxu0 0
        %1186 = vmatpush1.bf16.msra.mxu0 %v1169
        %1187 = vmatprep.subr.bf16.mxu0 0
        %1188 = vmatpush1.bf16.msra.mxu0 %v1170
        %1189 = vmatprep.subr.bf16.mxu0 0
        %1190 = vmatpush1.bf16.msra.mxu0 %v1171
        %1191 = vmatprep.subr.bf16.mxu0 0
        %1192 = vmatpush1.bf16.msra.mxu0 %v1172
        %1193 = vmatprep.subr.bf16.mxu0 0
        %1194 = vmatpush1.bf16.msra.mxu0 %v1173
        %1195 = vmatprep.subr.bf16.mxu0 0
        %1196 = vmatpush1.bf16.msra.mxu0 %v1174
        %1197 = vmatprep.subr.bf16.mxu0 0
        %1198 = vmatpush1.bf16.msra.mxu0 %v1175
        %1199 = vmatprep.subr.bf16.mxu0 0
        %1200 = vmatpush1.bf16.msra.mxu0 %v1176
        %1201 = vmatprep.subr.bf16.mxu0 0
        %1202 = vmatpush1.bf16.msra.mxu0 0
        %1203 = vmatprep.subr.bf16.mxu0 0
        %1204 = vmatpush1.bf16.msra.mxu0 0
        %1205 = vmatprep.subr.bf16.mxu0 0
        %1206 = vmatpush1.bf16.msra.mxu0 0
        %1207 = vmatprep.subr.bf16.mxu0 0
        %1208 = vmatpush1.bf16.msra.mxu0 0
        %1209 = vmatprep.subr.bf16.mxu0 0
        %1210 = vmatpush1.bf16.msra.mxu0 0
        %1211 = vmatprep.subr.bf16.mxu0 0
        %1212 = vmatpush1.bf16.msra.mxu0 0
        %1213 = vmatprep.subr.bf16.mxu0 0
        %1214 = vmatpush1.bf16.msra.mxu0 0
        %1215 = vmatprep.subr.bf16.mxu0 0
        %1216 = vmatpush1.bf16.msra.mxu0 0
        %1217 = vmatprep.mubr.bf16.mxu0 0
        %1218 = vmatmul.mubr.bf16.gmra.mrb[0].mxu0 %v1036
        %v1219 = vpop.f32.mrb[0].mxu0
        %v1220 = vadd.f32 0.0, %v1219
        %v1221 = vpop.f32.mrb[0].mxu0
        %v1222 = vpop.f32.mrb[0].mxu0
        %v1223 = vadd.f32 0.0, %v1222
        %v1224 = vpop.f32.mrb[0].mxu0
        %1225 = vmatprep.mubr.bf16.mxu0 0
        %1226 = vmatmul.mubr.bf16.gmra.mrb[0].mxu0 %v1044
        %v1227 = vpop.f32.mrb[0].mxu0
        %v1228 = vadd.f32 0.0, %v1227
        %v1229 = vpop.f32.mrb[0].mxu0
        %v1230 = vpop.f32.mrb[0].mxu0
        %v1231 = vadd.f32 0.0, %v1230
        %v1232 = vpop.f32.mrb[0].mxu0
        %1233 = vmatprep.mubr.bf16.mxu0 0
        %1234 = vmatmul.mubr.bf16.gmra.mrb[0].mxu0 %v1052
        %v1235 = vpop.f32.mrb[0].mxu0
        %v1236 = vadd.f32 0.0, %v1235
        %v1237 = vpop.f32.mrb[0].mxu0
        %v1238 = vpop.f32.mrb[0].mxu0
        %v1239 = vadd.f32 0.0, %v1238
        %v1240 = vpop.f32.mrb[0].mxu0
        %1241 = vmatprep.mubr.bf16.mxu0 0
        %1242 = vmatmul.mubr.bf16.gmra.mrb[0].mxu0 %v1060
        %v1243 = vpop.f32.mrb[0].mxu0
        %v1244 = vadd.f32 0.0, %v1243
        %v1245 = vpop.f32.mrb[0].mxu0
        %v1246 = vpop.f32.mrb[0].mxu0
        %v1247 = vadd.f32 0.0, %v1246
        %v1248 = vpop.f32.mrb[0].mxu0
        %1249 = vmatprep.mubr.bf16.mxu0 0
        %1250 = vmatmul.mubr.bf16.gmra.mrb[0].mxu0 %v1068
        %v1251 = vpop.f32.mrb[0].mxu0
        %v1252 = vadd.f32 0.0, %v1251
        %v1253 = vpop.f32.mrb[0].mxu0
        %v1254 = vpop.f32.mrb[0].mxu0
        %v1255 = vadd.f32 0.0, %v1254
        %v1256 = vpop.f32.mrb[0].mxu0
        %1257 = vmatprep.mubr.bf16.mxu0 0
        %1258 = vmatmul.mubr.bf16.gmra.mrb[0].mxu0 %v1076
        %v1259 = vpop.f32.mrb[0].mxu0
        %v1260 = vadd.f32 0.0, %v1259
        %v1261 = vpop.f32.mrb[0].mxu0
        %v1262 = vpop.f32.mrb[0].mxu0
        %v1263 = vadd.f32 0.0, %v1262
        %v1264 = vpop.f32.mrb[0].mxu0
        %1265 = vmatprep.mubr.bf16.mxu0 0
        %1266 = vmatmul.mubr.bf16.gmra.mrb[0].mxu0 %v1084
        %v1267 = vpop.f32.mrb[0].mxu0
        %v1268 = vadd.f32 0.0, %v1267
        %v1269 = vpop.f32.mrb[0].mxu0
        %v1270 = vpop.f32.mrb[0].mxu0
        %v1271 = vadd.f32 0.0, %v1270
        %v1272 = vpop.f32.mrb[0].mxu0
        %1273 = vmatprep.mubr.bf16.mxu0 0
        %1274 = vmatmul.mubr.bf16.gmra.mrb[0].mxu0 %v1092
        %v1275 = vpop.f32.mrb[0].mxu0
        %v1276 = vadd.f32 0.0, %v1275
        %v1277 = vpop.f32.mrb[0].mxu0
        %v1278 = vpop.f32.mrb[0].mxu0
        %v1279 = vadd.f32 0.0, %v1278
        %v1280 = vpop.f32.mrb[0].mxu0
        %1281 = vmatprep.mubr.bf16.mxu0 0
        %1282 = vmatmul.mubr.bf16.gmra.mrb[0].mxu0 %v1100
        %v1283 = vpop.f32.mrb[0].mxu0
        %v1284 = vadd.f32 0.0, %v1283
        %v1285 = vpop.f32.mrb[0].mxu0
        %v1286 = vpop.f32.mrb[0].mxu0
        %v1287 = vadd.f32 0.0, %v1286
        %v1288 = vpop.f32.mrb[0].mxu0
        %1289 = vmatprep.mubr.bf16.mxu0 0
        %1290 = vmatmul.mubr.bf16.gmra.mrb[0].mxu0 %v1108
        %v1291 = vpop.f32.mrb[0].mxu0
        %v1292 = vadd.f32 0.0, %v1291
        %v1293 = vpop.f32.mrb[0].mxu0
        %v1294 = vpop.f32.mrb[0].mxu0
        %v1295 = vadd.f32 0.0, %v1294
        %v1296 = vpop.f32.mrb[0].mxu0
        %1297 = vmatprep.mubr.bf16.mxu0 0
        %1298 = vmatmul.mubr.bf16.gmra.mrb[0].mxu0 %v1116
        %v1299 = vpop.f32.mrb[0].mxu0
        %v1300 = vadd.f32 0.0, %v1299
        %v1301 = vpop.f32.mrb[0].mxu0
        %v1302 = vpop.f32.mrb[0].mxu0
        %v1303 = vadd.f32 0.0, %v1302
        %v1304 = vpop.f32.mrb[0].mxu0
        %1305 = vmatprep.mubr.bf16.mxu0 0
        %1306 = vmatmul.mubr.bf16.gmra.mrb[0].mxu0 %v1124
        %v1307 = vpop.f32.mrb[0].mxu0
        %v1308 = vadd.f32 0.0, %v1307
        %v1309 = vpop.f32.mrb[0].mxu0
        %v1310 = vpop.f32.mrb[0].mxu0
        %v1311 = vadd.f32 0.0, %v1310
        %v1312 = vpop.f32.mrb[0].mxu0
        %1313 = vdwg.mxu0
        %v1314 = vadd.f32 %v825, %v1220
        %v1315 = vadd.f32 %v828, %v1223
        %v1316 = vadd.f32 %v833, %v1228
        %v1317 = vadd.f32 %v836, %v1231
        %v1318 = vadd.f32 %v841, %v1236
        %v1319 = vadd.f32 %v844, %v1239
        %v1320 = vadd.f32 %v849, %v1244
        %v1321 = vadd.f32 %v852, %v1247
        %v1322 = vadd.f32 %v857, %v1252
        %v1323 = vadd.f32 %v860, %v1255
        %v1324 = vadd.f32 %v865, %v1260
        %v1325 = vadd.f32 %v868, %v1263
        %v1326 = vadd.f32 %v873, %v1268
        %v1327 = vadd.f32 %v876, %v1271
        %v1328 = vadd.f32 %v881, %v1276
        %v1329 = vadd.f32 %v884, %v1279
        %v1330 = vadd.f32 %v889, %v1284
        %v1331 = vadd.f32 %v892, %v1287
        %v1332 = vadd.f32 %v897, %v1292
        %v1333 = vadd.f32 %v900, %v1295
        %v1334 = vadd.f32 %v905, %v1300
        %v1335 = vadd.f32 %v908, %v1303
        %v1336 = vadd.f32 %v913, %v1308
        %v1337 = vadd.f32 %v916, %v1311
        %v1338 = vld [vmem:[%s232 + $0xc] sm:$0x8]
        %v1339 = vld [vmem:[%s232 + $0x10] sm:$0xf]
        %v1340 = vld [vmem:[%s232 + $0x14] sm:$0xf]
        %v1341 = vld [vmem:[%s232 + $0x18] sm:$0xf]
        %v1342 = vld [vmem:[%s232 + $0x1c] sm:$0xf]
        %v1343 = vld [vmem:[%s232 + $0x20] sm:$0xf]
        %v1344 = vld [vmem:[%s232 + $0x24] sm:$0xf]
        %v1345 = vld [vmem:[%s232 + $0x28] sm:$0xf]
        %v1346 = vld [vmem:[%s232 + $0x2c] sm:$0xf]
        %v1347 = vld [vmem:[%s232 + $0x30] sm:$0xf]
        %v1348 = vld [vmem:[%s232 + $0x34] sm:$0xf]
        %v1349 = vld [vmem:[%s232 + $0x38] sm:$0xf]
        %v1350 = vld [vmem:[%s232 + $0x3c] sm:$0xf]
        %v1351 = vld [vmem:[%s232 + $0x40] sm:$0xf]
        %v1352 = vld [vmem:[%s232 + $0x44] sm:$0xf]
        %v1353 = vld [vmem:[%s232 + $0x48] sm:$0xf]
        %v1354 = vld [vmem:[%s232 + $0x4c] sm:$0xf]
        %v1355 = vld [vmem:[%s232 + $0x50] sm:$0xf]
        %v1356 = vld [vmem:[%s232 + $0x54] sm:$0xf]
        %v1357 = vld [vmem:[%s232 + $0x58] sm:$0xf]
        %v1358 = vld [vmem:[%s232 + $0x5c] sm:$0xf]
        %v1359 = vld [vmem:[%s232 + $0x60] sm:$0xf]
        %v1360 = vld [vmem:[%s232 + $0x64] sm:$0xf]
        %v1361 = vld [vmem:[%s232 + $0x68] sm:$0xf]
        %v1362 = vld [vmem:[%s232 + $0x6c] sm:$0xf]
        %s1363 = scalar_lea.vmem [#allocation5], 192
        %v1364 = vld [vmem:[%s1363] sm:$0xf]
        %v1365 = vld [vmem:[%s1363 + $0x4] sm:$0xf]
        %v1366 = vld [vmem:[%s1363 + $0x8] sm:$0xf]
        %v1367 = vld [vmem:[%s1363 + $0xc] sm:$0xf]
        %v1368 = vld [vmem:[%s1363 + $0x10] sm:$0xf]
        %v1369 = vld [vmem:[%s1363 + $0x14] sm:$0xf]
        %v1370 = vld [vmem:[%s1363 + $0x18] sm:$0xf]
        %v1371 = vld [vmem:[%s1363 + $0x1c] sm:$0xf]
        %v1372 = vld [vmem:[%s1363 + $0x20] sm:$0xf]
        %v1373 = vld [vmem:[%s1363 + $0x24] sm:$0xf]
        %v1374 = vld [vmem:[%s1363 + $0x28] sm:$0xf]
        %v1375 = vld [vmem:[%s1363 + $0x2c] sm:$0xf]
        %v1376 = vld [vmem:[%s1363 + $0x30] sm:$0xf]
        %v1377 = vld [vmem:[%s1363 + $0x34] sm:$0xf]
        %v1378 = vld [vmem:[%s1363 + $0x38] sm:$0xf]
        %v1379 = vld [vmem:[%s1363 + $0x3c] sm:$0xf]
        %v1405 = vunpack.c.l.b16 %v1338
        %v1406 = vunpack.c.l.b16 %v1339
        %v1407 = vunpack.c.l.b16 %v1340
        %v1408 = vunpack.c.l.b16 %v1341
        %v1409 = vunpack.c.l.b16 %v1342
        %v1410 = vunpack.c.l.b16 %v1343
        %v1411 = vunpack.c.l.b16 %v1344
        %v1412 = vunpack.c.l.b16 %v1345
        %v1413 = vunpack.c.l.b16 %v1346
        %v1414 = vunpack.c.l.b16 %v1347
        %v1415 = vunpack.c.l.b16 %v1348
        %v1416 = vunpack.c.l.b16 %v1349
        %v1417 = vunpack.c.l.b16 %v1350
        %v1418 = vunpack.c.l.b16 %v1351
        %v1419 = vunpack.c.l.b16 %v1352
        %v1420 = vunpack.c.l.b16 %v1353
        %v1421 = vunpack.c.l.b16 %v1354
        %v1422 = vunpack.c.l.b16 %v1355
        %v1423 = vunpack.c.l.b16 %v1356
        %v1424 = vunpack.c.l.b16 %v1357
        %v1425 = vunpack.c.l.b16 %v1358
        %v1426 = vunpack.c.l.b16 %v1359
        %v1427 = vunpack.c.l.b16 %v1360
        %v1428 = vunpack.c.l.b16 %v1361
        %v1429 = vunpack.c.l.b16 %v1362
        %v1430 = vpack.c.b16 %v1406, %v1405
        %v1431 = vpack.c.b16 %v1408, %v1407
        %v1432 = vpack.c.b16 %v1410, %v1409
        %v1433 = vpack.c.b16 %v1412, %v1411
        %v1434 = vpack.c.b16 %v1414, %v1413
        %v1435 = vpack.c.b16 %v1416, %v1415
        %v1436 = vpack.c.b16 %v1418, %v1417
        %v1437 = vpack.c.b16 %v1420, %v1419
        %v1438 = vpack.c.b16 %v1422, %v1421
        %v1439 = vpack.c.b16 %v1424, %v1423
        %v1440 = vpack.c.b16 %v1426, %v1425
        %v1441 = vpack.c.b16 %v1428, %v1427
        %v1442 = vpack.c.b16 %v1429, %v1429
        %v1444 = vshrl.u32 %v1430, 16
        %v1446 = vrot.slane %v1444, 3
        %v1447 = vshll.u32 %v1430, 16
        %v1449 = vrot.slane %v1447, 4
        %v1450 = vor.u32 %v1446, %v1449
        %v1452 = vshrl.u32 %v1431, 16
        %v1454 = vrot.slane %v1452, 3
        %v1455 = vshll.u32 %v1431, 16
        %v1457 = vrot.slane %v1455, 4
        %v1458 = vor.u32 %v1454, %v1457
        %v1459 = vsel %vm613, %v1450, %v1458
        %v1461 = vshrl.u32 %v1432, 16
        %v1463 = vrot.slane %v1461, 3
        %v1464 = vshll.u32 %v1432, 16
        %v1466 = vrot.slane %v1464, 4
        %v1467 = vor.u32 %v1463, %v1466
        %v1468 = vsel %vm613, %v1458, %v1467
        %v1470 = vshrl.u32 %v1433, 16
        %v1472 = vrot.slane %v1470, 3
        %v1473 = vshll.u32 %v1433, 16
        %v1475 = vrot.slane %v1473, 4
        %v1476 = vor.u32 %v1472, %v1475
        %v1477 = vsel %vm613, %v1467, %v1476
        %v1479 = vshrl.u32 %v1434, 16
        %v1481 = vrot.slane %v1479, 3
        %v1482 = vshll.u32 %v1434, 16
        %v1484 = vrot.slane %v1482, 4
        %v1485 = vor.u32 %v1481, %v1484
        %v1486 = vsel %vm613, %v1476, %v1485
        %v1488 = vshrl.u32 %v1435, 16
        %v1490 = vrot.slane %v1488, 3
        %v1491 = vshll.u32 %v1435, 16
        %v1493 = vrot.slane %v1491, 4
        %v1494 = vor.u32 %v1490, %v1493
        %v1495 = vsel %vm613, %v1485, %v1494
        %v1497 = vshrl.u32 %v1436, 16
        %v1499 = vrot.slane %v1497, 3
        %v1500 = vshll.u32 %v1436, 16
        %v1502 = vrot.slane %v1500, 4
        %v1503 = vor.u32 %v1499, %v1502
        %v1504 = vsel %vm613, %v1494, %v1503
        %v1506 = vshrl.u32 %v1437, 16
        %v1508 = vrot.slane %v1506, 3
        %v1509 = vshll.u32 %v1437, 16
        %v1511 = vrot.slane %v1509, 4
        %v1512 = vor.u32 %v1508, %v1511
        %v1513 = vsel %vm613, %v1503, %v1512
        %v1515 = vshrl.u32 %v1438, 16
        %v1517 = vrot.slane %v1515, 3
        %v1518 = vshll.u32 %v1438, 16
        %v1520 = vrot.slane %v1518, 4
        %v1521 = vor.u32 %v1517, %v1520
        %v1522 = vsel %vm613, %v1512, %v1521
        %v1524 = vshrl.u32 %v1439, 16
        %v1526 = vrot.slane %v1524, 3
        %v1527 = vshll.u32 %v1439, 16
        %v1529 = vrot.slane %v1527, 4
        %v1530 = vor.u32 %v1526, %v1529
        %v1531 = vsel %vm613, %v1521, %v1530
        %v1533 = vshrl.u32 %v1440, 16
        %v1535 = vrot.slane %v1533, 3
        %v1536 = vshll.u32 %v1440, 16
        %v1538 = vrot.slane %v1536, 4
        %v1539 = vor.u32 %v1535, %v1538
        %v1540 = vsel %vm613, %v1530, %v1539
        %v1542 = vshrl.u32 %v1441, 16
        %v1544 = vrot.slane %v1542, 3
        %v1545 = vshll.u32 %v1441, 16
        %v1547 = vrot.slane %v1545, 4
        %v1548 = vor.u32 %v1544, %v1547
        %v1549 = vsel %vm613, %v1539, %v1548
        %v1551 = vshrl.u32 %v1442, 16
        %v1553 = vrot.slane %v1551, 3
        %v1554 = vshll.u32 %v1442, 16
        %v1556 = vrot.slane %v1554, 4
        %v1557 = vor.u32 %v1553, %v1556
        %v1558 = vsel %vm613, %v1548, %v1557
        %v1587 = vunpack.c.l.b16 %v1364
        %v1588 = vunpack.c.l.b16 %v1365
        %v1589 = vunpack.c.l.b16 %v1366
        %v1590 = vunpack.c.l.b16 %v1367
        %v1591 = vunpack.c.l.b16 %v1368
        %v1592 = vunpack.c.l.b16 %v1369
        %v1593 = vunpack.c.l.b16 %v1370
        %v1594 = vunpack.c.l.b16 %v1371
        %v1595 = vunpack.c.l.b16 %v1372
        %v1596 = vunpack.c.l.b16 %v1373
        %v1597 = vunpack.c.l.b16 %v1374
        %v1598 = vunpack.c.l.b16 %v1375
        %v1599 = vunpack.c.l.b16 %v1376
        %v1600 = vunpack.c.l.b16 %v1377
        %v1601 = vunpack.c.l.b16 %v1378
        %v1602 = vunpack.c.l.b16 %v1379
        %v1603 = vpack.c.b16 %v1588, %v1587
        %v1604 = vpack.c.b16 %v1590, %v1589
        %v1605 = vpack.c.b16 %v1592, %v1591
        %v1606 = vpack.c.b16 %v1594, %v1593
        %v1607 = vpack.c.b16 %v1596, %v1595
        %v1608 = vpack.c.b16 %v1598, %v1597
        %v1609 = vpack.c.b16 %v1600, %v1599
        %v1610 = vpack.c.b16 %v1602, %v1601
        %1619 = vmatprep.subr.bf16.mxu0 0
        %1620 = vmatpush1.bf16.msra.mxu0 %v1603
        %1621 = vmatprep.subr.bf16.mxu0 0
        %1622 = vmatpush1.bf16.msra.mxu0 %v1604
        %1623 = vmatprep.subr.bf16.mxu0 0
        %1624 = vmatpush1.bf16.msra.mxu0 %v1605
        %1625 = vmatprep.subr.bf16.mxu0 0
        %1626 = vmatpush1.bf16.msra.mxu0 %v1606
        %1627 = vmatprep.subr.bf16.mxu0 0
        %1628 = vmatpush1.bf16.msra.mxu0 %v1607
        %1629 = vmatprep.subr.bf16.mxu0 0
        %1630 = vmatpush1.bf16.msra.mxu0 %v1608
        %1631 = vmatprep.subr.bf16.mxu0 0
        %1632 = vmatpush1.bf16.msra.mxu0 %v1609
        %1633 = vmatprep.subr.bf16.mxu0 0
        %1634 = vmatpush1.bf16.msra.mxu0 %v1610
        %1635 = vmatprep.subr.bf16.mxu0 0
        %1636 = vmatpush1.bf16.msra.mxu0 0
        %1637 = vmatprep.subr.bf16.mxu0 0
        %1638 = vmatpush1.bf16.msra.mxu0 0
        %1639 = vmatprep.subr.bf16.mxu0 0
        %1640 = vmatpush1.bf16.msra.mxu0 0
        %1641 = vmatprep.subr.bf16.mxu0 0
        %1642 = vmatpush1.bf16.msra.mxu0 0
        %1643 = vmatprep.subr.bf16.mxu0 0
        %1644 = vmatpush1.bf16.msra.mxu0 0
        %1645 = vmatprep.subr.bf16.mxu0 0
        %1646 = vmatpush1.bf16.msra.mxu0 0
        %1647 = vmatprep.subr.bf16.mxu0 0
        %1648 = vmatpush1.bf16.msra.mxu0 0
        %1649 = vmatprep.subr.bf16.mxu0 0
        %1650 = vmatpush1.bf16.msra.mxu0 0
        %1651 = vmatprep.mubr.bf16.mxu0 0
        %1652 = vmatmul.mubr.bf16.gmra.mrb[0].mxu0 %v1459
        %v1653 = vpop.f32.mrb[0].mxu0
        %v1654 = vadd.f32 0.0, %v1653
        %v1655 = vpop.f32.mrb[0].mxu0
        %v1656 = vpop.f32.mrb[0].mxu0
        %v1657 = vadd.f32 0.0, %v1656
        %v1658 = vpop.f32.mrb[0].mxu0
        %1659 = vmatprep.mubr.bf16.mxu0 0
        %1660 = vmatmul.mubr.bf16.gmra.mrb[0].mxu0 %v1468
        %v1661 = vpop.f32.mrb[0].mxu0
        %v1662 = vadd.f32 0.0, %v1661
        %v1663 = vpop.f32.mrb[0].mxu0
        %v1664 = vpop.f32.mrb[0].mxu0
        %v1665 = vadd.f32 0.0, %v1664
        %v1666 = vpop.f32.mrb[0].mxu0
        %1667 = vmatprep.mubr.bf16.mxu0 0
        %1668 = vmatmul.mubr.bf16.gmra.mrb[0].mxu0 %v1477
        %v1669 = vpop.f32.mrb[0].mxu0
        %v1670 = vadd.f32 0.0, %v1669
        %v1671 = vpop.f32.mrb[0].mxu0
        %v1672 = vpop.f32.mrb[0].mxu0
        %v1673 = vadd.f32 0.0, %v1672
        %v1674 = vpop.f32.mrb[0].mxu0
        %1675 = vmatprep.mubr.bf16.mxu0 0
        %1676 = vmatmul.mubr.bf16.gmra.mrb[0].mxu0 %v1486
        %v1677 = vpop.f32.mrb[0].mxu0
        %v1678 = vadd.f32 0.0, %v1677
        %v1679 = vpop.f32.mrb[0].mxu0
        %v1680 = vpop.f32.mrb[0].mxu0
        %v1681 = vadd.f32 0.0, %v1680
        %v1682 = vpop.f32.mrb[0].mxu0
        %1683 = vmatprep.mubr.bf16.mxu0 0
        %1684 = vmatmul.mubr.bf16.gmra.mrb[0].mxu0 %v1495
        %v1685 = vpop.f32.mrb[0].mxu0
        %v1686 = vadd.f32 0.0, %v1685
        %v1687 = vpop.f32.mrb[0].mxu0
        %v1688 = vpop.f32.mrb[0].mxu0
        %v1689 = vadd.f32 0.0, %v1688
        %v1690 = vpop.f32.mrb[0].mxu0
        %1691 = vmatprep.mubr.bf16.mxu0 0
        %1692 = vmatmul.mubr.bf16.gmra.mrb[0].mxu0 %v1504
        %v1693 = vpop.f32.mrb[0].mxu0
        %v1694 = vadd.f32 0.0, %v1693
        %v1695 = vpop.f32.mrb[0].mxu0
        %v1696 = vpop.f32.mrb[0].mxu0
        %v1697 = vadd.f32 0.0, %v1696
        %v1698 = vpop.f32.mrb[0].mxu0
        %1699 = vmatprep.mubr.bf16.mxu0 0
        %1700 = vmatmul.mubr.bf16.gmra.mrb[0].mxu0 %v1513
        %v1701 = vpop.f32.mrb[0].mxu0
        %v1702 = vadd.f32 0.0, %v1701
        %v1703 = vpop.f32.mrb[0].mxu0
        %v1704 = vpop.f32.mrb[0].mxu0
        %v1705 = vadd.f32 0.0, %v1704
        %v1706 = vpop.f32.mrb[0].mxu0
        %1707 = vmatprep.mubr.bf16.mxu0 0
        %1708 = vmatmul.mubr.bf16.gmra.mrb[0].mxu0 %v1522
        %v1709 = vpop.f32.mrb[0].mxu0
        %v1710 = vadd.f32 0.0, %v1709
        %v1711 = vpop.f32.mrb[0].mxu0
        %v1712 = vpop.f32.mrb[0].mxu0
        %v1713 = vadd.f32 0.0, %v1712
        %v1714 = vpop.f32.mrb[0].mxu0
        %1715 = vmatprep.mubr.bf16.mxu0 0
        %1716 = vmatmul.mubr.bf16.gmra.mrb[0].mxu0 %v1531
        %v1717 = vpop.f32.mrb[0].mxu0
        %v1718 = vadd.f32 0.0, %v1717
        %v1719 = vpop.f32.mrb[0].mxu0
        %v1720 = vpop.f32.mrb[0].mxu0
        %v1721 = vadd.f32 0.0, %v1720
        %v1722 = vpop.f32.mrb[0].mxu0
        %1723 = vmatprep.mubr.bf16.mxu0 0
        %1724 = vmatmul.mubr.bf16.gmra.mrb[0].mxu0 %v1540
        %v1725 = vpop.f32.mrb[0].mxu0
        %v1726 = vadd.f32 0.0, %v1725
        %v1727 = vpop.f32.mrb[0].mxu0
        %v1728 = vpop.f32.mrb[0].mxu0
        %v1729 = vadd.f32 0.0, %v1728
        %v1730 = vpop.f32.mrb[0].mxu0
        %1731 = vmatprep.mubr.bf16.mxu0 0
        %1732 = vmatmul.mubr.bf16.gmra.mrb[0].mxu0 %v1549
        %v1733 = vpop.f32.mrb[0].mxu0
        %v1734 = vadd.f32 0.0, %v1733
        %v1735 = vpop.f32.mrb[0].mxu0
        %v1736 = vpop.f32.mrb[0].mxu0
        %v1737 = vadd.f32 0.0, %v1736
        %v1738 = vpop.f32.mrb[0].mxu0
        %1739 = vmatprep.mubr.bf16.mxu0 0
        %1740 = vmatmul.mubr.bf16.gmra.mrb[0].mxu0 %v1558
        %v1741 = vpop.f32.mrb[0].mxu0
        %v1742 = vadd.f32 0.0, %v1741
        %v1743 = vpop.f32.mrb[0].mxu0
        %v1744 = vpop.f32.mrb[0].mxu0
        %v1745 = vadd.f32 0.0, %v1744
        %v1746 = vpop.f32.mrb[0].mxu0
        %1747 = vdwg.mxu0
        %v1748 = vadd.f32 %v1314, %v1654
        %v1749 = vadd.f32 %v1315, %v1657
        %v1750 = vadd.f32 %v1316, %v1662
        %v1751 = vadd.f32 %v1317, %v1665
        %v1752 = vadd.f32 %v1318, %v1670
        %v1753 = vadd.f32 %v1319, %v1673
        %v1754 = vadd.f32 %v1320, %v1678
        %v1755 = vadd.f32 %v1321, %v1681
        %v1756 = vadd.f32 %v1322, %v1686
        %v1757 = vadd.f32 %v1323, %v1689
        %v1758 = vadd.f32 %v1324, %v1694
        %v1759 = vadd.f32 %v1325, %v1697
        %v1760 = vadd.f32 %v1326, %v1702
        %v1761 = vadd.f32 %v1327, %v1705
        %v1762 = vadd.f32 %v1328, %v1710
        %v1763 = vadd.f32 %v1329, %v1713
        %v1764 = vadd.f32 %v1330, %v1718
        %v1765 = vadd.f32 %v1331, %v1721
        %v1766 = vadd.f32 %v1332, %v1726
        %v1767 = vadd.f32 %v1333, %v1729
        %v1768 = vadd.f32 %v1334, %v1734
        %v1769 = vadd.f32 %v1335, %v1737
        %v1770 = vadd.f32 %v1336, %v1742
        %v1771 = vadd.f32 %v1337, %v1745
        %s1772 = scalar_lea.vmem [#allocation5], 256
        %v1773 = vld [vmem:[%s1772] sm:$0xf]
        %v1774 = vld [vmem:[%s1772 + $0x4] sm:$0xf]
        %v1775 = vld [vmem:[%s1772 + $0x8] sm:$0xf]
        %v1776 = vld [vmem:[%s1772 + $0xc] sm:$0xf]
        %v1777 = vld [vmem:[%s1772 + $0x10] sm:$0xf]
        %v1778 = vld [vmem:[%s1772 + $0x14] sm:$0xf]
        %v1779 = vld [vmem:[%s1772 + $0x18] sm:$0xf]
        %v1780 = vld [vmem:[%s1772 + $0x1c] sm:$0xf]
        %v1781 = vld [vmem:[%s1772 + $0x20] sm:$0xf]
        %v1782 = vld [vmem:[%s1772 + $0x24] sm:$0xf]
        %v1783 = vld [vmem:[%s1772 + $0x28] sm:$0xf]
        %v1784 = vld [vmem:[%s1772 + $0x2c] sm:$0xf]
        %v1785 = vld [vmem:[%s1772 + $0x30] sm:$0xf]
        %v1786 = vld [vmem:[%s1772 + $0x34] sm:$0xf]
        %v1787 = vld [vmem:[%s1772 + $0x38] sm:$0xf]
        %v1788 = vld [vmem:[%s1772 + $0x3c] sm:$0xf]
        %v1789 = vpack.c.b16 %v1407, %v1406
        %v1790 = vpack.c.b16 %v1409, %v1408
        %v1791 = vpack.c.b16 %v1411, %v1410
        %v1792 = vpack.c.b16 %v1413, %v1412
        %v1793 = vpack.c.b16 %v1415, %v1414
        %v1794 = vpack.c.b16 %v1417, %v1416
        %v1795 = vpack.c.b16 %v1419, %v1418
        %v1796 = vpack.c.b16 %v1421, %v1420
        %v1797 = vpack.c.b16 %v1423, %v1422
        %v1798 = vpack.c.b16 %v1425, %v1424
        %v1799 = vpack.c.b16 %v1427, %v1426
        %v1800 = vpack.c.b16 %v1429, %v1428
        %v1829 = vunpack.c.l.b16 %v1773
        %v1830 = vunpack.c.l.b16 %v1774
        %v1831 = vunpack.c.l.b16 %v1775
        %v1832 = vunpack.c.l.b16 %v1776
        %v1833 = vunpack.c.l.b16 %v1777
        %v1834 = vunpack.c.l.b16 %v1778
        %v1835 = vunpack.c.l.b16 %v1779
        %v1836 = vunpack.c.l.b16 %v1780
        %v1837 = vunpack.c.l.b16 %v1781
        %v1838 = vunpack.c.l.b16 %v1782
        %v1839 = vunpack.c.l.b16 %v1783
        %v1840 = vunpack.c.l.b16 %v1784
        %v1841 = vunpack.c.l.b16 %v1785
        %v1842 = vunpack.c.l.b16 %v1786
        %v1843 = vunpack.c.l.b16 %v1787
        %v1844 = vunpack.c.l.b16 %v1788
        %v1845 = vpack.c.b16 %v1830, %v1829
        %v1846 = vpack.c.b16 %v1832, %v1831
        %v1847 = vpack.c.b16 %v1834, %v1833
        %v1848 = vpack.c.b16 %v1836, %v1835
        %v1849 = vpack.c.b16 %v1838, %v1837
        %v1850 = vpack.c.b16 %v1840, %v1839
        %v1851 = vpack.c.b16 %v1842, %v1841
        %v1852 = vpack.c.b16 %v1844, %v1843
        %1861 = vmatprep.subr.bf16.mxu0 0
        %1862 = vmatpush1.bf16.msra.mxu0 %v1845
        %1863 = vmatprep.subr.bf16.mxu0 0
        %1864 = vmatpush1.bf16.msra.mxu0 %v1846
        %1865 = vmatprep.subr.bf16.mxu0 0
        %1866 = vmatpush1.bf16.msra.mxu0 %v1847
        %1867 = vmatprep.subr.bf16.mxu0 0
        %1868 = vmatpush1.bf16.msra.mxu0 %v1848
        %1869 = vmatprep.subr.bf16.mxu0 0
        %1870 = vmatpush1.bf16.msra.mxu0 %v1849
        %1871 = vmatprep.subr.bf16.mxu0 0
        %1872 = vmatpush1.bf16.msra.mxu0 %v1850
        %1873 = vmatprep.subr.bf16.mxu0 0
        %1874 = vmatpush1.bf16.msra.mxu0 %v1851
        %1875 = vmatprep.subr.bf16.mxu0 0
        %1876 = vmatpush1.bf16.msra.mxu0 %v1852
        %1877 = vmatprep.subr.bf16.mxu0 0
        %1878 = vmatpush1.bf16.msra.mxu0 0
        %1879 = vmatprep.subr.bf16.mxu0 0
        %1880 = vmatpush1.bf16.msra.mxu0 0
        %1881 = vmatprep.subr.bf16.mxu0 0
        %1882 = vmatpush1.bf16.msra.mxu0 0
        %1883 = vmatprep.subr.bf16.mxu0 0
        %1884 = vmatpush1.bf16.msra.mxu0 0
        %1885 = vmatprep.subr.bf16.mxu0 0
        %1886 = vmatpush1.bf16.msra.mxu0 0
        %1887 = vmatprep.subr.bf16.mxu0 0
        %1888 = vmatpush1.bf16.msra.mxu0 0
        %1889 = vmatprep.subr.bf16.mxu0 0
        %1890 = vmatpush1.bf16.msra.mxu0 0
        %1891 = vmatprep.subr.bf16.mxu0 0
        %1892 = vmatpush1.bf16.msra.mxu0 0
        %1893 = vmatprep.mubr.bf16.mxu0 0
        %1894 = vmatmul.mubr.bf16.gmra.mrb[0].mxu0 %v1789
        %v1895 = vpop.f32.mrb[0].mxu0
        %v1896 = vadd.f32 0.0, %v1895
        %v1897 = vpop.f32.mrb[0].mxu0
        %v1898 = vpop.f32.mrb[0].mxu0
        %v1899 = vadd.f32 0.0, %v1898
        %v1900 = vpop.f32.mrb[0].mxu0
        %1901 = vmatprep.mubr.bf16.mxu0 0
        %1902 = vmatmul.mubr.bf16.gmra.mrb[0].mxu0 %v1790
        %v1903 = vpop.f32.mrb[0].mxu0
        %v1904 = vadd.f32 0.0, %v1903
        %v1905 = vpop.f32.mrb[0].mxu0
        %v1906 = vpop.f32.mrb[0].mxu0
        %v1907 = vadd.f32 0.0, %v1906
        %v1908 = vpop.f32.mrb[0].mxu0
        %1909 = vmatprep.mubr.bf16.mxu0 0
        %1910 = vmatmul.mubr.bf16.gmra.mrb[0].mxu0 %v1791
        %v1911 = vpop.f32.mrb[0].mxu0
        %v1912 = vadd.f32 0.0, %v1911
        %v1913 = vpop.f32.mrb[0].mxu0
        %v1914 = vpop.f32.mrb[0].mxu0
        %v1915 = vadd.f32 0.0, %v1914
        %v1916 = vpop.f32.mrb[0].mxu0
        %1917 = vmatprep.mubr.bf16.mxu0 0
        %1918 = vmatmul.mubr.bf16.gmra.mrb[0].mxu0 %v1792
        %v1919 = vpop.f32.mrb[0].mxu0
        %v1920 = vadd.f32 0.0, %v1919
        %v1921 = vpop.f32.mrb[0].mxu0
        %v1922 = vpop.f32.mrb[0].mxu0
        %v1923 = vadd.f32 0.0, %v1922
        %v1924 = vpop.f32.mrb[0].mxu0
        %1925 = vmatprep.mubr.bf16.mxu0 0
        %1926 = vmatmul.mubr.bf16.gmra.mrb[0].mxu0 %v1793
        %v1927 = vpop.f32.mrb[0].mxu0
        %v1928 = vadd.f32 0.0, %v1927
        %v1929 = vpop.f32.mrb[0].mxu0
        %v1930 = vpop.f32.mrb[0].mxu0
        %v1931 = vadd.f32 0.0, %v1930
        %v1932 = vpop.f32.mrb[0].mxu0
        %1933 = vmatprep.mubr.bf16.mxu0 0
        %1934 = vmatmul.mubr.bf16.gmra.mrb[0].mxu0 %v1794
        %v1935 = vpop.f32.mrb[0].mxu0
        %v1936 = vadd.f32 0.0, %v1935
        %v1937 = vpop.f32.mrb[0].mxu0
        %v1938 = vpop.f32.mrb[0].mxu0
        %v1939 = vadd.f32 0.0, %v1938
        %v1940 = vpop.f32.mrb[0].mxu0
        %1941 = vmatprep.mubr.bf16.mxu0 0
        %1942 = vmatmul.mubr.bf16.gmra.mrb[0].mxu0 %v1795
        %v1943 = vpop.f32.mrb[0].mxu0
        %v1944 = vadd.f32 0.0, %v1943
        %v1945 = vpop.f32.mrb[0].mxu0
        %v1946 = vpop.f32.mrb[0].mxu0
        %v1947 = vadd.f32 0.0, %v1946
        %v1948 = vpop.f32.mrb[0].mxu0
        %1949 = vmatprep.mubr.bf16.mxu0 0
        %1950 = vmatmul.mubr.bf16.gmra.mrb[0].mxu0 %v1796
        %v1951 = vpop.f32.mrb[0].mxu0
        %v1952 = vadd.f32 0.0, %v1951
        %v1953 = vpop.f32.mrb[0].mxu0
        %v1954 = vpop.f32.mrb[0].mxu0
        %v1955 = vadd.f32 0.0, %v1954
        %v1956 = vpop.f32.mrb[0].mxu0
        %1957 = vmatprep.mubr.bf16.mxu0 0
        %1958 = vmatmul.mubr.bf16.gmra.mrb[0].mxu0 %v1797
        %v1959 = vpop.f32.mrb[0].mxu0
        %v1960 = vadd.f32 0.0, %v1959
        %v1961 = vpop.f32.mrb[0].mxu0
        %v1962 = vpop.f32.mrb[0].mxu0
        %v1963 = vadd.f32 0.0, %v1962
        %v1964 = vpop.f32.mrb[0].mxu0
        %1965 = vmatprep.mubr.bf16.mxu0 0
        %1966 = vmatmul.mubr.bf16.gmra.mrb[0].mxu0 %v1798
        %v1967 = vpop.f32.mrb[0].mxu0
        %v1968 = vadd.f32 0.0, %v1967
        %v1969 = vpop.f32.mrb[0].mxu0
        %v1970 = vpop.f32.mrb[0].mxu0
        %v1971 = vadd.f32 0.0, %v1970
        %v1972 = vpop.f32.mrb[0].mxu0
        %1973 = vmatprep.mubr.bf16.mxu0 0
        %1974 = vmatmul.mubr.bf16.gmra.mrb[0].mxu0 %v1799
        %v1975 = vpop.f32.mrb[0].mxu0
        %v1976 = vadd.f32 0.0, %v1975
        %v1977 = vpop.f32.mrb[0].mxu0
        %v1978 = vpop.f32.mrb[0].mxu0
        %v1979 = vadd.f32 0.0, %v1978
        %v1980 = vpop.f32.mrb[0].mxu0
        %1981 = vmatprep.mubr.bf16.mxu0 0
        %1982 = vmatmul.mubr.bf16.gmra.mrb[0].mxu0 %v1800
        %v1983 = vpop.f32.mrb[0].mxu0
        %v1984 = vadd.f32 0.0, %v1983
        %v1985 = vpop.f32.mrb[0].mxu0
        %v1986 = vpop.f32.mrb[0].mxu0
        %v1987 = vadd.f32 0.0, %v1986
        %v1988 = vpop.f32.mrb[0].mxu0
        %1989 = vdwg.mxu0
        %v1990 = vadd.f32 %v1748, %v1896
        %v1991 = vadd.f32 %v1749, %v1899
        %v1992 = vadd.f32 %v1750, %v1904
        %v1993 = vadd.f32 %v1751, %v1907
        %v1994 = vadd.f32 %v1752, %v1912
        %v1995 = vadd.f32 %v1753, %v1915
        %v1996 = vadd.f32 %v1754, %v1920
        %v1997 = vadd.f32 %v1755, %v1923
        %v1998 = vadd.f32 %v1756, %v1928
        %v1999 = vadd.f32 %v1757, %v1931
        %v2000 = vadd.f32 %v1758, %v1936
        %v2001 = vadd.f32 %v1759, %v1939
        %v2002 = vadd.f32 %v1760, %v1944
        %v2003 = vadd.f32 %v1761, %v1947
        %v2004 = vadd.f32 %v1762, %v1952
        %v2005 = vadd.f32 %v1763, %v1955
        %v2006 = vadd.f32 %v1764, %v1960
        %v2007 = vadd.f32 %v1765, %v1963
        %v2008 = vadd.f32 %v1766, %v1968
        %v2009 = vadd.f32 %v1767, %v1971
        %v2010 = vadd.f32 %v1768, %v1976
        %v2011 = vadd.f32 %v1769, %v1979
        %v2012 = vadd.f32 %v1770, %v1984
        %v2013 = vadd.f32 %v1771, %v1987
        %v2014 = vld [vmem:[%s232 + $0x10] sm:$0xf]
        %v2015 = vld [vmem:[%s232 + $0x14] sm:$0xf]
        %v2016 = vld [vmem:[%s232 + $0x18] sm:$0xf]
        %v2017 = vld [vmem:[%s232 + $0x1c] sm:$0xf]
        %v2018 = vld [vmem:[%s232 + $0x20] sm:$0xf]
        %v2019 = vld [vmem:[%s232 + $0x24] sm:$0xf]
        %v2020 = vld [vmem:[%s232 + $0x28] sm:$0xf]
        %v2021 = vld [vmem:[%s232 + $0x2c] sm:$0xf]
        %v2022 = vld [vmem:[%s232 + $0x30] sm:$0xf]
        %v2023 = vld [vmem:[%s232 + $0x34] sm:$0xf]
        %v2024 = vld [vmem:[%s232 + $0x38] sm:$0xf]
        %v2025 = vld [vmem:[%s232 + $0x3c] sm:$0xf]
        %v2026 = vld [vmem:[%s232 + $0x40] sm:$0xf]
        %v2027 = vld [vmem:[%s232 + $0x44] sm:$0xf]
        %v2028 = vld [vmem:[%s232 + $0x48] sm:$0xf]
        %v2029 = vld [vmem:[%s232 + $0x4c] sm:$0xf]
        %v2030 = vld [vmem:[%s232 + $0x50] sm:$0xf]
        %v2031 = vld [vmem:[%s232 + $0x54] sm:$0xf]
        %v2032 = vld [vmem:[%s232 + $0x58] sm:$0xf]
        %v2033 = vld [vmem:[%s232 + $0x5c] sm:$0xf]
        %v2034 = vld [vmem:[%s232 + $0x60] sm:$0xf]
        %v2035 = vld [vmem:[%s232 + $0x64] sm:$0xf]
        %v2036 = vld [vmem:[%s232 + $0x68] sm:$0xf]
        %v2037 = vld [vmem:[%s232 + $0x6c] sm:$0xf]
        %v2038 = vld [vmem:[%s232 + $0x70] sm:$0x1]
        %s2039 = scalar_lea.vmem [#allocation5], 320
        %v2040 = vld [vmem:[%s2039] sm:$0xf]
        %v2041 = vld [vmem:[%s2039 + $0x4] sm:$0xf]
        %v2042 = vld [vmem:[%s2039 + $0x8] sm:$0xf]
        %v2043 = vld [vmem:[%s2039 + $0xc] sm:$0xf]
        %v2044 = vld [vmem:[%s2039 + $0x10] sm:$0xf]
        %v2045 = vld [vmem:[%s2039 + $0x14] sm:$0xf]
        %v2046 = vld [vmem:[%s2039 + $0x18] sm:$0xf]
        %v2047 = vld [vmem:[%s2039 + $0x1c] sm:$0xf]
        %v2048 = vld [vmem:[%s2039 + $0x20] sm:$0xf]
        %v2049 = vld [vmem:[%s2039 + $0x24] sm:$0xf]
        %v2050 = vld [vmem:[%s2039 + $0x28] sm:$0xf]
        %v2051 = vld [vmem:[%s2039 + $0x2c] sm:$0xf]
        %v2052 = vld [vmem:[%s2039 + $0x30] sm:$0xf]
        %v2053 = vld [vmem:[%s2039 + $0x34] sm:$0xf]
        %v2054 = vld [vmem:[%s2039 + $0x38] sm:$0xf]
        %v2055 = vld [vmem:[%s2039 + $0x3c] sm:$0xf]
        %v2081 = vunpack.c.l.b16 %v2014
        %v2082 = vunpack.c.l.b16 %v2015
        %v2083 = vunpack.c.l.b16 %v2016
        %v2084 = vunpack.c.l.b16 %v2017
        %v2085 = vunpack.c.l.b16 %v2018
        %v2086 = vunpack.c.l.b16 %v2019
        %v2087 = vunpack.c.l.b16 %v2020
        %v2088 = vunpack.c.l.b16 %v2021
        %v2089 = vunpack.c.l.b16 %v2022
        %v2090 = vunpack.c.l.b16 %v2023
        %v2091 = vunpack.c.l.b16 %v2024
        %v2092 = vunpack.c.l.b16 %v2025
        %v2093 = vunpack.c.l.b16 %v2026
        %v2094 = vunpack.c.l.b16 %v2027
        %v2095 = vunpack.c.l.b16 %v2028
        %v2096 = vunpack.c.l.b16 %v2029
        %v2097 = vunpack.c.l.b16 %v2030
        %v2098 = vunpack.c.l.b16 %v2031
        %v2099 = vunpack.c.l.b16 %v2032
        %v2100 = vunpack.c.l.b16 %v2033
        %v2101 = vunpack.c.l.b16 %v2034
        %v2102 = vunpack.c.l.b16 %v2035
        %v2103 = vunpack.c.l.b16 %v2036
        %v2104 = vunpack.c.l.b16 %v2037
        %v2105 = vunpack.c.l.b16 %v2038
        %v2106 = vpack.c.b16 %v2082, %v2081
        %v2107 = vpack.c.b16 %v2084, %v2083
        %v2108 = vpack.c.b16 %v2086, %v2085
        %v2109 = vpack.c.b16 %v2088, %v2087
        %v2110 = vpack.c.b16 %v2090, %v2089
        %v2111 = vpack.c.b16 %v2092, %v2091
        %v2112 = vpack.c.b16 %v2094, %v2093
        %v2113 = vpack.c.b16 %v2096, %v2095
        %v2114 = vpack.c.b16 %v2098, %v2097
        %v2115 = vpack.c.b16 %v2100, %v2099
        %v2116 = vpack.c.b16 %v2102, %v2101
        %v2117 = vpack.c.b16 %v2104, %v2103
        %v2118 = vpack.c.b16 %v2105, %v2105
        %v2120 = vshrl.u32 %v2106, 16
        %v2122 = vshll.u32 %v2106, 16
        %v2124 = vrot.slane %v2122, 1
        %v2125 = vor.u32 %v2120, %v2124
        %v2127 = vshll.u32 %v2107, 16
        %v2129 = vrot.slane %v2127, 1
        %v2130 = vsel %vm1024, %v2125, %v2129
        %v2131 = vshrl.u32 %v2107, 16
        %v2133 = vor.u32 %v2131, %v2129
        %v2135 = vshll.u32 %v2108, 16
        %v2137 = vrot.slane %v2135, 1
        %v2138 = vsel %vm1024, %v2133, %v2137
        %v2139 = vshrl.u32 %v2108, 16
        %v2141 = vor.u32 %v2139, %v2137
        %v2143 = vshll.u32 %v2109, 16
        %v2145 = vrot.slane %v2143, 1
        %v2146 = vsel %vm1024, %v2141, %v2145
        %v2147 = vshrl.u32 %v2109, 16
        %v2149 = vor.u32 %v2147, %v2145
        %v2151 = vshll.u32 %v2110, 16
        %v2153 = vrot.slane %v2151, 1
        %v2154 = vsel %vm1024, %v2149, %v2153
        %v2155 = vshrl.u32 %v2110, 16
        %v2157 = vor.u32 %v2155, %v2153
        %v2159 = vshll.u32 %v2111, 16
        %v2161 = vrot.slane %v2159, 1
        %v2162 = vsel %vm1024, %v2157, %v2161
        %v2163 = vshrl.u32 %v2111, 16
        %v2165 = vor.u32 %v2163, %v2161
        %v2167 = vshll.u32 %v2112, 16
        %v2169 = vrot.slane %v2167, 1
        %v2170 = vsel %vm1024, %v2165, %v2169
        %v2171 = vshrl.u32 %v2112, 16
        %v2173 = vor.u32 %v2171, %v2169
        %v2175 = vshll.u32 %v2113, 16
        %v2177 = vrot.slane %v2175, 1
        %v2178 = vsel %vm1024, %v2173, %v2177
        %v2179 = vshrl.u32 %v2113, 16
        %v2181 = vor.u32 %v2179, %v2177
        %v2183 = vshll.u32 %v2114, 16
        %v2185 = vrot.slane %v2183, 1
        %v2186 = vsel %vm1024, %v2181, %v2185
        %v2187 = vshrl.u32 %v2114, 16
        %v2189 = vor.u32 %v2187, %v2185
        %v2191 = vshll.u32 %v2115, 16
        %v2193 = vrot.slane %v2191, 1
        %v2194 = vsel %vm1024, %v2189, %v2193
        %v2195 = vshrl.u32 %v2115, 16
        %v2197 = vor.u32 %v2195, %v2193
        %v2199 = vshll.u32 %v2116, 16
        %v2201 = vrot.slane %v2199, 1
        %v2202 = vsel %vm1024, %v2197, %v2201
        %v2203 = vshrl.u32 %v2116, 16
        %v2205 = vor.u32 %v2203, %v2201
        %v2207 = vshll.u32 %v2117, 16
        %v2209 = vrot.slane %v2207, 1
        %v2210 = vsel %vm1024, %v2205, %v2209
        %v2211 = vshrl.u32 %v2117, 16
        %v2213 = vor.u32 %v2211, %v2209
        %v2215 = vshll.u32 %v2118, 16
        %v2217 = vrot.slane %v2215, 1
        %v2218 = vsel %vm1024, %v2213, %v2217
        %v2247 = vunpack.c.l.b16 %v2040
        %v2248 = vunpack.c.l.b16 %v2041
        %v2249 = vunpack.c.l.b16 %v2042
        %v2250 = vunpack.c.l.b16 %v2043
        %v2251 = vunpack.c.l.b16 %v2044
        %v2252 = vunpack.c.l.b16 %v2045
        %v2253 = vunpack.c.l.b16 %v2046
        %v2254 = vunpack.c.l.b16 %v2047
        %v2255 = vunpack.c.l.b16 %v2048
        %v2256 = vunpack.c.l.b16 %v2049
        %v2257 = vunpack.c.l.b16 %v2050
        %v2258 = vunpack.c.l.b16 %v2051
        %v2259 = vunpack.c.l.b16 %v2052
        %v2260 = vunpack.c.l.b16 %v2053
        %v2261 = vunpack.c.l.b16 %v2054
        %v2262 = vunpack.c.l.b16 %v2055
        %v2263 = vpack.c.b16 %v2248, %v2247
        %v2264 = vpack.c.b16 %v2250, %v2249
        %v2265 = vpack.c.b16 %v2252, %v2251
        %v2266 = vpack.c.b16 %v2254, %v2253
        %v2267 = vpack.c.b16 %v2256, %v2255
        %v2268 = vpack.c.b16 %v2258, %v2257
        %v2269 = vpack.c.b16 %v2260, %v2259
        %v2270 = vpack.c.b16 %v2262, %v2261
        %2279 = vmatprep.subr.bf16.mxu0 0
        %2280 = vmatpush1.bf16.msra.mxu0 %v2263
        %2281 = vmatprep.subr.bf16.mxu0 0
        %2282 = vmatpush1.bf16.msra.mxu0 %v2264
        %2283 = vmatprep.subr.bf16.mxu0 0
        %2284 = vmatpush1.bf16.msra.mxu0 %v2265
        %2285 = vmatprep.subr.bf16.mxu0 0
        %2286 = vmatpush1.bf16.msra.mxu0 %v2266
        %2287 = vmatprep.subr.bf16.mxu0 0
        %2288 = vmatpush1.bf16.msra.mxu0 %v2267
        %2289 = vmatprep.subr.bf16.mxu0 0
        %2290 = vmatpush1.bf16.msra.mxu0 %v2268
        %2291 = vmatprep.subr.bf16.mxu0 0
        %2292 = vmatpush1.bf16.msra.mxu0 %v2269
        %2293 = vmatprep.subr.bf16.mxu0 0
        %2294 = vmatpush1.bf16.msra.mxu0 %v2270
        %2295 = vmatprep.subr.bf16.mxu0 0
        %2296 = vmatpush1.bf16.msra.mxu0 0
        %2297 = vmatprep.subr.bf16.mxu0 0
        %2298 = vmatpush1.bf16.msra.mxu0 0
        %2299 = vmatprep.subr.bf16.mxu0 0
        %2300 = vmatpush1.bf16.msra.mxu0 0
        %2301 = vmatprep.subr.bf16.mxu0 0
        %2302 = vmatpush1.bf16.msra.mxu0 0
        %2303 = vmatprep.subr.bf16.mxu0 0
        %2304 = vmatpush1.bf16.msra.mxu0 0
        %2305 = vmatprep.subr.bf16.mxu0 0
        %2306 = vmatpush1.bf16.msra.mxu0 0
        %2307 = vmatprep.subr.bf16.mxu0 0
        %2308 = vmatpush1.bf16.msra.mxu0 0
        %2309 = vmatprep.subr.bf16.mxu0 0
        %2310 = vmatpush1.bf16.msra.mxu0 0
        %2311 = vmatprep.mubr.bf16.mxu0 0
        %2312 = vmatmul.mubr.bf16.gmra.mrb[0].mxu0 %v2130
        %v2313 = vpop.f32.mrb[0].mxu0
        %v2314 = vadd.f32 0.0, %v2313
        %v2315 = vpop.f32.mrb[0].mxu0
        %v2316 = vpop.f32.mrb[0].mxu0
        %v2317 = vadd.f32 0.0, %v2316
        %v2318 = vpop.f32.mrb[0].mxu0
        %2319 = vmatprep.mubr.bf16.mxu0 0
        %2320 = vmatmul.mubr.bf16.gmra.mrb[0].mxu0 %v2138
        %v2321 = vpop.f32.mrb[0].mxu0
        %v2322 = vadd.f32 0.0, %v2321
        %v2323 = vpop.f32.mrb[0].mxu0
        %v2324 = vpop.f32.mrb[0].mxu0
        %v2325 = vadd.f32 0.0, %v2324
        %v2326 = vpop.f32.mrb[0].mxu0
        %2327 = vmatprep.mubr.bf16.mxu0 0
        %2328 = vmatmul.mubr.bf16.gmra.mrb[0].mxu0 %v2146
        %v2329 = vpop.f32.mrb[0].mxu0
        %v2330 = vadd.f32 0.0, %v2329
        %v2331 = vpop.f32.mrb[0].mxu0
        %v2332 = vpop.f32.mrb[0].mxu0
        %v2333 = vadd.f32 0.0, %v2332
        %v2334 = vpop.f32.mrb[0].mxu0
        %2335 = vmatprep.mubr.bf16.mxu0 0
        %2336 = vmatmul.mubr.bf16.gmra.mrb[0].mxu0 %v2154
        %v2337 = vpop.f32.mrb[0].mxu0
        %v2338 = vadd.f32 0.0, %v2337
        %v2339 = vpop.f32.mrb[0].mxu0
        %v2340 = vpop.f32.mrb[0].mxu0
        %v2341 = vadd.f32 0.0, %v2340
        %v2342 = vpop.f32.mrb[0].mxu0
        %2343 = vmatprep.mubr.bf16.mxu0 0
        %2344 = vmatmul.mubr.bf16.gmra.mrb[0].mxu0 %v2162
        %v2345 = vpop.f32.mrb[0].mxu0
        %v2346 = vadd.f32 0.0, %v2345
        %v2347 = vpop.f32.mrb[0].mxu0
        %v2348 = vpop.f32.mrb[0].mxu0
        %v2349 = vadd.f32 0.0, %v2348
        %v2350 = vpop.f32.mrb[0].mxu0
        %2351 = vmatprep.mubr.bf16.mxu0 0
        %2352 = vmatmul.mubr.bf16.gmra.mrb[0].mxu0 %v2170
        %v2353 = vpop.f32.mrb[0].mxu0
        %v2354 = vadd.f32 0.0, %v2353
        %v2355 = vpop.f32.mrb[0].mxu0
        %v2356 = vpop.f32.mrb[0].mxu0
        %v2357 = vadd.f32 0.0, %v2356
        %v2358 = vpop.f32.mrb[0].mxu0
        %2359 = vmatprep.mubr.bf16.mxu0 0
        %2360 = vmatmul.mubr.bf16.gmra.mrb[0].mxu0 %v2178
        %v2361 = vpop.f32.mrb[0].mxu0
        %v2362 = vadd.f32 0.0, %v2361
        %v2363 = vpop.f32.mrb[0].mxu0
        %v2364 = vpop.f32.mrb[0].mxu0
        %v2365 = vadd.f32 0.0, %v2364
        %v2366 = vpop.f32.mrb[0].mxu0
        %2367 = vmatprep.mubr.bf16.mxu0 0
        %2368 = vmatmul.mubr.bf16.gmra.mrb[0].mxu0 %v2186
        %v2369 = vpop.f32.mrb[0].mxu0
        %v2370 = vadd.f32 0.0, %v2369
        %v2371 = vpop.f32.mrb[0].mxu0
        %v2372 = vpop.f32.mrb[0].mxu0
        %v2373 = vadd.f32 0.0, %v2372
        %v2374 = vpop.f32.mrb[0].mxu0
        %2375 = vmatprep.mubr.bf16.mxu0 0
        %2376 = vmatmul.mubr.bf16.gmra.mrb[0].mxu0 %v2194
        %v2377 = vpop.f32.mrb[0].mxu0
        %v2378 = vadd.f32 0.0, %v2377
        %v2379 = vpop.f32.mrb[0].mxu0
        %v2380 = vpop.f32.mrb[0].mxu0
        %v2381 = vadd.f32 0.0, %v2380
        %v2382 = vpop.f32.mrb[0].mxu0
        %2383 = vmatprep.mubr.bf16.mxu0 0
        %2384 = vmatmul.mubr.bf16.gmra.mrb[0].mxu0 %v2202
        %v2385 = vpop.f32.mrb[0].mxu0
        %v2386 = vadd.f32 0.0, %v2385
        %v2387 = vpop.f32.mrb[0].mxu0
        %v2388 = vpop.f32.mrb[0].mxu0
        %v2389 = vadd.f32 0.0, %v2388
        %v2390 = vpop.f32.mrb[0].mxu0
        %2391 = vmatprep.mubr.bf16.mxu0 0
        %2392 = vmatmul.mubr.bf16.gmra.mrb[0].mxu0 %v2210
        %v2393 = vpop.f32.mrb[0].mxu0
        %v2394 = vadd.f32 0.0, %v2393
        %v2395 = vpop.f32.mrb[0].mxu0
        %v2396 = vpop.f32.mrb[0].mxu0
        %v2397 = vadd.f32 0.0, %v2396
        %v2398 = vpop.f32.mrb[0].mxu0
        %2399 = vmatprep.mubr.bf16.mxu0 0
        %2400 = vmatmul.mubr.bf16.gmra.mrb[0].mxu0 %v2218
        %v2401 = vpop.f32.mrb[0].mxu0
        %v2402 = vadd.f32 0.0, %v2401
        %v2403 = vpop.f32.mrb[0].mxu0
        %v2404 = vpop.f32.mrb[0].mxu0
        %v2405 = vadd.f32 0.0, %v2404
        %v2406 = vpop.f32.mrb[0].mxu0
        %2407 = vdwg.mxu0
        %v2408 = vadd.f32 %v1990, %v2314
        %v2409 = vadd.f32 %v1991, %v2317
        %v2410 = vadd.f32 %v1992, %v2322
        %v2411 = vadd.f32 %v1993, %v2325
        %v2412 = vadd.f32 %v1994, %v2330
        %v2413 = vadd.f32 %v1995, %v2333
        %v2414 = vadd.f32 %v1996, %v2338
        %v2415 = vadd.f32 %v1997, %v2341
        %v2416 = vadd.f32 %v1998, %v2346
        %v2417 = vadd.f32 %v1999, %v2349
        %v2418 = vadd.f32 %v2000, %v2354
        %v2419 = vadd.f32 %v2001, %v2357
        %v2420 = vadd.f32 %v2002, %v2362
        %v2421 = vadd.f32 %v2003, %v2365
        %v2422 = vadd.f32 %v2004, %v2370
        %v2423 = vadd.f32 %v2005, %v2373
        %v2424 = vadd.f32 %v2006, %v2378
        %v2425 = vadd.f32 %v2007, %v2381
        %v2426 = vadd.f32 %v2008, %v2386
        %v2427 = vadd.f32 %v2009, %v2389
        %v2428 = vadd.f32 %v2010, %v2394
        %v2429 = vadd.f32 %v2011, %v2397
        %v2430 = vadd.f32 %v2012, %v2402
        %v2431 = vadd.f32 %v2013, %v2405
        %v2432 = vld [vmem:[%s232 + $0x18] sm:$0x8]
        %v2433 = vld [vmem:[%s232 + $0x1c] sm:$0xf]
        %v2434 = vld [vmem:[%s232 + $0x20] sm:$0xf]
        %v2435 = vld [vmem:[%s232 + $0x24] sm:$0xf]
        %v2436 = vld [vmem:[%s232 + $0x28] sm:$0xf]
        %v2437 = vld [vmem:[%s232 + $0x2c] sm:$0xf]
        %v2438 = vld [vmem:[%s232 + $0x30] sm:$0xf]
        %v2439 = vld [vmem:[%s232 + $0x34] sm:$0xf]
        %v2440 = vld [vmem:[%s232 + $0x38] sm:$0xf]
        %v2441 = vld [vmem:[%s232 + $0x3c] sm:$0xf]
        %v2442 = vld [vmem:[%s232 + $0x40] sm:$0xf]
        %v2443 = vld [vmem:[%s232 + $0x44] sm:$0xf]
        %v2444 = vld [vmem:[%s232 + $0x48] sm:$0xf]
        %v2445 = vld [vmem:[%s232 + $0x4c] sm:$0xf]
        %v2446 = vld [vmem:[%s232 + $0x50] sm:$0xf]
        %v2447 = vld [vmem:[%s232 + $0x54] sm:$0xf]
        %v2448 = vld [vmem:[%s232 + $0x58] sm:$0xf]
        %v2449 = vld [vmem:[%s232 + $0x5c] sm:$0xf]
        %v2450 = vld [vmem:[%s232 + $0x60] sm:$0xf]
        %v2451 = vld [vmem:[%s232 + $0x64] sm:$0xf]
        %v2452 = vld [vmem:[%s232 + $0x68] sm:$0xf]
        %v2453 = vld [vmem:[%s232 + $0x6c] sm:$0xf]
        %v2454 = vld [vmem:[%s232 + $0x70] sm:$0xf]
        %v2455 = vld [vmem:[%s232 + $0x74] sm:$0xf]
        %v2456 = vld [vmem:[%s232 + $0x78] sm:$0xf]
        %s2457 = scalar_lea.vmem [#allocation5], 384
        %v2458 = vld [vmem:[%s2457] sm:$0xf]
        %v2459 = vld [vmem:[%s2457 + $0x4] sm:$0xf]
        %v2460 = vld [vmem:[%s2457 + $0x8] sm:$0xf]
        %v2461 = vld [vmem:[%s2457 + $0xc] sm:$0xf]
        %v2462 = vld [vmem:[%s2457 + $0x10] sm:$0xf]
        %v2463 = vld [vmem:[%s2457 + $0x14] sm:$0xf]
        %v2464 = vld [vmem:[%s2457 + $0x18] sm:$0xf]
        %v2465 = vld [vmem:[%s2457 + $0x1c] sm:$0xf]
        %v2466 = vld [vmem:[%s2457 + $0x20] sm:$0xf]
        %v2467 = vld [vmem:[%s2457 + $0x24] sm:$0xf]
        %v2468 = vld [vmem:[%s2457 + $0x28] sm:$0xf]
        %v2469 = vld [vmem:[%s2457 + $0x2c] sm:$0xf]
        %v2470 = vld [vmem:[%s2457 + $0x30] sm:$0xf]
        %v2471 = vld [vmem:[%s2457 + $0x34] sm:$0xf]
        %v2472 = vld [vmem:[%s2457 + $0x38] sm:$0xf]
        %v2473 = vld [vmem:[%s2457 + $0x3c] sm:$0xf]
        %v2499 = vunpack.c.l.b16 %v2432
        %v2500 = vunpack.c.l.b16 %v2433
        %v2501 = vunpack.c.l.b16 %v2434
        %v2502 = vunpack.c.l.b16 %v2435
        %v2503 = vunpack.c.l.b16 %v2436
        %v2504 = vunpack.c.l.b16 %v2437
        %v2505 = vunpack.c.l.b16 %v2438
        %v2506 = vunpack.c.l.b16 %v2439
        %v2507 = vunpack.c.l.b16 %v2440
        %v2508 = vunpack.c.l.b16 %v2441
        %v2509 = vunpack.c.l.b16 %v2442
        %v2510 = vunpack.c.l.b16 %v2443
        %v2511 = vunpack.c.l.b16 %v2444
        %v2512 = vunpack.c.l.b16 %v2445
        %v2513 = vunpack.c.l.b16 %v2446
        %v2514 = vunpack.c.l.b16 %v2447
        %v2515 = vunpack.c.l.b16 %v2448
        %v2516 = vunpack.c.l.b16 %v2449
        %v2517 = vunpack.c.l.b16 %v2450
        %v2518 = vunpack.c.l.b16 %v2451
        %v2519 = vunpack.c.l.b16 %v2452
        %v2520 = vunpack.c.l.b16 %v2453
        %v2521 = vunpack.c.l.b16 %v2454
        %v2522 = vunpack.c.l.b16 %v2455
        %v2523 = vunpack.c.l.b16 %v2456
        %v2524 = vpack.c.b16 %v2500, %v2499
        %v2525 = vpack.c.b16 %v2502, %v2501
        %v2526 = vpack.c.b16 %v2504, %v2503
        %v2527 = vpack.c.b16 %v2506, %v2505
        %v2528 = vpack.c.b16 %v2508, %v2507
        %v2529 = vpack.c.b16 %v2510, %v2509
        %v2530 = vpack.c.b16 %v2512, %v2511
        %v2531 = vpack.c.b16 %v2514, %v2513
        %v2532 = vpack.c.b16 %v2516, %v2515
        %v2533 = vpack.c.b16 %v2518, %v2517
        %v2534 = vpack.c.b16 %v2520, %v2519
        %v2535 = vpack.c.b16 %v2522, %v2521
        %v2536 = vpack.c.b16 %v2523, %v2523
        %v2538 = vshrl.u32 %v2524, 16
        %v2540 = vrot.slane %v2538, 3
        %v2541 = vshll.u32 %v2524, 16
        %v2543 = vrot.slane %v2541, 4
        %v2544 = vor.u32 %v2540, %v2543
        %v2546 = vshrl.u32 %v2525, 16
        %v2548 = vrot.slane %v2546, 3
        %v2549 = vshll.u32 %v2525, 16
        %v2551 = vrot.slane %v2549, 4
        %v2552 = vor.u32 %v2548, %v2551
        %v2553 = vsel %vm613, %v2544, %v2552
        %v2555 = vshrl.u32 %v2526, 16
        %v2557 = vrot.slane %v2555, 3
        %v2558 = vshll.u32 %v2526, 16
        %v2560 = vrot.slane %v2558, 4
        %v2561 = vor.u32 %v2557, %v2560
        %v2562 = vsel %vm613, %v2552, %v2561
        %v2564 = vshrl.u32 %v2527, 16
        %v2566 = vrot.slane %v2564, 3
        %v2567 = vshll.u32 %v2527, 16
        %v2569 = vrot.slane %v2567, 4
        %v2570 = vor.u32 %v2566, %v2569
        %v2571 = vsel %vm613, %v2561, %v2570
        %v2573 = vshrl.u32 %v2528, 16
        %v2575 = vrot.slane %v2573, 3
        %v2576 = vshll.u32 %v2528, 16
        %v2578 = vrot.slane %v2576, 4
        %v2579 = vor.u32 %v2575, %v2578
        %v2580 = vsel %vm613, %v2570, %v2579
        %v2582 = vshrl.u32 %v2529, 16
        %v2584 = vrot.slane %v2582, 3
        %v2585 = vshll.u32 %v2529, 16
        %v2587 = vrot.slane %v2585, 4
        %v2588 = vor.u32 %v2584, %v2587
        %v2589 = vsel %vm613, %v2579, %v2588
        %v2591 = vshrl.u32 %v2530, 16
        %v2593 = vrot.slane %v2591, 3
        %v2594 = vshll.u32 %v2530, 16
        %v2596 = vrot.slane %v2594, 4
        %v2597 = vor.u32 %v2593, %v2596
        %v2598 = vsel %vm613, %v2588, %v2597
        %v2600 = vshrl.u32 %v2531, 16
        %v2602 = vrot.slane %v2600, 3
        %v2603 = vshll.u32 %v2531, 16
        %v2605 = vrot.slane %v2603, 4
        %v2606 = vor.u32 %v2602, %v2605
        %v2607 = vsel %vm613, %v2597, %v2606
        %v2609 = vshrl.u32 %v2532, 16
        %v2611 = vrot.slane %v2609, 3
        %v2612 = vshll.u32 %v2532, 16
        %v2614 = vrot.slane %v2612, 4
        %v2615 = vor.u32 %v2611, %v2614
        %v2616 = vsel %vm613, %v2606, %v2615
        %v2618 = vshrl.u32 %v2533, 16
        %v2620 = vrot.slane %v2618, 3
        %v2621 = vshll.u32 %v2533, 16
        %v2623 = vrot.slane %v2621, 4
        %v2624 = vor.u32 %v2620, %v2623
        %v2625 = vsel %vm613, %v2615, %v2624
        %v2627 = vshrl.u32 %v2534, 16
        %v2629 = vrot.slane %v2627, 3
        %v2630 = vshll.u32 %v2534, 16
        %v2632 = vrot.slane %v2630, 4
        %v2633 = vor.u32 %v2629, %v2632
        %v2634 = vsel %vm613, %v2624, %v2633
        %v2636 = vshrl.u32 %v2535, 16
        %v2638 = vrot.slane %v2636, 3
        %v2639 = vshll.u32 %v2535, 16
        %v2641 = vrot.slane %v2639, 4
        %v2642 = vor.u32 %v2638, %v2641
        %v2643 = vsel %vm613, %v2633, %v2642
        %v2645 = vshrl.u32 %v2536, 16
        %v2647 = vrot.slane %v2645, 3
        %v2648 = vshll.u32 %v2536, 16
        %v2650 = vrot.slane %v2648, 4
        %v2651 = vor.u32 %v2647, %v2650
        %v2652 = vsel %vm613, %v2642, %v2651
        %v2681 = vunpack.c.l.b16 %v2458
        %v2682 = vunpack.c.l.b16 %v2459
        %v2683 = vunpack.c.l.b16 %v2460
        %v2684 = vunpack.c.l.b16 %v2461
        %v2685 = vunpack.c.l.b16 %v2462
        %v2686 = vunpack.c.l.b16 %v2463
        %v2687 = vunpack.c.l.b16 %v2464
        %v2688 = vunpack.c.l.b16 %v2465
        %v2689 = vunpack.c.l.b16 %v2466
        %v2690 = vunpack.c.l.b16 %v2467
        %v2691 = vunpack.c.l.b16 %v2468
        %v2692 = vunpack.c.l.b16 %v2469
        %v2693 = vunpack.c.l.b16 %v2470
        %v2694 = vunpack.c.l.b16 %v2471
        %v2695 = vunpack.c.l.b16 %v2472
        %v2696 = vunpack.c.l.b16 %v2473
        %v2697 = vpack.c.b16 %v2682, %v2681
        %v2698 = vpack.c.b16 %v2684, %v2683
        %v2699 = vpack.c.b16 %v2686, %v2685
        %v2700 = vpack.c.b16 %v2688, %v2687
        %v2701 = vpack.c.b16 %v2690, %v2689
        %v2702 = vpack.c.b16 %v2692, %v2691
        %v2703 = vpack.c.b16 %v2694, %v2693
        %v2704 = vpack.c.b16 %v2696, %v2695
        %2713 = vmatprep.subr.bf16.mxu0 0
        %2714 = vmatpush1.bf16.msra.mxu0 %v2697
        %2715 = vmatprep.subr.bf16.mxu0 0
        %2716 = vmatpush1.bf16.msra.mxu0 %v2698
        %2717 = vmatprep.subr.bf16.mxu0 0
        %2718 = vmatpush1.bf16.msra.mxu0 %v2699
        %2719 = vmatprep.subr.bf16.mxu0 0
        %2720 = vmatpush1.bf16.msra.mxu0 %v2700
        %2721 = vmatprep.subr.bf16.mxu0 0
        %2722 = vmatpush1.bf16.msra.mxu0 %v2701
        %2723 = vmatprep.subr.bf16.mxu0 0
        %2724 = vmatpush1.bf16.msra.mxu0 %v2702
        %2725 = vmatprep.subr.bf16.mxu0 0
        %2726 = vmatpush1.bf16.msra.mxu0 %v2703
        %2727 = vmatprep.subr.bf16.mxu0 0
        %2728 = vmatpush1.bf16.msra.mxu0 %v2704
        %2729 = vmatprep.subr.bf16.mxu0 0
        %2730 = vmatpush1.bf16.msra.mxu0 0
        %2731 = vmatprep.subr.bf16.mxu0 0
        %2732 = vmatpush1.bf16.msra.mxu0 0
        %2733 = vmatprep.subr.bf16.mxu0 0
        %2734 = vmatpush1.bf16.msra.mxu0 0
        %2735 = vmatprep.subr.bf16.mxu0 0
        %2736 = vmatpush1.bf16.msra.mxu0 0
        %2737 = vmatprep.subr.bf16.mxu0 0
        %2738 = vmatpush1.bf16.msra.mxu0 0
        %2739 = vmatprep.subr.bf16.mxu0 0
        %2740 = vmatpush1.bf16.msra.mxu0 0
        %2741 = vmatprep.subr.bf16.mxu0 0
        %2742 = vmatpush1.bf16.msra.mxu0 0
        %2743 = vmatprep.subr.bf16.mxu0 0
        %2744 = vmatpush1.bf16.msra.mxu0 0
        %2745 = vmatprep.mubr.bf16.mxu0 0
        %2746 = vmatmul.mubr.bf16.gmra.mrb[0].mxu0 %v2553
        %v2747 = vpop.f32.mrb[0].mxu0
        %v2748 = vadd.f32 0.0, %v2747
        %v2749 = vpop.f32.mrb[0].mxu0
        %v2750 = vpop.f32.mrb[0].mxu0
        %v2751 = vadd.f32 0.0, %v2750
        %v2752 = vpop.f32.mrb[0].mxu0
        %2753 = vmatprep.mubr.bf16.mxu0 0
        %2754 = vmatmul.mubr.bf16.gmra.mrb[0].mxu0 %v2562
        %v2755 = vpop.f32.mrb[0].mxu0
        %v2756 = vadd.f32 0.0, %v2755
        %v2757 = vpop.f32.mrb[0].mxu0
        %v2758 = vpop.f32.mrb[0].mxu0
        %v2759 = vadd.f32 0.0, %v2758
        %v2760 = vpop.f32.mrb[0].mxu0
        %2761 = vmatprep.mubr.bf16.mxu0 0
        %2762 = vmatmul.mubr.bf16.gmra.mrb[0].mxu0 %v2571
        %v2763 = vpop.f32.mrb[0].mxu0
        %v2764 = vadd.f32 0.0, %v2763
        %v2765 = vpop.f32.mrb[0].mxu0
        %v2766 = vpop.f32.mrb[0].mxu0
        %v2767 = vadd.f32 0.0, %v2766
        %v2768 = vpop.f32.mrb[0].mxu0
        %2769 = vmatprep.mubr.bf16.mxu0 0
        %2770 = vmatmul.mubr.bf16.gmra.mrb[0].mxu0 %v2580
        %v2771 = vpop.f32.mrb[0].mxu0
        %v2772 = vadd.f32 0.0, %v2771
        %v2773 = vpop.f32.mrb[0].mxu0
        %v2774 = vpop.f32.mrb[0].mxu0
        %v2775 = vadd.f32 0.0, %v2774
        %v2776 = vpop.f32.mrb[0].mxu0
        %2777 = vmatprep.mubr.bf16.mxu0 0
        %2778 = vmatmul.mubr.bf16.gmra.mrb[0].mxu0 %v2589
        %v2779 = vpop.f32.mrb[0].mxu0
        %v2780 = vadd.f32 0.0, %v2779
        %v2781 = vpop.f32.mrb[0].mxu0
        %v2782 = vpop.f32.mrb[0].mxu0
        %v2783 = vadd.f32 0.0, %v2782
        %v2784 = vpop.f32.mrb[0].mxu0
        %2785 = vmatprep.mubr.bf16.mxu0 0
        %2786 = vmatmul.mubr.bf16.gmra.mrb[0].mxu0 %v2598
        %v2787 = vpop.f32.mrb[0].mxu0
        %v2788 = vadd.f32 0.0, %v2787
        %v2789 = vpop.f32.mrb[0].mxu0
        %v2790 = vpop.f32.mrb[0].mxu0
        %v2791 = vadd.f32 0.0, %v2790
        %v2792 = vpop.f32.mrb[0].mxu0
        %2793 = vmatprep.mubr.bf16.mxu0 0
        %2794 = vmatmul.mubr.bf16.gmra.mrb[0].mxu0 %v2607
        %v2795 = vpop.f32.mrb[0].mxu0
        %v2796 = vadd.f32 0.0, %v2795
        %v2797 = vpop.f32.mrb[0].mxu0
        %v2798 = vpop.f32.mrb[0].mxu0
        %v2799 = vadd.f32 0.0, %v2798
        %v2800 = vpop.f32.mrb[0].mxu0
        %2801 = vmatprep.mubr.bf16.mxu0 0
        %2802 = vmatmul.mubr.bf16.gmra.mrb[0].mxu0 %v2616
        %v2803 = vpop.f32.mrb[0].mxu0
        %v2804 = vadd.f32 0.0, %v2803
        %v2805 = vpop.f32.mrb[0].mxu0
        %v2806 = vpop.f32.mrb[0].mxu0
        %v2807 = vadd.f32 0.0, %v2806
        %v2808 = vpop.f32.mrb[0].mxu0
        %2809 = vmatprep.mubr.bf16.mxu0 0
        %2810 = vmatmul.mubr.bf16.gmra.mrb[0].mxu0 %v2625
        %v2811 = vpop.f32.mrb[0].mxu0
        %v2812 = vadd.f32 0.0, %v2811
        %v2813 = vpop.f32.mrb[0].mxu0
        %v2814 = vpop.f32.mrb[0].mxu0
        %v2815 = vadd.f32 0.0, %v2814
        %v2816 = vpop.f32.mrb[0].mxu0
        %2817 = vmatprep.mubr.bf16.mxu0 0
        %2818 = vmatmul.mubr.bf16.gmra.mrb[0].mxu0 %v2634
        %v2819 = vpop.f32.mrb[0].mxu0
        %v2820 = vadd.f32 0.0, %v2819
        %v2821 = vpop.f32.mrb[0].mxu0
        %v2822 = vpop.f32.mrb[0].mxu0
        %v2823 = vadd.f32 0.0, %v2822
        %v2824 = vpop.f32.mrb[0].mxu0
        %2825 = vmatprep.mubr.bf16.mxu0 0
        %2826 = vmatmul.mubr.bf16.gmra.mrb[0].mxu0 %v2643
        %v2827 = vpop.f32.mrb[0].mxu0
        %v2828 = vadd.f32 0.0, %v2827
        %v2829 = vpop.f32.mrb[0].mxu0
        %v2830 = vpop.f32.mrb[0].mxu0
        %v2831 = vadd.f32 0.0, %v2830
        %v2832 = vpop.f32.mrb[0].mxu0
        %2833 = vmatprep.mubr.bf16.mxu0 0
        %2834 = vmatmul.mubr.bf16.gmra.mrb[0].mxu0 %v2652
        %v2835 = vpop.f32.mrb[0].mxu0
        %v2836 = vadd.f32 0.0, %v2835
        %v2837 = vpop.f32.mrb[0].mxu0
        %v2838 = vpop.f32.mrb[0].mxu0
        %v2839 = vadd.f32 0.0, %v2838
        %v2840 = vpop.f32.mrb[0].mxu0
        %2841 = vdwg.mxu0
        %v2842 = vadd.f32 %v2408, %v2748
        %v2843 = vadd.f32 %v2409, %v2751
        %v2844 = vadd.f32 %v2410, %v2756
        %v2845 = vadd.f32 %v2411, %v2759
        %v2846 = vadd.f32 %v2412, %v2764
        %v2847 = vadd.f32 %v2413, %v2767
        %v2848 = vadd.f32 %v2414, %v2772
        %v2849 = vadd.f32 %v2415, %v2775
        %v2850 = vadd.f32 %v2416, %v2780
        %v2851 = vadd.f32 %v2417, %v2783
        %v2852 = vadd.f32 %v2418, %v2788
        %v2853 = vadd.f32 %v2419, %v2791
        %v2854 = vadd.f32 %v2420, %v2796
        %v2855 = vadd.f32 %v2421, %v2799
        %v2856 = vadd.f32 %v2422, %v2804
        %v2857 = vadd.f32 %v2423, %v2807
        %v2858 = vadd.f32 %v2424, %v2812
        %v2859 = vadd.f32 %v2425, %v2815
        %v2860 = vadd.f32 %v2426, %v2820
        %v2861 = vadd.f32 %v2427, %v2823
        %v2862 = vadd.f32 %v2428, %v2828
        %v2863 = vadd.f32 %v2429, %v2831
        %v2864 = vadd.f32 %v2430, %v2836
        %v2865 = vadd.f32 %v2431, %v2839
        %s2866 = scalar_lea.vmem [#allocation5], 448
        %v2867 = vld [vmem:[%s2866] sm:$0xf]
        %v2868 = vld [vmem:[%s2866 + $0x4] sm:$0xf]
        %v2869 = vld [vmem:[%s2866 + $0x8] sm:$0xf]
        %v2870 = vld [vmem:[%s2866 + $0xc] sm:$0xf]
        %v2871 = vld [vmem:[%s2866 + $0x10] sm:$0xf]
        %v2872 = vld [vmem:[%s2866 + $0x14] sm:$0xf]
        %v2873 = vld [vmem:[%s2866 + $0x18] sm:$0xf]
        %v2874 = vld [vmem:[%s2866 + $0x1c] sm:$0xf]
        %v2875 = vld [vmem:[%s2866 + $0x20] sm:$0xf]
        %v2876 = vld [vmem:[%s2866 + $0x24] sm:$0xf]
        %v2877 = vld [vmem:[%s2866 + $0x28] sm:$0xf]
        %v2878 = vld [vmem:[%s2866 + $0x2c] sm:$0xf]
        %v2879 = vld [vmem:[%s2866 + $0x30] sm:$0xf]
        %v2880 = vld [vmem:[%s2866 + $0x34] sm:$0xf]
        %v2881 = vld [vmem:[%s2866 + $0x38] sm:$0xf]
        %v2882 = vld [vmem:[%s2866 + $0x3c] sm:$0xf]
        %v2883 = vpack.c.b16 %v2501, %v2500
        %v2884 = vpack.c.b16 %v2503, %v2502
        %v2885 = vpack.c.b16 %v2505, %v2504
        %v2886 = vpack.c.b16 %v2507, %v2506
        %v2887 = vpack.c.b16 %v2509, %v2508
        %v2888 = vpack.c.b16 %v2511, %v2510
        %v2889 = vpack.c.b16 %v2513, %v2512
        %v2890 = vpack.c.b16 %v2515, %v2514
        %v2891 = vpack.c.b16 %v2517, %v2516
        %v2892 = vpack.c.b16 %v2519, %v2518
        %v2893 = vpack.c.b16 %v2521, %v2520
        %v2894 = vpack.c.b16 %v2523, %v2522
        %v2923 = vunpack.c.l.b16 %v2867
        %v2924 = vunpack.c.l.b16 %v2868
        %v2925 = vunpack.c.l.b16 %v2869
        %v2926 = vunpack.c.l.b16 %v2870
        %v2927 = vunpack.c.l.b16 %v2871
        %v2928 = vunpack.c.l.b16 %v2872
        %v2929 = vunpack.c.l.b16 %v2873
        %v2930 = vunpack.c.l.b16 %v2874
        %v2931 = vunpack.c.l.b16 %v2875
        %v2932 = vunpack.c.l.b16 %v2876
        %v2933 = vunpack.c.l.b16 %v2877
        %v2934 = vunpack.c.l.b16 %v2878
        %v2935 = vunpack.c.l.b16 %v2879
        %v2936 = vunpack.c.l.b16 %v2880
        %v2937 = vunpack.c.l.b16 %v2881
        %v2938 = vunpack.c.l.b16 %v2882
        %v2939 = vpack.c.b16 %v2924, %v2923
        %v2940 = vpack.c.b16 %v2926, %v2925
        %v2941 = vpack.c.b16 %v2928, %v2927
        %v2942 = vpack.c.b16 %v2930, %v2929
        %v2943 = vpack.c.b16 %v2932, %v2931
        %v2944 = vpack.c.b16 %v2934, %v2933
        %v2945 = vpack.c.b16 %v2936, %v2935
        %v2946 = vpack.c.b16 %v2938, %v2937
        %2955 = vmatprep.subr.bf16.mxu0 0
        %2956 = vmatpush1.bf16.msra.mxu0 %v2939
        %2957 = vmatprep.subr.bf16.mxu0 0
        %2958 = vmatpush1.bf16.msra.mxu0 %v2940
        %2959 = vmatprep.subr.bf16.mxu0 0
        %2960 = vmatpush1.bf16.msra.mxu0 %v2941
        %2961 = vmatprep.subr.bf16.mxu0 0
        %2962 = vmatpush1.bf16.msra.mxu0 %v2942
        %2963 = vmatprep.subr.bf16.mxu0 0
        %2964 = vmatpush1.bf16.msra.mxu0 %v2943
        %2965 = vmatprep.subr.bf16.mxu0 0
        %2966 = vmatpush1.bf16.msra.mxu0 %v2944
        %2967 = vmatprep.subr.bf16.mxu0 0
        %2968 = vmatpush1.bf16.msra.mxu0 %v2945
        %2969 = vmatprep.subr.bf16.mxu0 0
        %2970 = vmatpush1.bf16.msra.mxu0 %v2946
        %2971 = vmatprep.subr.bf16.mxu0 0
        %2972 = vmatpush1.bf16.msra.mxu0 0
        %2973 = vmatprep.subr.bf16.mxu0 0
        %2974 = vmatpush1.bf16.msra.mxu0 0
        %2975 = vmatprep.subr.bf16.mxu0 0
        %2976 = vmatpush1.bf16.msra.mxu0 0
        %2977 = vmatprep.subr.bf16.mxu0 0
        %2978 = vmatpush1.bf16.msra.mxu0 0
        %2979 = vmatprep.subr.bf16.mxu0 0
        %2980 = vmatpush1.bf16.msra.mxu0 0
        %2981 = vmatprep.subr.bf16.mxu0 0
        %2982 = vmatpush1.bf16.msra.mxu0 0
        %2983 = vmatprep.subr.bf16.mxu0 0
        %2984 = vmatpush1.bf16.msra.mxu0 0
        %2985 = vmatprep.subr.bf16.mxu0 0
        %2986 = vmatpush1.bf16.msra.mxu0 0
        %2987 = vmatprep.mubr.bf16.mxu0 0
        %2988 = vmatmul.mubr.bf16.gmra.mrb[0].mxu0 %v2883
        %v2989 = vpop.f32.mrb[0].mxu0
        %v2990 = vadd.f32 0.0, %v2989
        %v2991 = vpop.f32.mrb[0].mxu0
        %v2992 = vpop.f32.mrb[0].mxu0
        %v2993 = vadd.f32 0.0, %v2992
        %v2994 = vpop.f32.mrb[0].mxu0
        %2995 = vmatprep.mubr.bf16.mxu0 0
        %2996 = vmatmul.mubr.bf16.gmra.mrb[0].mxu0 %v2884
        %v2997 = vpop.f32.mrb[0].mxu0
        %v2998 = vadd.f32 0.0, %v2997
        %v2999 = vpop.f32.mrb[0].mxu0
        %v3000 = vpop.f32.mrb[0].mxu0
        %v3001 = vadd.f32 0.0, %v3000
        %v3002 = vpop.f32.mrb[0].mxu0
        %3003 = vmatprep.mubr.bf16.mxu0 0
        %3004 = vmatmul.mubr.bf16.gmra.mrb[0].mxu0 %v2885
        %v3005 = vpop.f32.mrb[0].mxu0
        %v3006 = vadd.f32 0.0, %v3005
        %v3007 = vpop.f32.mrb[0].mxu0
        %v3008 = vpop.f32.mrb[0].mxu0
        %v3009 = vadd.f32 0.0, %v3008
        %v3010 = vpop.f32.mrb[0].mxu0
        %3011 = vmatprep.mubr.bf16.mxu0 0
        %3012 = vmatmul.mubr.bf16.gmra.mrb[0].mxu0 %v2886
        %v3013 = vpop.f32.mrb[0].mxu0
        %v3014 = vadd.f32 0.0, %v3013
        %v3015 = vpop.f32.mrb[0].mxu0
        %v3016 = vpop.f32.mrb[0].mxu0
        %v3017 = vadd.f32 0.0, %v3016
        %v3018 = vpop.f32.mrb[0].mxu0
        %3019 = vmatprep.mubr.bf16.mxu0 0
        %3020 = vmatmul.mubr.bf16.gmra.mrb[0].mxu0 %v2887
        %v3021 = vpop.f32.mrb[0].mxu0
        %v3022 = vadd.f32 0.0, %v3021
        %v3023 = vpop.f32.mrb[0].mxu0
        %v3024 = vpop.f32.mrb[0].mxu0
        %v3025 = vadd.f32 0.0, %v3024
        %v3026 = vpop.f32.mrb[0].mxu0
        %3027 = vmatprep.mubr.bf16.mxu0 0
        %3028 = vmatmul.mubr.bf16.gmra.mrb[0].mxu0 %v2888
        %v3029 = vpop.f32.mrb[0].mxu0
        %v3030 = vadd.f32 0.0, %v3029
        %v3031 = vpop.f32.mrb[0].mxu0
        %v3032 = vpop.f32.mrb[0].mxu0
        %v3033 = vadd.f32 0.0, %v3032
        %v3034 = vpop.f32.mrb[0].mxu0
        %3035 = vmatprep.mubr.bf16.mxu0 0
        %3036 = vmatmul.mubr.bf16.gmra.mrb[0].mxu0 %v2889
        %v3037 = vpop.f32.mrb[0].mxu0
        %v3038 = vadd.f32 0.0, %v3037
        %v3039 = vpop.f32.mrb[0].mxu0
        %v3040 = vpop.f32.mrb[0].mxu0
        %v3041 = vadd.f32 0.0, %v3040
        %v3042 = vpop.f32.mrb[0].mxu0
        %3043 = vmatprep.mubr.bf16.mxu0 0
        %3044 = vmatmul.mubr.bf16.gmra.mrb[0].mxu0 %v2890
        %v3045 = vpop.f32.mrb[0].mxu0
        %v3046 = vadd.f32 0.0, %v3045
        %v3047 = vpop.f32.mrb[0].mxu0
        %v3048 = vpop.f32.mrb[0].mxu0
        %v3049 = vadd.f32 0.0, %v3048
        %v3050 = vpop.f32.mrb[0].mxu0
        %3051 = vmatprep.mubr.bf16.mxu0 0
        %3052 = vmatmul.mubr.bf16.gmra.mrb[0].mxu0 %v2891
        %v3053 = vpop.f32.mrb[0].mxu0
        %v3054 = vadd.f32 0.0, %v3053
        %v3055 = vpop.f32.mrb[0].mxu0
        %v3056 = vpop.f32.mrb[0].mxu0
        %v3057 = vadd.f32 0.0, %v3056
        %v3058 = vpop.f32.mrb[0].mxu0
        %3059 = vmatprep.mubr.bf16.mxu0 0
        %3060 = vmatmul.mubr.bf16.gmra.mrb[0].mxu0 %v2892
        %v3061 = vpop.f32.mrb[0].mxu0
        %v3062 = vadd.f32 0.0, %v3061
        %v3063 = vpop.f32.mrb[0].mxu0
        %v3064 = vpop.f32.mrb[0].mxu0
        %v3065 = vadd.f32 0.0, %v3064
        %v3066 = vpop.f32.mrb[0].mxu0
        %3067 = vmatprep.mubr.bf16.mxu0 0
        %3068 = vmatmul.mubr.bf16.gmra.mrb[0].mxu0 %v2893
        %v3069 = vpop.f32.mrb[0].mxu0
        %v3070 = vadd.f32 0.0, %v3069
        %v3071 = vpop.f32.mrb[0].mxu0
        %v3072 = vpop.f32.mrb[0].mxu0
        %v3073 = vadd.f32 0.0, %v3072
        %v3074 = vpop.f32.mrb[0].mxu0
        %3075 = vmatprep.mubr.bf16.mxu0 0
        %3076 = vmatmul.mubr.bf16.gmra.mrb[0].mxu0 %v2894
        %v3077 = vpop.f32.mrb[0].mxu0
        %v3078 = vadd.f32 0.0, %v3077
        %v3079 = vpop.f32.mrb[0].mxu0
        %v3080 = vpop.f32.mrb[0].mxu0
        %v3081 = vadd.f32 0.0, %v3080
        %v3082 = vpop.f32.mrb[0].mxu0
        %3083 = vdwg.mxu0
        %v3084 = vadd.f32 %v2842, %v2990
        %v3085 = vadd.f32 %v2843, %v2993
        %v3086 = vadd.f32 %v2844, %v2998
        %v3087 = vadd.f32 %v2845, %v3001
        %v3088 = vadd.f32 %v2846, %v3006
        %v3089 = vadd.f32 %v2847, %v3009
        %v3090 = vadd.f32 %v2848, %v3014
        %v3091 = vadd.f32 %v2849, %v3017
        %v3092 = vadd.f32 %v2850, %v3022
        %v3093 = vadd.f32 %v2851, %v3025
        %v3094 = vadd.f32 %v2852, %v3030
        %v3095 = vadd.f32 %v2853, %v3033
        %v3096 = vadd.f32 %v2854, %v3038
        %v3097 = vadd.f32 %v2855, %v3041
        %v3098 = vadd.f32 %v2856, %v3046
        %v3099 = vadd.f32 %v2857, %v3049
        %v3100 = vadd.f32 %v2858, %v3054
        %v3101 = vadd.f32 %v2859, %v3057
        %v3102 = vadd.f32 %v2860, %v3062
        %v3103 = vadd.f32 %v2861, %v3065
        %v3104 = vadd.f32 %v2862, %v3070
        %v3105 = vadd.f32 %v2863, %v3073
        %v3106 = vadd.f32 %v2864, %v3078
        %v3107 = vadd.f32 %v2865, %v3081
        %v3108 = vld [vmem:[%s232 + $0x1c] sm:$0xf]
        %v3109 = vld [vmem:[%s232 + $0x20] sm:$0xf]
        %v3110 = vld [vmem:[%s232 + $0x24] sm:$0xf]
        %v3111 = vld [vmem:[%s232 + $0x28] sm:$0xf]
        %v3112 = vld [vmem:[%s232 + $0x2c] sm:$0xf]
        %v3113 = vld [vmem:[%s232 + $0x30] sm:$0xf]
        %v3114 = vld [vmem:[%s232 + $0x34] sm:$0xf]
        %v3115 = vld [vmem:[%s232 + $0x38] sm:$0xf]
        %v3116 = vld [vmem:[%s232 + $0x3c] sm:$0xf]
        %v3117 = vld [vmem:[%s232 + $0x40] sm:$0xf]
        %v3118 = vld [vmem:[%s232 + $0x44] sm:$0xf]
        %v3119 = vld [vmem:[%s232 + $0x48] sm:$0xf]
        %v3120 = vld [vmem:[%s232 + $0x4c] sm:$0xf]
        %v3121 = vld [vmem:[%s232 + $0x50] sm:$0xf]
        %v3122 = vld [vmem:[%s232 + $0x54] sm:$0xf]
        %v3123 = vld [vmem:[%s232 + $0x58] sm:$0xf]
        %v3124 = vld [vmem:[%s232 + $0x5c] sm:$0xf]
        %v3125 = vld [vmem:[%s232 + $0x60] sm:$0xf]
        %v3126 = vld [vmem:[%s232 + $0x64] sm:$0xf]
        %v3127 = vld [vmem:[%s232 + $0x68] sm:$0xf]
        %v3128 = vld [vmem:[%s232 + $0x6c] sm:$0xf]
        %v3129 = vld [vmem:[%s232 + $0x70] sm:$0xf]
        %v3130 = vld [vmem:[%s232 + $0x74] sm:$0xf]
        %v3131 = vld [vmem:[%s232 + $0x78] sm:$0xf]
        %v3132 = vld [vmem:[%s232 + $0x7c] sm:$0x1]
        %s3133 = scalar_lea.vmem [#allocation5], 512
        %v3134 = vld [vmem:[%s3133] sm:$0xf]
        %v3135 = vld [vmem:[%s3133 + $0x4] sm:$0xf]
        %v3136 = vld [vmem:[%s3133 + $0x8] sm:$0xf]
        %v3137 = vld [vmem:[%s3133 + $0xc] sm:$0xf]
        %v3138 = vld [vmem:[%s3133 + $0x10] sm:$0xf]
        %v3139 = vld [vmem:[%s3133 + $0x14] sm:$0xf]
        %v3140 = vld [vmem:[%s3133 + $0x18] sm:$0xf]
        %v3141 = vld [vmem:[%s3133 + $0x1c] sm:$0xf]
        %v3142 = vld [vmem:[%s3133 + $0x20] sm:$0xf]
        %v3143 = vld [vmem:[%s3133 + $0x24] sm:$0xf]
        %v3144 = vld [vmem:[%s3133 + $0x28] sm:$0xf]
        %v3145 = vld [vmem:[%s3133 + $0x2c] sm:$0xf]
        %v3146 = vld [vmem:[%s3133 + $0x30] sm:$0xf]
        %v3147 = vld [vmem:[%s3133 + $0x34] sm:$0xf]
        %v3148 = vld [vmem:[%s3133 + $0x38] sm:$0xf]
        %v3149 = vld [vmem:[%s3133 + $0x3c] sm:$0xf]
        %v3175 = vunpack.c.l.b16 %v3108
        %v3176 = vunpack.c.l.b16 %v3109
        %v3177 = vunpack.c.l.b16 %v3110
        %v3178 = vunpack.c.l.b16 %v3111
        %v3179 = vunpack.c.l.b16 %v3112
        %v3180 = vunpack.c.l.b16 %v3113
        %v3181 = vunpack.c.l.b16 %v3114
        %v3182 = vunpack.c.l.b16 %v3115
        %v3183 = vunpack.c.l.b16 %v3116
        %v3184 = vunpack.c.l.b16 %v3117
        %v3185 = vunpack.c.l.b16 %v3118
        %v3186 = vunpack.c.l.b16 %v3119
        %v3187 = vunpack.c.l.b16 %v3120
        %v3188 = vunpack.c.l.b16 %v3121
        %v3189 = vunpack.c.l.b16 %v3122
        %v3190 = vunpack.c.l.b16 %v3123
        %v3191 = vunpack.c.l.b16 %v3124
        %v3192 = vunpack.c.l.b16 %v3125
        %v3193 = vunpack.c.l.b16 %v3126
        %v3194 = vunpack.c.l.b16 %v3127
        %v3195 = vunpack.c.l.b16 %v3128
        %v3196 = vunpack.c.l.b16 %v3129
        %v3197 = vunpack.c.l.b16 %v3130
        %v3198 = vunpack.c.l.b16 %v3131
        %v3199 = vunpack.c.l.b16 %v3132
        %v3200 = vpack.c.b16 %v3176, %v3175
        %v3201 = vpack.c.b16 %v3178, %v3177
        %v3202 = vpack.c.b16 %v3180, %v3179
        %v3203 = vpack.c.b16 %v3182, %v3181
        %v3204 = vpack.c.b16 %v3184, %v3183
        %v3205 = vpack.c.b16 %v3186, %v3185
        %v3206 = vpack.c.b16 %v3188, %v3187
        %v3207 = vpack.c.b16 %v3190, %v3189
        %v3208 = vpack.c.b16 %v3192, %v3191
        %v3209 = vpack.c.b16 %v3194, %v3193
        %v3210 = vpack.c.b16 %v3196, %v3195
        %v3211 = vpack.c.b16 %v3198, %v3197
        %v3212 = vpack.c.b16 %v3199, %v3199
        %v3214 = vshrl.u32 %v3200, 16
        %v3216 = vshll.u32 %v3200, 16
        %v3218 = vrot.slane %v3216, 1
        %v3219 = vor.u32 %v3214, %v3218
        %v3221 = vshll.u32 %v3201, 16
        %v3223 = vrot.slane %v3221, 1
        %v3224 = vsel %vm1024, %v3219, %v3223
        %v3225 = vshrl.u32 %v3201, 16
        %v3227 = vor.u32 %v3225, %v3223
        %v3229 = vshll.u32 %v3202, 16
        %v3231 = vrot.slane %v3229, 1
        %v3232 = vsel %vm1024, %v3227, %v3231
        %v3233 = vshrl.u32 %v3202, 16
        %v3235 = vor.u32 %v3233, %v3231
        %v3237 = vshll.u32 %v3203, 16
        %v3239 = vrot.slane %v3237, 1
        %v3240 = vsel %vm1024, %v3235, %v3239
        %v3241 = vshrl.u32 %v3203, 16
        %v3243 = vor.u32 %v3241, %v3239
        %v3245 = vshll.u32 %v3204, 16
        %v3247 = vrot.slane %v3245, 1
        %v3248 = vsel %vm1024, %v3243, %v3247
        %v3249 = vshrl.u32 %v3204, 16
        %v3251 = vor.u32 %v3249, %v3247
        %v3253 = vshll.u32 %v3205, 16
        %v3255 = vrot.slane %v3253, 1
        %v3256 = vsel %vm1024, %v3251, %v3255
        %v3257 = vshrl.u32 %v3205, 16
        %v3259 = vor.u32 %v3257, %v3255
        %v3261 = vshll.u32 %v3206, 16
        %v3263 = vrot.slane %v3261, 1
        %v3264 = vsel %vm1024, %v3259, %v3263
        %v3265 = vshrl.u32 %v3206, 16
        %v3267 = vor.u32 %v3265, %v3263
        %v3269 = vshll.u32 %v3207, 16
        %v3271 = vrot.slane %v3269, 1
        %v3272 = vsel %vm1024, %v3267, %v3271
        %v3273 = vshrl.u32 %v3207, 16
        %v3275 = vor.u32 %v3273, %v3271
        %v3277 = vshll.u32 %v3208, 16
        %v3279 = vrot.slane %v3277, 1
        %v3280 = vsel %vm1024, %v3275, %v3279
        %v3281 = vshrl.u32 %v3208, 16
        %v3283 = vor.u32 %v3281, %v3279
        %v3285 = vshll.u32 %v3209, 16
        %v3287 = vrot.slane %v3285, 1
        %v3288 = vsel %vm1024, %v3283, %v3287
        %v3289 = vshrl.u32 %v3209, 16
        %v3291 = vor.u32 %v3289, %v3287
        %v3293 = vshll.u32 %v3210, 16
        %v3295 = vrot.slane %v3293, 1
        %v3296 = vsel %vm1024, %v3291, %v3295
        %v3297 = vshrl.u32 %v3210, 16
        %v3299 = vor.u32 %v3297, %v3295
        %v3301 = vshll.u32 %v3211, 16
        %v3303 = vrot.slane %v3301, 1
        %v3304 = vsel %vm1024, %v3299, %v3303
        %v3305 = vshrl.u32 %v3211, 16
        %v3307 = vor.u32 %v3305, %v3303
        %v3309 = vshll.u32 %v3212, 16
        %v3311 = vrot.slane %v3309, 1
        %v3312 = vsel %vm1024, %v3307, %v3311
        %v3341 = vunpack.c.l.b16 %v3134
        %v3342 = vunpack.c.l.b16 %v3135
        %v3343 = vunpack.c.l.b16 %v3136
        %v3344 = vunpack.c.l.b16 %v3137
        %v3345 = vunpack.c.l.b16 %v3138
        %v3346 = vunpack.c.l.b16 %v3139
        %v3347 = vunpack.c.l.b16 %v3140
        %v3348 = vunpack.c.l.b16 %v3141
        %v3349 = vunpack.c.l.b16 %v3142
        %v3350 = vunpack.c.l.b16 %v3143
        %v3351 = vunpack.c.l.b16 %v3144
        %v3352 = vunpack.c.l.b16 %v3145
        %v3353 = vunpack.c.l.b16 %v3146
        %v3354 = vunpack.c.l.b16 %v3147
        %v3355 = vunpack.c.l.b16 %v3148
        %v3356 = vunpack.c.l.b16 %v3149
        %v3357 = vpack.c.b16 %v3342, %v3341
        %v3358 = vpack.c.b16 %v3344, %v3343
        %v3359 = vpack.c.b16 %v3346, %v3345
        %v3360 = vpack.c.b16 %v3348, %v3347
        %v3361 = vpack.c.b16 %v3350, %v3349
        %v3362 = vpack.c.b16 %v3352, %v3351
        %v3363 = vpack.c.b16 %v3354, %v3353
        %v3364 = vpack.c.b16 %v3356, %v3355
        %3373 = vmatprep.subr.bf16.mxu0 0
        %3374 = vmatpush1.bf16.msra.mxu0 %v3357
        %3375 = vmatprep.subr.bf16.mxu0 0
        %3376 = vmatpush1.bf16.msra.mxu0 %v3358
        %3377 = vmatprep.subr.bf16.mxu0 0
        %3378 = vmatpush1.bf16.msra.mxu0 %v3359
        %3379 = vmatprep.subr.bf16.mxu0 0
        %3380 = vmatpush1.bf16.msra.mxu0 %v3360
        %3381 = vmatprep.subr.bf16.mxu0 0
        %3382 = vmatpush1.bf16.msra.mxu0 %v3361
        %3383 = vmatprep.subr.bf16.mxu0 0
        %3384 = vmatpush1.bf16.msra.mxu0 %v3362
        %3385 = vmatprep.subr.bf16.mxu0 0
        %3386 = vmatpush1.bf16.msra.mxu0 %v3363
        %3387 = vmatprep.subr.bf16.mxu0 0
        %3388 = vmatpush1.bf16.msra.mxu0 %v3364
        %3389 = vmatprep.subr.bf16.mxu0 0
        %3390 = vmatpush1.bf16.msra.mxu0 0
        %3391 = vmatprep.subr.bf16.mxu0 0
        %3392 = vmatpush1.bf16.msra.mxu0 0
        %3393 = vmatprep.subr.bf16.mxu0 0
        %3394 = vmatpush1.bf16.msra.mxu0 0
        %3395 = vmatprep.subr.bf16.mxu0 0
        %3396 = vmatpush1.bf16.msra.mxu0 0
        %3397 = vmatprep.subr.bf16.mxu0 0
        %3398 = vmatpush1.bf16.msra.mxu0 0
        %3399 = vmatprep.subr.bf16.mxu0 0
        %3400 = vmatpush1.bf16.msra.mxu0 0
        %3401 = vmatprep.subr.bf16.mxu0 0
        %3402 = vmatpush1.bf16.msra.mxu0 0
        %3403 = vmatprep.subr.bf16.mxu0 0
        %3404 = vmatpush1.bf16.msra.mxu0 0
        %3405 = vmatprep.mubr.bf16.mxu0 0
        %3406 = vmatmul.mubr.bf16.gmra.mrb[0].mxu0 %v3224
        %v3407 = vpop.f32.mrb[0].mxu0
        %v3408 = vadd.f32 0.0, %v3407
        %v3409 = vpop.f32.mrb[0].mxu0
        %v3410 = vpop.f32.mrb[0].mxu0
        %v3411 = vadd.f32 0.0, %v3410
        %v3412 = vpop.f32.mrb[0].mxu0
        %3413 = vmatprep.mubr.bf16.mxu0 0
        %3414 = vmatmul.mubr.bf16.gmra.mrb[0].mxu0 %v3232
        %v3415 = vpop.f32.mrb[0].mxu0
        %v3416 = vadd.f32 0.0, %v3415
        %v3417 = vpop.f32.mrb[0].mxu0
        %v3418 = vpop.f32.mrb[0].mxu0
        %v3419 = vadd.f32 0.0, %v3418
        %v3420 = vpop.f32.mrb[0].mxu0
        %3421 = vmatprep.mubr.bf16.mxu0 0
        %3422 = vmatmul.mubr.bf16.gmra.mrb[0].mxu0 %v3240
        %v3423 = vpop.f32.mrb[0].mxu0
        %v3424 = vadd.f32 0.0, %v3423
        %v3425 = vpop.f32.mrb[0].mxu0
        %v3426 = vpop.f32.mrb[0].mxu0
        %v3427 = vadd.f32 0.0, %v3426
        %v3428 = vpop.f32.mrb[0].mxu0
        %3429 = vmatprep.mubr.bf16.mxu0 0
        %3430 = vmatmul.mubr.bf16.gmra.mrb[0].mxu0 %v3248
        %v3431 = vpop.f32.mrb[0].mxu0
        %v3432 = vadd.f32 0.0, %v3431
        %v3433 = vpop.f32.mrb[0].mxu0
        %v3434 = vpop.f32.mrb[0].mxu0
        %v3435 = vadd.f32 0.0, %v3434
        %v3436 = vpop.f32.mrb[0].mxu0
        %3437 = vmatprep.mubr.bf16.mxu0 0
        %3438 = vmatmul.mubr.bf16.gmra.mrb[0].mxu0 %v3256
        %v3439 = vpop.f32.mrb[0].mxu0
        %v3440 = vadd.f32 0.0, %v3439
        %v3441 = vpop.f32.mrb[0].mxu0
        %v3442 = vpop.f32.mrb[0].mxu0
        %v3443 = vadd.f32 0.0, %v3442
        %v3444 = vpop.f32.mrb[0].mxu0
        %3445 = vmatprep.mubr.bf16.mxu0 0
        %3446 = vmatmul.mubr.bf16.gmra.mrb[0].mxu0 %v3264
        %v3447 = vpop.f32.mrb[0].mxu0
        %v3448 = vadd.f32 0.0, %v3447
        %v3449 = vpop.f32.mrb[0].mxu0
        %v3450 = vpop.f32.mrb[0].mxu0
        %v3451 = vadd.f32 0.0, %v3450
        %v3452 = vpop.f32.mrb[0].mxu0
        %3453 = vmatprep.mubr.bf16.mxu0 0
        %3454 = vmatmul.mubr.bf16.gmra.mrb[0].mxu0 %v3272
        %v3455 = vpop.f32.mrb[0].mxu0
        %v3456 = vadd.f32 0.0, %v3455
        %v3457 = vpop.f32.mrb[0].mxu0
        %v3458 = vpop.f32.mrb[0].mxu0
        %v3459 = vadd.f32 0.0, %v3458
        %v3460 = vpop.f32.mrb[0].mxu0
        %3461 = vmatprep.mubr.bf16.mxu0 0
        %3462 = vmatmul.mubr.bf16.gmra.mrb[0].mxu0 %v3280
        %v3463 = vpop.f32.mrb[0].mxu0
        %v3464 = vadd.f32 0.0, %v3463
        %v3465 = vpop.f32.mrb[0].mxu0
        %v3466 = vpop.f32.mrb[0].mxu0
        %v3467 = vadd.f32 0.0, %v3466
        %v3468 = vpop.f32.mrb[0].mxu0
        %3469 = vmatprep.mubr.bf16.mxu0 0
        %3470 = vmatmul.mubr.bf16.gmra.mrb[0].mxu0 %v3288
        %v3471 = vpop.f32.mrb[0].mxu0
        %v3472 = vadd.f32 0.0, %v3471
        %v3473 = vpop.f32.mrb[0].mxu0
        %v3474 = vpop.f32.mrb[0].mxu0
        %v3475 = vadd.f32 0.0, %v3474
        %v3476 = vpop.f32.mrb[0].mxu0
        %3477 = vmatprep.mubr.bf16.mxu0 0
        %3478 = vmatmul.mubr.bf16.gmra.mrb[0].mxu0 %v3296
        %v3479 = vpop.f32.mrb[0].mxu0
        %v3480 = vadd.f32 0.0, %v3479
        %v3481 = vpop.f32.mrb[0].mxu0
        %v3482 = vpop.f32.mrb[0].mxu0
        %v3483 = vadd.f32 0.0, %v3482
        %v3484 = vpop.f32.mrb[0].mxu0
        %3485 = vmatprep.mubr.bf16.mxu0 0
        %3486 = vmatmul.mubr.bf16.gmra.mrb[0].mxu0 %v3304
        %v3487 = vpop.f32.mrb[0].mxu0
        %v3488 = vadd.f32 0.0, %v3487
        %v3489 = vpop.f32.mrb[0].mxu0
        %v3490 = vpop.f32.mrb[0].mxu0
        %v3491 = vadd.f32 0.0, %v3490
        %v3492 = vpop.f32.mrb[0].mxu0
        %3493 = vmatprep.mubr.bf16.mxu0 0
        %3494 = vmatmul.mubr.bf16.gmra.mrb[0].mxu0 %v3312
        %v3495 = vpop.f32.mrb[0].mxu0
        %v3496 = vadd.f32 0.0, %v3495
        %v3497 = vpop.f32.mrb[0].mxu0
        %v3498 = vpop.f32.mrb[0].mxu0
        %v3499 = vadd.f32 0.0, %v3498
        %v3500 = vpop.f32.mrb[0].mxu0
        %3501 = vdwg.mxu0
        %v3502 = vadd.f32 %v3084, %v3408
        %v3503 = vadd.f32 %v3085, %v3411
        %v3504 = vadd.f32 %v3086, %v3416
        %v3505 = vadd.f32 %v3087, %v3419
        %v3506 = vadd.f32 %v3088, %v3424
        %v3507 = vadd.f32 %v3089, %v3427
        %v3508 = vadd.f32 %v3090, %v3432
        %v3509 = vadd.f32 %v3091, %v3435
        %v3510 = vadd.f32 %v3092, %v3440
        %v3511 = vadd.f32 %v3093, %v3443
        %v3512 = vadd.f32 %v3094, %v3448
        %v3513 = vadd.f32 %v3095, %v3451
        %v3514 = vadd.f32 %v3096, %v3456
        %v3515 = vadd.f32 %v3097, %v3459
        %v3516 = vadd.f32 %v3098, %v3464
        %v3517 = vadd.f32 %v3099, %v3467
        %v3518 = vadd.f32 %v3100, %v3472
        %v3519 = vadd.f32 %v3101, %v3475
        %v3520 = vadd.f32 %v3102, %v3480
        %v3521 = vadd.f32 %v3103, %v3483
        %v3522 = vadd.f32 %v3104, %v3488
        %v3523 = vadd.f32 %v3105, %v3491
        %v3524 = vadd.f32 %v3106, %v3496
        %v3525 = vadd.f32 %v3107, %v3499
        %v3526 = vmul.f32 %v3502, %v288
        %v3527 = vmul.f32 %v3503, %v289
        %v3528 = vmul.f32 %v3504, %v290
        %v3529 = vmul.f32 %v3505, %v288
        %v3530 = vmul.f32 %v3506, %v289
        %v3531 = vmul.f32 %v3507, %v290
        %v3532 = vmul.f32 %v3508, %v288
        %v3533 = vmul.f32 %v3509, %v289
        %v3534 = vmul.f32 %v3510, %v290
        %v3535 = vmul.f32 %v3511, %v288
        %v3536 = vmul.f32 %v3512, %v289
        %v3537 = vmul.f32 %v3513, %v290
        %v3538 = vmul.f32 %v3514, %v288
        %v3539 = vmul.f32 %v3515, %v289
        %v3540 = vmul.f32 %v3516, %v290
        %v3541 = vmul.f32 %v3517, %v288
        %v3542 = vmul.f32 %v3518, %v289
        %v3543 = vmul.f32 %v3519, %v290
        %v3544 = vmul.f32 %v3520, %v288
        %v3545 = vmul.f32 %v3521, %v289
        %v3546 = vmul.f32 %v3522, %v290
        %v3547 = vmul.f32 %v3523, %v288
        %v3548 = vmul.f32 %v3524, %v289
        %v3549 = vmul.f32 %v3525, %v290
        %v3550 = vadd.f32 %v3526, %v3527
        %v3551 = vadd.f32 %v3550, %v3528
        %v3552 = vadd.f32 %v3551, %v3529
        %v3553 = vadd.f32 %v3552, %v3530
        %v3554 = vadd.f32 %v3553, %v3531
        %v3555 = vadd.f32 %v3554, %v3532
        %v3556 = vadd.f32 %v3555, %v3533
        %v3557 = vadd.f32 %v3556, %v3534
        %v3558 = vadd.f32 %v3557, %v3535
        %v3559 = vadd.f32 %v3558, %v3536
        %v3560 = vadd.f32 %v3559, %v3537
        %v3561 = vadd.f32 %v3560, %v3538
        %v3562 = vadd.f32 %v3561, %v3539
        %v3563 = vadd.f32 %v3562, %v3540
        %v3564 = vadd.f32 %v3563, %v3541
        %v3565 = vadd.f32 %v3564, %v3542
        %v3566 = vadd.f32 %v3565, %v3543
        %v3567 = vadd.f32 %v3566, %v3544
        %v3568 = vadd.f32 %v3567, %v3545
        %v3569 = vadd.f32 %v3568, %v3546
        %v3570 = vadd.f32 %v3569, %v3547
        %v3571 = vadd.f32 %v3570, %v3548
        %v3572 = vadd.f32 %v3571, %v3549
        %v3573 = vrot.slane %v3572, 4
        %v3574 = vadd.f32 %v3572, %v3573
        %v3575 = vrot.slane %v3574, 2
        %v3576 = vadd.f32 %v3574, %v3575
        %v3577 = vrot.slane %v3576, 1
        %v3578 = vadd.f32 %v3576, %v3577
        %v3579 = vmul.f32 %v3578, 0.0078125
        %v3580 = vsub.f32 %v3502, %v3579
        %v3581 = vsub.f32 %v3503, %v3579
        %v3582 = vsub.f32 %v3504, %v3579
        %v3583 = vsub.f32 %v3505, %v3579
        %v3584 = vsub.f32 %v3506, %v3579
        %v3585 = vsub.f32 %v3507, %v3579
        %v3586 = vsub.f32 %v3508, %v3579
        %v3587 = vsub.f32 %v3509, %v3579
        %v3588 = vsub.f32 %v3510, %v3579
        %v3589 = vsub.f32 %v3511, %v3579
        %v3590 = vsub.f32 %v3512, %v3579
        %v3591 = vsub.f32 %v3513, %v3579
        %v3592 = vsub.f32 %v3514, %v3579
        %v3593 = vsub.f32 %v3515, %v3579
        %v3594 = vsub.f32 %v3516, %v3579
        %v3595 = vsub.f32 %v3517, %v3579
        %v3596 = vsub.f32 %v3518, %v3579
        %v3597 = vsub.f32 %v3519, %v3579
        %v3598 = vsub.f32 %v3520, %v3579
        %v3599 = vsub.f32 %v3521, %v3579
        %v3600 = vsub.f32 %v3522, %v3579
        %v3601 = vsub.f32 %v3523, %v3579
        %v3602 = vsub.f32 %v3524, %v3579
        %v3603 = vsub.f32 %v3525, %v3579
        %v3604 = vmul.f32 %v3580, %v288
        %v3605 = vmul.f32 %v3581, %v289
        %v3606 = vmul.f32 %v3582, %v290
        %v3607 = vmul.f32 %v3583, %v288
        %v3608 = vmul.f32 %v3584, %v289
        %v3609 = vmul.f32 %v3585, %v290
        %v3610 = vmul.f32 %v3586, %v288
        %v3611 = vmul.f32 %v3587, %v289
        %v3612 = vmul.f32 %v3588, %v290
        %v3613 = vmul.f32 %v3589, %v288
        %v3614 = vmul.f32 %v3590, %v289
        %v3615 = vmul.f32 %v3591, %v290
        %v3616 = vmul.f32 %v3592, %v288
        %v3617 = vmul.f32 %v3593, %v289
        %v3618 = vmul.f32 %v3594, %v290
        %v3619 = vmul.f32 %v3595, %v288
        %v3620 = vmul.f32 %v3596, %v289
        %v3621 = vmul.f32 %v3597, %v290
        %v3622 = vmul.f32 %v3598, %v288
        %v3623 = vmul.f32 %v3599, %v289
        %v3624 = vmul.f32 %v3600, %v290
        %v3625 = vmul.f32 %v3601, %v288
        %v3626 = vmul.f32 %v3602, %v289
        %v3627 = vmul.f32 %v3603, %v290
        %v3628 = vmul.f32 %v3604, %v3604
        %v3629 = vmul.f32 %v3605, %v3605
        %v3630 = vmul.f32 %v3606, %v3606
        %v3631 = vmul.f32 %v3607, %v3607
        %v3632 = vmul.f32 %v3608, %v3608
        %v3633 = vmul.f32 %v3609, %v3609
        %v3634 = vmul.f32 %v3610, %v3610
        %v3635 = vmul.f32 %v3611, %v3611
        %v3636 = vmul.f32 %v3612, %v3612
        %v3637 = vmul.f32 %v3613, %v3613
        %v3638 = vmul.f32 %v3614, %v3614
        %v3639 = vmul.f32 %v3615, %v3615
        %v3640 = vmul.f32 %v3616, %v3616
        %v3641 = vmul.f32 %v3617, %v3617
        %v3642 = vmul.f32 %v3618, %v3618
        %v3643 = vmul.f32 %v3619, %v3619
        %v3644 = vmul.f32 %v3620, %v3620
        %v3645 = vmul.f32 %v3621, %v3621
        %v3646 = vmul.f32 %v3622, %v3622
        %v3647 = vmul.f32 %v3623, %v3623
        %v3648 = vmul.f32 %v3624, %v3624
        %v3649 = vmul.f32 %v3625, %v3625
        %v3650 = vmul.f32 %v3626, %v3626
        %v3651 = vmul.f32 %v3627, %v3627
        %v3652 = vadd.f32 %v3628, %v3629
        %v3653 = vadd.f32 %v3652, %v3630
        %v3654 = vadd.f32 %v3653, %v3631
        %v3655 = vadd.f32 %v3654, %v3632
        %v3656 = vadd.f32 %v3655, %v3633
        %v3657 = vadd.f32 %v3656, %v3634
        %v3658 = vadd.f32 %v3657, %v3635
        %v3659 = vadd.f32 %v3658, %v3636
        %v3660 = vadd.f32 %v3659, %v3637
        %v3661 = vadd.f32 %v3660, %v3638
        %v3662 = vadd.f32 %v3661, %v3639
        %v3663 = vadd.f32 %v3662, %v3640
        %v3664 = vadd.f32 %v3663, %v3641
        %v3665 = vadd.f32 %v3664, %v3642
        %v3666 = vadd.f32 %v3665, %v3643
        %v3667 = vadd.f32 %v3666, %v3644
        %v3668 = vadd.f32 %v3667, %v3645
        %v3669 = vadd.f32 %v3668, %v3646
        %v3670 = vadd.f32 %v3669, %v3647
        %v3671 = vadd.f32 %v3670, %v3648
        %v3672 = vadd.f32 %v3671, %v3649
        %v3673 = vadd.f32 %v3672, %v3650
        %v3674 = vadd.f32 %v3673, %v3651
        %v3675 = vrot.slane %v3674, 4
        %v3676 = vadd.f32 %v3674, %v3675
        %v3677 = vrot.slane %v3676, 2
        %v3678 = vadd.f32 %v3676, %v3677
        %v3679 = vrot.slane %v3678, 1
        %v3680 = vadd.f32 %v3678, %v3679
        %3681 = vst [vmem:[%s270] sm:$0x1] %v3578
        %3682 = vst [vmem:[%s270 + $0x1] sm:$0x1] %v3680
        %v3683 = vpack.c.bf16 %v3527, %v3526
        %v3684 = vpack.c.bf16 %v3529, %v3528
        %v3685 = vpack.c.bf16 %v3531, %v3530
        %v3686 = vpack.c.bf16 %v3533, %v3532
        %v3687 = vpack.c.bf16 %v3535, %v3534
        %v3688 = vpack.c.bf16 %v3537, %v3536
        %v3689 = vpack.c.bf16 %v3539, %v3538
        %v3690 = vpack.c.bf16 %v3541, %v3540
        %v3691 = vpack.c.bf16 %v3543, %v3542
        %v3692 = vpack.c.bf16 %v3545, %v3544
        %v3693 = vpack.c.bf16 %v3547, %v3546
        %v3694 = vpack.c.bf16 %v3549, %v3548
        %v3707 = vunpack.c.l.b16 %v3683
        %v3708 = vunpack.c.h.b16 %v3683
        %v3709 = vunpack.c.l.b16 %v3684
        %v3710 = vunpack.c.h.b16 %v3684
        %v3711 = vunpack.c.l.b16 %v3685
        %v3712 = vunpack.c.h.b16 %v3685
        %v3713 = vunpack.c.l.b16 %v3686
        %v3714 = vunpack.c.h.b16 %v3686
        %v3715 = vunpack.c.l.b16 %v3687
        %v3716 = vunpack.c.h.b16 %v3687
        %v3717 = vunpack.c.l.b16 %v3688
        %v3718 = vunpack.c.h.b16 %v3688
        %v3719 = vunpack.c.l.b16 %v3689
        %v3720 = vunpack.c.h.b16 %v3689
        %v3721 = vunpack.c.l.b16 %v3690
        %v3722 = vunpack.c.h.b16 %v3690
        %v3723 = vunpack.c.l.b16 %v3691
        %v3724 = vunpack.c.h.b16 %v3691
        %v3725 = vunpack.c.l.b16 %v3692
        %v3726 = vunpack.c.h.b16 %v3692
        %v3727 = vunpack.c.l.b16 %v3693
        %v3728 = vunpack.c.h.b16 %v3693
        %v3729 = vunpack.c.l.b16 %v3694
        %v3730 = vunpack.c.h.b16 %v3694
        %v3731 = vpack.c.b16 %v3707, %v3707
        %v3732 = vpack.c.b16 %v3708, %v3708
        %v3733 = vpack.c.b16 %v3709, %v3709
        %v3734 = vpack.c.b16 %v3710, %v3710
        %v3735 = vpack.c.b16 %v3711, %v3711
        %v3736 = vpack.c.b16 %v3712, %v3712
        %v3737 = vpack.c.b16 %v3713, %v3713
        %v3738 = vpack.c.b16 %v3714, %v3714
        %v3739 = vpack.c.b16 %v3715, %v3715
        %v3740 = vpack.c.b16 %v3716, %v3716
        %v3741 = vpack.c.b16 %v3717, %v3717
        %v3742 = vpack.c.b16 %v3718, %v3718
        %v3743 = vpack.c.b16 %v3719, %v3719
        %v3744 = vpack.c.b16 %v3720, %v3720
        %v3745 = vpack.c.b16 %v3721, %v3721
        %v3746 = vpack.c.b16 %v3722, %v3722
        %v3747 = vpack.c.b16 %v3723, %v3723
        %v3748 = vpack.c.b16 %v3724, %v3724
        %v3749 = vpack.c.b16 %v3725, %v3725
        %v3750 = vpack.c.b16 %v3726, %v3726
        %v3751 = vpack.c.b16 %v3727, %v3727
        %v3752 = vpack.c.b16 %v3728, %v3728
        %v3753 = vpack.c.b16 %v3729, %v3729
        %v3754 = vpack.c.b16 %v3730, %v3730
        %3779 = vst [vmem:[%s256] sm:$0xf] %v3731
        %3780 = vst [vmem:[%s256 + $0x4] sm:$0xf] %v3732
        %3781 = vst [vmem:[%s256 + $0x8] sm:$0xf] %v3733
        %3782 = vst [vmem:[%s256 + $0xc] sm:$0xf] %v3734
        %3783 = vst [vmem:[%s256 + $0x10] sm:$0xf] %v3735
        %3784 = vst [vmem:[%s256 + $0x14] sm:$0xf] %v3736
        %3785 = vst [vmem:[%s256 + $0x18] sm:$0xf] %v3737
        %3786 = vst [vmem:[%s256 + $0x1c] sm:$0xf] %v3738
        %3787 = vst [vmem:[%s256 + $0x20] sm:$0xf] %v3739
        %3788 = vst [vmem:[%s256 + $0x24] sm:$0xf] %v3740
        %3789 = vst [vmem:[%s256 + $0x28] sm:$0xf] %v3741
        %3790 = vst [vmem:[%s256 + $0x2c] sm:$0xf] %v3742
        %3791 = vst [vmem:[%s256 + $0x30] sm:$0xf] %v3743
        %3792 = vst [vmem:[%s256 + $0x34] sm:$0xf] %v3744
        %3793 = vst [vmem:[%s256 + $0x38] sm:$0xf] %v3745
        %3794 = vst [vmem:[%s256 + $0x3c] sm:$0xf] %v3746
        %3795 = vst [vmem:[%s256 + $0x40] sm:$0xf] %v3747
        %3796 = vst [vmem:[%s256 + $0x44] sm:$0xf] %v3748
        %3797 = vst [vmem:[%s256 + $0x48] sm:$0xf] %v3749
        %3798 = vst [vmem:[%s256 + $0x4c] sm:$0xf] %v3750
        %3799 = vst [vmem:[%s256 + $0x50] sm:$0xf] %v3751
        %3800 = vst [vmem:[%s256 + $0x54] sm:$0xf] %v3752
        %3801 = vst [vmem:[%s256 + $0x58] sm:$0xf] %v3753
        %3802 = vst [vmem:[%s256 + $0x5c] sm:$0xf] %v3754
        %v3803 = vpack.c.bf16 %v3528, %v3528
        %v3805 = vunpack.c.l.b16 %v3803
        %v3806 = vpack.c.b16 %v3805, %v3805
        %3808 = vst [vmem:[%s263] sm:$0xf] %v3731
        %3809 = vst [vmem:[%s263 + $0x4] sm:$0xf] %v3732
        %3810 = vst [vmem:[%s263 + $0x8] sm:$0xf] %v3806
        %v3811 = vpack.c.bf16 %v3548, %v3547
        %v3812 = vpack.c.bf16 %v3549, %v3549
        %v3815 = vunpack.c.l.b16 %v3811
        %v3816 = vunpack.c.h.b16 %v3811
        %v3817 = vunpack.c.l.b16 %v3812
        %v3818 = vpack.c.b16 %v3815, %v3815
        %v3819 = vpack.c.b16 %v3816, %v3816
        %v3820 = vpack.c.b16 %v3817, %v3817
        %s3824 = scalar_lea.vmem %s263, 12 [#allocation8]
        %3825 = vst [vmem:[%s3824] sm:$0xf] %v3818
        %3826 = vst [vmem:[%s3824 + $0x4] sm:$0xf] %v3819
        %3827 = vst [vmem:[%s3824 + $0x8] sm:$0xf] %v3820
        %s3828 = sand.u32 %s97, 1
        %s3829 = scalar_lea.sflag [#allocation4], %s3828
        %s3830 = sand.u32 %s97, 1
        %s3831 = smul.addr %s3830, 96
        %s3832 = scalar_lea.vmem [#allocation7], %s3831
        %s3833 = sand.u32 %s26, 1
        %s3834 = scalar_lea.sflag [#allocation9], %s3833
        %s3835 = sand.u32 %s125, 1
        %s3836 = smul.addr %s3835, 24
        %s3837 = scalar_lea.vmem [#allocation8], %s3836
        %s3838 = sand.u32 %s26, 1
        %s3839 = scalar_lea.sflag [#allocation9], %s3838
        %s3840 = sand.u32 %s153, 1
        %s3841 = smul.addr %s3840, 2
        %s3842 = scalar_lea.vmem [#allocation10], %s3841
        // Predicated region
        $region37: #{tpu_custom_call.1} parent=27 // pred_check
          %p3843 = pneg %p107
        $region38: #{tpu_custom_call.1} parent=27 // pred_check_branch
          %3845 = sbr.rel (%p3843) target = $region40
        $region39: #{tpu_custom_call.1} parent=27 // pred_region
          %s3847 = ssub.s32 1536, 1536
          %3848 = vsyncadd %s3829, %s3847
          %s3849 = smul.addr %s31, 24
          %s3850 = smul.addr %s30, 48
          %s3851 = sadd.s32 %s3849, %s3850
          %s3852 = smul.addr %s3851, 64
          %s3853 = scalar_lea.hbm %s2, %s3852
          %s3854 = sshll.u32 %s3832, 4
          %s3855 = int_to_ptr.vmem [resolvable:$true] %s3854
          %3860 = dma.vmem_to_hbm [thread:$0]  %s3855, 1536, %s3853, %s3829, 64, 64, 4
        $region40: #{tpu_custom_call.1} parent=27 // pred_fallthru
          _
        // Predicated region
        $region41: #{tpu_custom_call.1} parent=27 // pred_check
          %p3861 = pneg %p135
        $region42: #{tpu_custom_call.1} parent=27 // pred_check_branch
          %3863 = sbr.rel (%p3861) target = $region44
        $region43: #{tpu_custom_call.1} parent=27 // pred_region
          %s3865 = ssub.s32 384, 384
          %3866 = vsyncadd %s3834, %s3865
          %s3867 = smul.addr %s31, 6
          %s3868 = smul.addr %s30, 12
          %s3869 = sadd.s32 %s3867, %s3868
          %s3870 = smul.addr %s3869, 64
          %s3871 = scalar_lea.hbm %s3, %s3870
          %s3872 = sshll.u32 %s3837, 4
          %s3873 = int_to_ptr.vmem [resolvable:$true] %s3872
          %3878 = dma.vmem_to_hbm [thread:$0]  %s3873, 384, %s3871, %s3834, 64, 64, 4
        $region44: #{tpu_custom_call.1} parent=27 // pred_fallthru
          _
        // Predicated region
        $region45: #{tpu_custom_call.1} parent=27 // pred_check
          %p3879 = pneg %p163
        $region46: #{tpu_custom_call.1} parent=27 // pred_check_branch
          %3881 = sbr.rel (%p3879) target = $region48
        $region47: #{tpu_custom_call.1} parent=27 // pred_region
          %s3883 = ssub.s32 32, 32
          %3884 = vsyncadd %s3839, %s3883
          %s3885 = smul.addr %s30, 2
          %s3886 = sadd.s32 %s31, %s3885
          %s3887 = smul.addr %s3886, 32
          %s3888 = scalar_lea.hbm %s4, %s3887
          %s3890 = sshll.u32 %s3842, 4
          %s3891 = int_to_ptr.vmem [resolvable:$true] %s3890
          %3893 = dma.vmem_to_hbm [thread:$0]  %s3891, 32, %s3888, %s3839
        $region48: #{tpu_custom_call.1} parent=27 // pred_fallthru
          _
      $region28: #{tpu_custom_call.1} parent=5 // pred_fallthru
        _
      %p3894 = scmp.le.s32.totalorder 2, %s21
      // Predicated region
      $region49: #{tpu_custom_call.1} parent=5 // pred_check
        %p3895 = pneg %p3894
      $region50: #{tpu_custom_call.1} parent=5 // pred_check_branch
        %3897 = sbr.rel (%p3895) target = $region52
      $region51: #{tpu_custom_call.1} parent=5 // pred_region
        %s3898 = ssub.s32 %s21, 2
        // Predicated region
        $region53: #{tpu_custom_call.1} parent=51 // pred_check
          %p3899 = pneg %p113
        $region54: #{tpu_custom_call.1} parent=51 // pred_check_branch
          %3901 = sbr.rel (%p3899) target = $region56
        $region55: #{tpu_custom_call.1} parent=51 // pred_region
          %s3902 = sand.u32 %s98, 1
          %s3903 = scalar_lea.sflag [#allocation4], %s3902
          %s3904 = sand.u32 %s98, 1
          %s3905 = smul.addr %s3904, 96
          %s3906 = scalar_lea.vmem [#allocation7], %s3905
          %3907 = dma.done %s3903, 1536
        $region56: #{tpu_custom_call.1} parent=51 // pred_fallthru
          _
        // Predicated region
        $region57: #{tpu_custom_call.1} parent=51 // pred_check
          %p3908 = pneg %p141
        $region58: #{tpu_custom_call.1} parent=51 // pred_check_branch
          %3910 = sbr.rel (%p3908) target = $region60
        $region59: #{tpu_custom_call.1} parent=51 // pred_region
          %s3911 = sand.u32 %s27, 1
          %s3912 = scalar_lea.sflag [#allocation9], %s3911
          %s3913 = sand.u32 %s126, 1
          %s3914 = smul.addr %s3913, 24
          %s3915 = scalar_lea.vmem [#allocation8], %s3914
          %3916 = dma.done %s3912, 384
        $region60: #{tpu_custom_call.1} parent=51 // pred_fallthru
          _
        // Predicated region
        $region61: #{tpu_custom_call.1} parent=51 // pred_check
          %p3917 = pneg %p169
        $region62: #{tpu_custom_call.1} parent=51 // pred_check_branch
          %3919 = sbr.rel (%p3917) target = $region64
        $region63: #{tpu_custom_call.1} parent=51 // pred_region
          %s3920 = sand.u32 %s27, 1
          %s3921 = scalar_lea.sflag [#allocation9], %s3920
          %s3922 = sand.u32 %s154, 1
          %s3923 = smul.addr %s3922, 2
          %s3924 = scalar_lea.vmem [#allocation10], %s3923
          %3925 = dma.done %s3921, 32
        $region64: #{tpu_custom_call.1} parent=51 // pred_fallthru
          _
      $region52: #{tpu_custom_call.1} parent=5 // pred_fallthru
        _
    $region6: #{tpu_custom_call.1} parent=1 // loop_footer
      %s25 = sadd.s32 1, %s21
    $region7: #{tpu_custom_call.1} parent=1 // loop_footer_branch
      %20 = sbr.rel target = $region3
    $region8: #{tpu_custom_call.1} parent=1 // loop_exit
      _
    %3926 = vsyncpa [#allocation3], 1
    %s3927 = scalar_lea.sflag [#allocation3], 1
    %3928 = vsyncpa %s3927, 1
    %3929 = vsyncpa [#allocation6], 1
    %3930 = vsyncpa [#allocation4], 1
    %s3931 = scalar_lea.sflag [#allocation4], 1
    %3932 = vsyncpa %s3931, 1
    %3933 = vsyncpa [#allocation9], 1
    %s3934 = scalar_lea.sflag [#allocation9], 1
    %3935 = vsyncpa %s3934, 1

</llo_original>
